<compile_context>
chip_gen: v6e
topology: v6e:2x2x1
jax: 0.10.0
libtpu: 0.0.40
codegen_flags: <defaults>
</compile_context>

<pallas_src>
import functools
import math

import jax
import jax.numpy as jnp
from jax.experimental import pallas as pl
from jax.experimental.pallas import tpu as pltpu

# Module "parameters" (deterministic, from __init__ / FocalLoss defaults).
W1 = 1.0          # weight_w1
W2 = 0.5          # weight_w2
W3 = 0.25         # weight_w3 (unused by the reference forward)
ALPHA = 0.99      # FocalLoss alpha
GAMMA = 2.0       # FocalLoss gamma (== 2, applied as an explicit square)

_LANES = 128
_MAX_BLOCK_ROWS = 1024    # 1024 x 128 f32 = 512 KiB per logit block
_ROW_ALIGN = 32           # int8 label tile constraint: (32, 128)
_LN2 = math.log(2.0)


def _round_up(x, m):
    return ((x + m - 1) // m) * m


def _chip_tensorcores():
    """Best-effort TensorCore count per chip (2 on v7x / v4-style megacore)."""
    try:
        kind = jax.devices()[0].device_kind.lower()
    except Exception:
        return 1
    if "v7" in kind or "7x" in kind or "v4" in kind:
        return 2
    return 1


def _loss_kernel(z0_ref, z1_ref, t_ref, out_ref, acc_ref, *,
                 block_rows, tiles_per_part, w1, w2, alpha):
    i = pl.program_id(1)          # reduction step within this partition

    z0 = z0_ref[...].astype(jnp.float32)          # (block_rows, 128)
    z1 = z1_ref[...].astype(jnp.float32)
    t = t_ref[...].astype(jnp.float32)            # binary label {0,1} (int8 in HBM)
    s = 1.0 - 2.0 * t                             # +1 if t == 0, -1 if t == 1

    def softplus_e(x):
        # Stable softplus; also return e = exp(-|x|) for reuse (sigmoid identity).
        e = jnp.exp(-jnp.abs(x))
        return jnp.maximum(x, 0.0) + jnp.log1p(e), e

    # loss1: CrossEntropy with C=2  ->  softplus(z_other - z_true)
    ce, _ = softplus_e(s * (z1 - z0))

    # loss2: FocalLoss over BCE-with-logits vs the one-hot (1-t, t):
    #   bce_c = softplus(x_c), x0 = -s*z0, x1 = s*z1
    #   1 - exp(-bce_c) = sigmoid(x_c)  (reuses e_c; no extra exp on the EUP)
    x0 = -s * z0
    x1 = s * z1
    bce0, e0 = softplus_e(x0)
    bce1, e1 = softplus_e(x1)
    om0 = jnp.where(x0 >= 0.0, 1.0, e0) / (1.0 + e0)   # == 1 - exp(-bce0)
    om1 = jnp.where(x1 >= 0.0, 1.0, e1) / (1.0 + e1)   # == 1 - exp(-bce1)
    focal = om0 * om0 * bce0 + om1 * om1 * bce1        # gamma == 2

    # Fused weighted sum:  final = sum(w1*ce + 0.5*w2*alpha*focal) / N
    val = w1 * ce + (0.5 * w2 * alpha) * focal

    # Cheap vreg-wise partial reduction: (block_rows, 128) -> (8, 128).
    # Tile-preserving reshape; the axis-0 sum is plain VPU adds (no XLU).
    part = val.reshape(block_rows // 8, 8, _LANES).sum(axis=0)

    @pl.when(i == 0)
    def _():
        acc_ref[...] = jnp.zeros_like(acc_ref)

    acc_ref[...] += part

    @pl.when(i == tiles_per_part - 1)
    def _():
        out_ref[0] = acc_ref[...]


def classification_loss(net_output, target, w1=W1, w2=W2, w3=W3,
                        max_block_rows=_MAX_BLOCK_ROWS):
    """JAX/Pallas equivalent of Classification_loss.forward (classflag == 1).

    net_output: (..., C) float logits (C must be 2 for this path).
    target:     (..., 1) labels (any numeric dtype).
    w1/w2 must be static Python numbers (they are baked into the kernel).
    Returns a float32 scalar.
    """
    del w3  # unused by the reference forward
    num_classes = net_output.shape[-1]
    assert num_classes == 2, "classflag==1 path uses one_hot with num_classes=2"
    w1 = float(w1)
    w2 = float(w2)

    # --- plain-JAX glue: label modification + lane-dense per-class split ---
    tgt = jnp.squeeze(target, axis=-1)
    label = ((tgt == 0) | (tgt == 1)).astype(jnp.int8).reshape(-1)    # (N,), 1 B/elem
    z0 = net_output[..., 0].reshape(-1)     # keep native dtype; cast in kernel
    z1 = net_output[..., 1].reshape(-1)
    # TODO(synk): on v5e/v6e the dominant remaining cost is this deinterleave/pad
    # pre-pass; an interleaved-(...,2)-layout kernel variant (pltpu.roll lane
    # pairing) would remove it, but adds EUP work on compute-bound v7x.

    n = z0.shape[0]
    rows = pl.cdiv(n, _LANES)
    block_rows = min(_round_up(int(max_block_rows), _ROW_ALIGN),
                     _round_up(rows, _ROW_ALIGN))
    num_tiles = pl.cdiv(rows, block_rows)
    # 2-way TensorCore split only where it helps (multi-TC chips); on 1-TC
    # chips it would only add a fully padded tile of wasted DMA + compute.
    num_parts = 2 if (num_tiles >= 2 and _chip_tensorcores() >= 2) else 1
    num_tiles = _round_up(num_tiles, num_parts)
    tiles_per_part = num_tiles // num_parts
    rows_padded = num_tiles * block_rows
    total_padded = rows_padded * _LANES
    pad = total_padded - n                  # padded elems: z0=z1=0, label=0

    def _slab(x):
        return jnp.pad(x, (0, pad)).reshape(rows_padded, _LANES)

    z0p, z1p, tp = _slab(z0), _slab(z1), _slab(label)

    kernel = functools.partial(
        _loss_kernel,
        block_rows=int(block_rows),
        tiles_per_part=int(tiles_per_part),
        w1=w1, w2=w2, alpha=float(ALPHA),
    )

    in_block = pl.BlockSpec((block_rows, _LANES),
                            lambda p_, i_: (p_ * tiles_per_part + i_, 0))
    out_block = pl.BlockSpec((1, 8, _LANES), lambda p_, i_: (p_, 0, 0))

    # Explicit VMEM budget (portable down to v7x's 64 MiB physical VMEM).
    z_bytes = z0p.dtype.itemsize
    blk_bytes = block_rows * _LANES * (2 * z_bytes + tp.dtype.itemsize)
    vmem_budget = int(min(64 * 1024 * 1024,
                          max(8 * 1024 * 1024, 4 * blk_bytes + 2 * 1024 * 1024)))

    cost = pl.CostEstimate(
        flops=int(35 * total_padded),
        transcendentals=int(8 * total_padded),
        bytes_accessed=int(total_padded * (2 * z_bytes + tp.dtype.itemsize)
                           + num_parts * 8 * _LANES * 4),
    )

    acc_out = pl.pallas_call(
        kernel,
        out_shape=jax.ShapeDtypeStruct((num_parts, 8, _LANES), jnp.float32),
        grid_spec=pltpu.PrefetchScalarGridSpec(
            num_scalar_prefetch=0,
            grid=(num_parts, tiles_per_part),
            in_specs=[in_block, in_block, in_block],
            out_specs=out_block,
            scratch_shapes=[pltpu.VMEM((8, _LANES), jnp.float32)],
        ),
        compiler_params=pltpu.CompilerParams(
            dimension_semantics=("parallel", "arbitrary"),
            vmem_limit_bytes=vmem_budget,
        ),
        cost_estimate=cost,
    )(z0p, z1p, tp)

    # Finalize once.  Each padded element (zero logits, label 0) contributes
    # exactly softplus(0)=ln2 to CE and alpha*0.5*ln2 to the focal term, i.e.
    # w1*ln2 + 0.5*w2*alpha*0.5*ln2 to the fused sum -> subtract analytically
    # instead of masking every tile in the hot loop.
    pad_corr = float(pad) * (w1 * _LN2 + 0.5 * w2 * float(ALPHA) * 0.5 * _LN2)
    total = jnp.sum(acc_out) - jnp.float32(pad_corr)
    return total / jnp.float32(n)


def _reference(net_output, target, w1=W1, w2=W2):
    """Pure-JAX reference mirroring the PyTorch module (for sanity checking)."""
    c = net_output.shape[-1]
    tgt = jnp.squeeze(target, axis=-1)
    labels = ((tgt == 0) | (tgt == 1)).astype(jnp.int32).reshape(-1)
    z = net_output.reshape(-1, c).astype(jnp.float32)
    t = jax.nn.one_hot(labels, c, dtype=jnp.float32)
    logp = jax.nn.log_softmax(z, axis=-1)
    loss1 = jnp.mean(-jnp.sum(t * logp, axis=-1))
    bce = jnp.maximum(z, 0.0) - z * t + jnp.log1p(jnp.exp(-jnp.abs(z)))
    pt = jnp.exp(-bce)
    loss2 = jnp.mean(ALPHA * (1.0 - pt) ** GAMMA * bce)
    return w1 * loss1 + w2 * loss2


if __name__ == "__main__":
    key = jax.random.PRNGKey(0)
    k1, k2 = jax.random.split(key)

    # net_output: (B, X, Y, C=2) logits; target: (B, X, Y, 1) labels in {0,1,2}.
    # Y != 128 -> ragged tail inside a row; exercises the pad-correction path.
    B, X, Y, C = 2, 132, 100, 2
    net_output = jax.random.normal(k1, (B, X, Y, C), dtype=jnp.float32)
    target = jax.random.randint(k2, (B, X, Y, 1), 0, 3).astype(jnp.int32)

    ref = _reference(net_output, target)

    # Default config: one large block per partition, pad handled analytically.
    loss_fn = jax.jit(classification_loss)
    result = jax.block_until_ready(loss_fn(net_output, target))
    assert jnp.allclose(result, ref, rtol=1e-5, atol=1e-5), (result, ref)

    # Small-block config: exercises the multi-tile accumulation path (and the
    # 2-way TensorCore split with a fully padded extra tile on multi-TC chips).
    loss_fn_small = jax.jit(
        functools.partial(classification_loss, max_block_rows=128))
    result_small = jax.block_until_ready(loss_fn_small(net_output, target))
    assert jnp.allclose(result_small, ref, rtol=1e-5, atol=1e-5), (result_small, ref)

    print("KERNEL_OK")
</pallas_src>

<mosaic_0001>
module attributes {stable_mosaic.version = 11 : i64} {
  func.func @_loss_kernel(%arg0: i32, %arg1: i32, %arg2: memref<224x128xf32, #tpu.memory_space<vmem>>, %arg3: memref<224x128xf32, #tpu.memory_space<vmem>>, %arg4: memref<224x128xi8, #tpu.memory_space<vmem>>, %arg5: memref<1x8x128xf32, #tpu.memory_space<vmem>>, %arg6: memref<8x128xf32, #tpu.memory_space<vmem>>) attributes {dimension_semantics = [#tpu.dimension_semantics<parallel>, #tpu.dimension_semantics<arbitrary>], iteration_bounds = array<i64: 1, 1>, scalar_prefetch = 0 : i64, scratch_operands = 1 : i64, tpu.core_type = #tpu.core_type<tc>, window_params = [{transform_indices = @transform_0, window_bounds = array<i64: 224, 128>}, {transform_indices = @transform_1, window_bounds = array<i64: 224, 128>}, {transform_indices = @transform_2, window_bounds = array<i64: 224, 128>}, {transform_indices = @transform_3, window_bounds = array<i64: 1, 8, 128>}]} {
    %c0 = arith.constant 0 : index
    %c0_0 = arith.constant 0 : index
    %0 = vector.load %arg2[%c0, %c0_0] : memref<224x128xf32, #tpu.memory_space<vmem>>, vector<224x128xf32>
    %c0_1 = arith.constant 0 : index
    %c0_2 = arith.constant 0 : index
    %1 = vector.load %arg3[%c0_1, %c0_2] : memref<224x128xf32, #tpu.memory_space<vmem>>, vector<224x128xf32>
    %c0_3 = arith.constant 0 : index
    %c0_4 = arith.constant 0 : index
    %2 = vector.load %arg4[%c0_3, %c0_4] : memref<224x128xi8, #tpu.memory_space<vmem>>, vector<224x128xi8>
    %3 = arith.sitofp %2 : vector<224x128xi8> to vector<224x128xf32>
    %cst = arith.constant 2.000000e+00 : f32
    %4 = vector.broadcast %cst : f32 to vector<224x128xf32>
    %5 = arith.mulf %4, %3 : vector<224x128xf32>
    %cst_5 = arith.constant 1.000000e+00 : f32
    %6 = vector.broadcast %cst_5 : f32 to vector<224x128xf32>
    %7 = arith.subf %6, %5 : vector<224x128xf32>
    %8 = arith.subf %1, %0 : vector<224x128xf32>
    %9 = arith.mulf %7, %8 : vector<224x128xf32>
    %10 = math.absf %9 : vector<224x128xf32>
    %cst_6 = arith.constant 0.000000e+00 : f32
    %11 = vector.broadcast %cst_6 : f32 to vector<224x128xf32>
    %12 = arith.subf %11, %10 : vector<224x128xf32>
    %13 = math.exp %12 : vector<224x128xf32>
    %cst_7 = arith.constant 0.000000e+00 : f32
    %14 = vector.broadcast %cst_7 : f32 to vector<224x128xf32>
    %15 = arith.maximumf %9, %14 : vector<224x128xf32>
    %16 = math.log1p %13 : vector<224x128xf32>
    %17 = arith.addf %15, %16 : vector<224x128xf32>
    %cst_8 = arith.constant 0.000000e+00 : f32
    %18 = vector.broadcast %cst_8 : f32 to vector<224x128xf32>
    %19 = arith.subf %18, %7 : vector<224x128xf32>
    %20 = arith.mulf %19, %0 : vector<224x128xf32>
    %21 = arith.mulf %7, %1 : vector<224x128xf32>
    %22 = math.absf %20 : vector<224x128xf32>
    %cst_9 = arith.constant 0.000000e+00 : f32
    %23 = vector.broadcast %cst_9 : f32 to vector<224x128xf32>
    %24 = arith.subf %23, %22 : vector<224x128xf32>
    %25 = math.exp %24 : vector<224x128xf32>
    %cst_10 = arith.constant 0.000000e+00 : f32
    %26 = vector.broadcast %cst_10 : f32 to vector<224x128xf32>
    %27 = arith.maximumf %20, %26 : vector<224x128xf32>
    %28 = math.log1p %25 : vector<224x128xf32>
    %29 = arith.addf %27, %28 : vector<224x128xf32>
    %30 = math.absf %21 : vector<224x128xf32>
    %cst_11 = arith.constant 0.000000e+00 : f32
    %31 = vector.broadcast %cst_11 : f32 to vector<224x128xf32>
    %32 = arith.subf %31, %30 : vector<224x128xf32>
    %33 = math.exp %32 : vector<224x128xf32>
    %cst_12 = arith.constant 0.000000e+00 : f32
    %34 = vector.broadcast %cst_12 : f32 to vector<224x128xf32>
    %35 = arith.maximumf %21, %34 : vector<224x128xf32>
    %36 = math.log1p %33 : vector<224x128xf32>
    %37 = arith.addf %35, %36 : vector<224x128xf32>
    %cst_13 = arith.constant 0.000000e+00 : f32
    %38 = vector.broadcast %cst_13 : f32 to vector<224x128xf32>
    %39 = arith.cmpf oge, %20, %38 : vector<224x128xf32>
    %cst_14 = arith.constant 1.000000e+00 : f32
    %40 = vector.broadcast %cst_14 : f32 to vector<224x128xf32>
    %41 = arith.select %39, %40, %25 : vector<224x128xi1>, vector<224x128xf32>
    %cst_15 = arith.constant 1.000000e+00 : f32
    %42 = vector.broadcast %cst_15 : f32 to vector<224x128xf32>
    %43 = arith.addf %42, %25 : vector<224x128xf32>
    %44 = arith.divf %41, %43 : vector<224x128xf32>
    %cst_16 = arith.constant 0.000000e+00 : f32
    %45 = vector.broadcast %cst_16 : f32 to vector<224x128xf32>
    %46 = arith.cmpf oge, %21, %45 : vector<224x128xf32>
    %cst_17 = arith.constant 1.000000e+00 : f32
    %47 = vector.broadcast %cst_17 : f32 to vector<224x128xf32>
    %48 = arith.select %46, %47, %33 : vector<224x128xi1>, vector<224x128xf32>
    %cst_18 = arith.constant 1.000000e+00 : f32
    %49 = vector.broadcast %cst_18 : f32 to vector<224x128xf32>
    %50 = arith.addf %49, %33 : vector<224x128xf32>
    %51 = arith.divf %48, %50 : vector<224x128xf32>
    %52 = arith.mulf %44, %44 : vector<224x128xf32>
    %53 = arith.mulf %52, %29 : vector<224x128xf32>
    %54 = arith.mulf %51, %51 : vector<224x128xf32>
    %55 = arith.mulf %54, %37 : vector<224x128xf32>
    %56 = arith.addf %53, %55 : vector<224x128xf32>
    %cst_19 = arith.constant 1.000000e+00 : f32
    %57 = vector.broadcast %cst_19 : f32 to vector<224x128xf32>
    %58 = arith.mulf %57, %17 : vector<224x128xf32>
    %cst_20 = arith.constant 2.475000e-01 : f32
    %59 = vector.broadcast %cst_20 : f32 to vector<224x128xf32>
    %60 = arith.mulf %59, %56 : vector<224x128xf32>
    %61 = arith.addf %58, %60 : vector<224x128xf32>
    %62 = vector.shape_cast %61 : vector<224x128xf32> to vector<28x8x128xf32>
    %cst_21 = arith.constant dense<0.000000e+00> : vector<8x128xf32>
    %63 = vector.multi_reduction <add>, %62, %cst_21 [0] : vector<28x8x128xf32> to vector<8x128xf32>
    %c0_i32 = arith.constant 0 : i32
    %64 = arith.cmpi eq, %arg1, %c0_i32 : i32
    %65 = arith.extui %64 : i1 to i32
    %c0_i32_22 = arith.constant 0 : i32
    %66 = arith.cmpi ne, %65, %c0_i32_22 : i32
    scf.if %66 {
      %cst_29 = arith.constant 0.000000e+00 : f32
      %73 = vector.broadcast %cst_29 : f32 to vector<8x128xf32>
      %c0_30 = arith.constant 0 : index
      %c0_31 = arith.constant 0 : index
      %74 = vector.load %arg6[%c0_30, %c0_31] : memref<8x128xf32, #tpu.memory_space<vmem>>, vector<8x128xf32>
      tpu.vector_store %arg6[%c0_30, %c0_31], %73 {strides = array<i32>} : memref<8x128xf32, #tpu.memory_space<vmem>>, vector<8x128xf32>,
    } else {
    }
    %c0_23 = arith.constant 0 : index
    %c0_24 = arith.constant 0 : index
    %67 = vector.load %arg6[%c0_23, %c0_24] : memref<8x128xf32, #tpu.memory_space<vmem>>, vector<8x128xf32>
    %68 = arith.addf %67, %63 : vector<8x128xf32>
    %c0_25 = arith.constant 0 : index
    %c0_26 = arith.constant 0 : index
    %69 = vector.load %arg6[%c0_25, %c0_26] : memref<8x128xf32, #tpu.memory_space<vmem>>, vector<8x128xf32>
    tpu.vector_store %arg6[%c0_25, %c0_26], %68 {strides = array<i32>} : memref<8x128xf32, #tpu.memory_space<vmem>>, vector<8x128xf32>,
    %c0_i32_27 = arith.constant 0 : i32
    %70 = arith.cmpi eq, %arg1, %c0_i32_27 : i32
    %71 = arith.extui %70 : i1 to i32
    %c0_i32_28 = arith.constant 0 : i32
    %72 = arith.cmpi ne, %71, %c0_i32_28 : i32
    scf.if %72 {
      %c0_29 = arith.constant 0 : index
      %c0_30 = arith.constant 0 : index
      %73 = vector.load %arg6[%c0_29, %c0_30] : memref<8x128xf32, #tpu.memory_space<vmem>>, vector<8x128xf32>
      %c0_31 = arith.constant 0 : index
      %c0_32 = arith.constant 0 : index
      %c0_33 = arith.constant 0 : index
      %74 = vector.load %arg5[%c0_31, %c0_32, %c0_33] : memref<1x8x128xf32, #tpu.memory_space<vmem>>, vector<1x8x128xf32>
      %75 = vector.shape_cast %74 : vector<1x8x128xf32> to vector<8x128xf32>
      %76 = vector.shape_cast %73 : vector<8x128xf32> to vector<1x8x128xf32>
      tpu.vector_store %arg5[%c0_31, %c0_32, %c0_33], %76 {strides = array<i32>} : memref<1x8x128xf32, #tpu.memory_space<vmem>>, vector<1x8x128xf32>,
    } else {
    }
    return
  }
  func.func @transform_0(%arg0: i32, %arg1: i32) -> (i32, i32) {
    %c1_i32 = arith.constant 1 : i32
    %0 = arith.muli %arg0, %c1_i32 : i32
    %1 = arith.addi %0, %arg1 : i32
    %c0_i32 = arith.constant 0 : i32
    %c0_i32_0 = arith.constant 0 : i32
    return %1, %c0_i32 : i32, i32
  }
  func.func @transform_1(%arg0: i32, %arg1: i32) -> (i32, i32) {
    %c1_i32 = arith.constant 1 : i32
    %0 = arith.muli %arg0, %c1_i32 : i32
    %1 = arith.addi %0, %arg1 : i32
    %c0_i32 = arith.constant 0 : i32
    %c0_i32_0 = arith.constant 0 : i32
    return %1, %c0_i32 : i32, i32
  }
  func.func @transform_2(%arg0: i32, %arg1: i32) -> (i32, i32) {
    %c1_i32 = arith.constant 1 : i32
    %0 = arith.muli %arg0, %c1_i32 : i32
    %1 = arith.addi %0, %arg1 : i32
    %c0_i32 = arith.constant 0 : i32
    %c0_i32_0 = arith.constant 0 : i32
    return %1, %c0_i32 : i32, i32
  }
  func.func @transform_3(%arg0: i32, %arg1: i32) -> (i32, i32, i32) {
    %c0_i32 = arith.constant 0 : i32
    %c0_i32_0 = arith.constant 0 : i32
    %c0_i32_1 = arith.constant 0 : i32
    return %arg0, %c0_i32, %c0_i32_0 : i32, i32, i32
  }
}

</mosaic_0001>

<llo_original>
// kernel: squeeze.4
$region0: #{squeeze.4}
  %s0 = inlined_call_operand.vmem [shape: f32[2,132,100], index: 0, kind: input, shape index: {}]
  %s1 = inlined_call_operand.vmem [shape: f32[26400], index: 1, kind: output, shape index: {}]
  %v2 = vld [vmem:[%s0] sm:$0x1]
  %s3 = scalar_lea.vmem %s0, 31
  %v4 = vld [vmem:[%s3] sm:$0x2]
  %vm5 = vcmask 1041409
  %v6 = vsel %vm5, %v4, %v2
  %s7 = scalar_lea.vmem %s0, 62
  %v8 = vld [vmem:[%s7] sm:$0x4]
  %vm9 = vcmask 1042434
  %v10 = vsel %vm9, %v8, %v6
  %s11 = scalar_lea.vmem %s0, 93
  %v12 = vld [vmem:[%s11] sm:$0x8]
  %vm13 = vcmask 1043459
  %v14 = vsel %vm13, %v12, %v10
  %s15 = scalar_lea.vmem %s0, 124
  %v16 = vld [vmem:[%s15] sm:$0x10]
  %vm17 = vcmask 1044484
  %v18 = vsel %vm17, %v16, %v14
  %vm19 = vcmask 818176
  %20 = vst.msk [vmem:[%s1] ss:$25 sm:$0x1f] %vm19, %v18
  %s21 = scalar_lea.vmem %s0, 164
  %v22 = vld [vmem:[%s21] sm:$0x1]
  %s23 = scalar_lea.vmem %s0, 195
  %v24 = vld [vmem:[%s23] sm:$0x2]
  %vm25 = vcmask 1041409
  %v26 = vsel %vm25, %v24, %v22
  %s27 = scalar_lea.vmem %s0, 226
  %v28 = vld [vmem:[%s27] sm:$0x4]
  %vm29 = vcmask 1042434
  %v30 = vsel %vm29, %v28, %v26
  %s31 = scalar_lea.vmem %s0, 257
  %v32 = vld [vmem:[%s31] sm:$0x8]
  %vm33 = vcmask 1043459
  %v34 = vsel %vm33, %v32, %v30
  %vm35 = vcmask 818176
  %s36 = scalar_lea.vmem %s1, 125
  %37 = vst.msk [vmem:[%s36] ss:$25 sm:$0xf] %vm35, %v34
  %s38 = scalar_lea.vmem %s0, 251
  %s39 = smov 3
  %v40 = vld [vmem:[%s38] ss:$-164 sm:%s39]
  %s41 = scalar_lea.vmem %s0, 547
  %s42 = smov 12
  %v43 = vld [vmem:[%s41] ss:$-164 sm:%s42]
  %vm44 = vcmask 1043458
  %v45 = vsel %vm44, %v43, %v40
  %s46 = scalar_lea.vmem %s0, 843
  %s47 = smov 48
  %v48 = vld [vmem:[%s46] ss:$-164 sm:%s47]
  %vm49 = vcmask 1045508
  %v50 = vsel %vm49, %v48, %v45
  %s51 = scalar_lea.vmem %s0, 371
  %s52 = smov 192
  %v53 = vld [vmem:[%s51] ss:$-36 sm:%s52]
  %vm54 = vcmask 1047558
  %v55 = vsel %vm54, %v53, %v50
  %s56 = scalar_lea.vmem %s0, 251
  %s57 = smov 3
  %v58 = vld [vmem:[%s56] ss:$-164 sm:%s57]
  %s59 = scalar_lea.vmem %s0, 547
  %s60 = smov 12
  %v61 = vld [vmem:[%s59] ss:$-164 sm:%s60]
  %vm62 = vcmask 1043458
  %v63 = vsel %vm62, %v61, %v58
  %s64 = scalar_lea.vmem %s0, 843
  %s65 = smov 48
  %v66 = vld [vmem:[%s64] ss:$-164 sm:%s65]
  %vm67 = vcmask 1045508
  %v68 = vsel %vm67, %v66, %v63
  %s69 = scalar_lea.vmem %s0, 371
  %s70 = smov 192
  %v71 = vld [vmem:[%s69] ss:$-36 sm:%s70]
  %vm72 = vcmask 1047558
  %v73 = vsel %vm72, %v71, %v68
  %vm74 = vcmask 31744
  %v75 = vsel %vm74, %v73, %v55
  %76 = vrot.lane.b32.xlu0 %v75, 124
  %v77 = vpop.permute.xlu0 %76
  %vm78 = vcmask 785408
  %s79 = scalar_lea.vmem %s1, 193
  %80 = vst.msk [vmem:[%s79] ss:$-125 sm:$0x3] %vm78, %v77
  %s81 = scalar_lea.vmem %s1, 418
  %82 = vst.msk [vmem:[%s81] ss:$-125 sm:$0xc] %vm78, %v77
  %s83 = scalar_lea.vmem %s1, 643
  %84 = vst.msk [vmem:[%s83] ss:$-125 sm:$0x30] %vm78, %v77
  %s85 = scalar_lea.vmem %s1, 268
  %86 = vst.msk [vmem:[%s85] ss:$-25 sm:$0xc0] %vm78, %v77
  %vm87 = vcmask 1048544
  %s88 = scalar_lea.vmem %s1, 192
  %89 = vst.msk [vmem:[%s88] ss:$-125 sm:$0x3] %vm87, %v77
  %s90 = scalar_lea.vmem %s1, 417
  %91 = vst.msk [vmem:[%s90] ss:$-125 sm:$0xc] %vm87, %v77
  %s92 = scalar_lea.vmem %s1, 642
  %93 = vst.msk [vmem:[%s92] ss:$-125 sm:$0x30] %vm87, %v77
  %s94 = scalar_lea.vmem %s1, 267
  %95 = vst.msk [vmem:[%s94] ss:$-25 sm:$0xc0] %vm87, %v77
  %s96 = scalar_lea.vmem %s0, 210
  %s97 = smov 3
  %v98 = vld [vmem:[%s96] ss:$-164 sm:%s97]
  %s99 = scalar_lea.vmem %s0, 506
  %s100 = smov 12
  %v101 = vld [vmem:[%s99] ss:$-164 sm:%s100]
  %vm102 = vcmask 1043458
  %v103 = vsel %vm102, %v101, %v98
  %s104 = scalar_lea.vmem %s0, 290
  %s105 = smov 48
  %v106 = vld [vmem:[%s104] ss:$-36 sm:%s105]
  %vm107 = vcmask 1045508
  %v108 = vsel %vm107, %v106, %v103
  %s109 = scalar_lea.vmem %s0, 1226
  %s110 = smov 192
  %v111 = vld [vmem:[%s109] ss:$-164 sm:%s110]
  %vm112 = vcmask 1047558
  %v113 = vsel %vm112, %v111, %v108
  %s114 = scalar_lea.vmem %s0, 210
  %s115 = smov 3
  %v116 = vld [vmem:[%s114] ss:$-164 sm:%s115]
  %s117 = scalar_lea.vmem %s0, 506
  %s118 = smov 12
  %v119 = vld [vmem:[%s117] ss:$-164 sm:%s118]
  %vm120 = vcmask 1043458
  %v121 = vsel %vm120, %v119, %v116
  %s122 = scalar_lea.vmem %s0, 290
  %s123 = smov 48
  %v124 = vld [vmem:[%s122] ss:$-36 sm:%s123]
  %vm125 = vcmask 1045508
  %v126 = vsel %vm125, %v124, %v121
  %s127 = scalar_lea.vmem %s0, 1226
  %s128 = smov 192
  %v129 = vld [vmem:[%s127] ss:$-164 sm:%s128]
  %vm130 = vcmask 1047558
  %v131 = vsel %vm130, %v129, %v126
  %vm132 = vcmask 64512
  %v133 = vsel %vm132, %v131, %v113
  %134 = vrot.lane.b32.xlu0 %v133, 120
  %v135 = vpop.permute.xlu0 %134
  %vm136 = vcmask 752640
  %s137 = scalar_lea.vmem %s1, 161
  %138 = vst.msk [vmem:[%s137] ss:$-125 sm:$0x3] %vm136, %v135
  %s139 = scalar_lea.vmem %s1, 386
  %140 = vst.msk [vmem:[%s139] ss:$-125 sm:$0xc] %vm136, %v135
  %s141 = scalar_lea.vmem %s1, 211
  %142 = vst.msk [vmem:[%s141] ss:$-25 sm:$0x30] %vm136, %v135
  %s143 = scalar_lea.vmem %s1, 936
  %144 = vst.msk [vmem:[%s143] ss:$-125 sm:$0xc0] %vm136, %v135
  %vm145 = vcmask 1048512
  %s146 = scalar_lea.vmem %s1, 160
  %147 = vst.msk [vmem:[%s146] ss:$-125 sm:$0x3] %vm145, %v135
  %s148 = scalar_lea.vmem %s1, 385
  %149 = vst.msk [vmem:[%s148] ss:$-125 sm:$0xc] %vm145, %v135
  %s150 = scalar_lea.vmem %s1, 210
  %151 = vst.msk [vmem:[%s150] ss:$-25 sm:$0x30] %vm145, %v135
  %s152 = scalar_lea.vmem %s1, 935
  %153 = vst.msk [vmem:[%s152] ss:$-125 sm:$0xc0] %vm145, %v135
  %s154 = scalar_lea.vmem %s0, 169
  %s155 = smov 3
  %v156 = vld [vmem:[%s154] ss:$-164 sm:%s155]
  %s157 = scalar_lea.vmem %s0, 135
  %v158 = vld [vmem:[%s157] sm:$0x4]
  %vm159 = vcmask 1042434
  %v160 = vsel %vm159, %v158, %v156
  %s161 = scalar_lea.vmem %s0, 757
  %s162 = smov 24
  %v163 = vld [vmem:[%s161] ss:$-164 sm:%s162]
  %vm164 = vcmask 1044483
  %v165 = vsel %vm164, %v163, %v160
  %s166 = scalar_lea.vmem %s0, 1053
  %s167 = smov 96
  %v168 = vld [vmem:[%s166] ss:$-164 sm:%s167]
  %vm169 = vcmask 1046533
  %v170 = vsel %vm169, %v168, %v165
  %s171 = scalar_lea.vmem %s0, 194
  %v172 = vld [vmem:[%s171] sm:$0x80]
  %vm173 = vcmask 1047559
  %v174 = vsel %vm173, %v172, %v170
  %s175 = scalar_lea.vmem %s0, 169
  %s176 = smov 3
  %v177 = vld [vmem:[%s175] ss:$-164 sm:%s176]
  %s178 = scalar_lea.vmem %s0, 135
  %v179 = vld [vmem:[%s178] sm:$0x4]
  %vm180 = vcmask 1042434
  %v181 = vsel %vm180, %v179, %v177
  %s182 = scalar_lea.vmem %s0, 757
  %s183 = smov 24
  %v184 = vld [vmem:[%s182] ss:$-164 sm:%s183]
  %vm185 = vcmask 1044483
  %v186 = vsel %vm185, %v184, %v181
  %s187 = scalar_lea.vmem %s0, 1053
  %s188 = smov 96
  %v189 = vld [vmem:[%s187] ss:$-164 sm:%s188]
  %vm190 = vcmask 1046533
  %v191 = vsel %vm190, %v189, %v186
  %s192 = scalar_lea.vmem %s0, 194
  %v193 = vld [vmem:[%s192] sm:$0x80]
  %vm194 = vcmask 1047559
  %v195 = vsel %vm194, %v193, %v191
  %vm196 = vcmask 97280
  %v197 = vsel %vm196, %v195, %v174
  %198 = vrot.lane.b32.xlu0 %v197, 116
  %v199 = vpop.permute.xlu0 %198
  %vm200 = vcmask 719872
  %s201 = scalar_lea.vmem %s1, 129
  %202 = vst.msk [vmem:[%s201] ss:$-125 sm:$0x3] %vm200, %v199
  %s203 = scalar_lea.vmem %s1, 4294967200
  %204 = vst.msk [vmem:[%s203] ss:$100 sm:$0xc] %vm200, %v199
  %s205 = scalar_lea.vmem %s1, 4294966975
  %206 = vst.msk [vmem:[%s205] ss:$100 sm:$0x30] %vm200, %v199
  %s207 = scalar_lea.vmem %s1, 4294966750
  %208 = vst.msk [vmem:[%s207] ss:$100 sm:$0xc0] %vm200, %v199
  %vm209 = vcmask 1048480
  %s210 = scalar_lea.vmem %s1, 128
  %211 = vst.msk [vmem:[%s210] ss:$-125 sm:$0x3] %vm209, %v199
  %s212 = scalar_lea.vmem %s1, 4294967199
  %213 = vst.msk [vmem:[%s212] ss:$100 sm:$0xc] %vm209, %v199
  %s214 = scalar_lea.vmem %s1, 4294966974
  %215 = vst.msk [vmem:[%s214] ss:$100 sm:$0x30] %vm209, %v199
  %s216 = scalar_lea.vmem %s1, 4294966749
  %217 = vst.msk [vmem:[%s216] ss:$100 sm:$0xc0] %vm209, %v199
  %s218 = scalar_lea.vmem %s0, 37
  %v219 = vld [vmem:[%s218] sm:$0x1]
  %s220 = scalar_lea.vmem %s0, 37
  %v221 = vld [vmem:[%s220] sm:$0x1]
  %vm222 = vcmask 97280
  %v223 = vsel %vm222, %v221, %v219
  %224 = vrot.lane.b32.xlu0 %v223, 116
  %v225 = vpop.permute.xlu0 %224
  %vm226 = vcmask 719872
  %s227 = scalar_lea.vmem %s1, 29
  %228 = vst.msk [vmem:[%s227] sm:$0x1] %vm226, %v225
  %vm229 = vcmask 1048480
  %s230 = scalar_lea.vmem %s1, 28
  %231 = vst.msk [vmem:[%s230] sm:$0x1] %vm229, %v225
  %s232 = scalar_lea.vmem %s0, 124
  %s233 = smov 3
  %v234 = vld [vmem:[%s232] ss:$132 sm:%s233]
  %s235 = scalar_lea.vmem %s0, 4294967124
  %s236 = smov 12
  %v237 = vld [vmem:[%s235] ss:$132 sm:%s236]
  %vm238 = vcmask 1043458
  %v239 = vsel %vm238, %v237, %v234
  %s240 = scalar_lea.vmem %s0, 4294966828
  %s241 = smov 48
  %v242 = vld [vmem:[%s240] ss:$132 sm:%s241]
  %vm243 = vcmask 1045508
  %v244 = vsel %vm243, %v242, %v239
  %s245 = scalar_lea.vmem %s0, 4294966532
  %s246 = smov 192
  %v247 = vld [vmem:[%s245] ss:$132 sm:%s246]
  %vm248 = vcmask 1047558
  %v249 = vsel %vm248, %v247, %v244
  %s250 = scalar_lea.vmem %s0, 124
  %s251 = smov 3
  %v252 = vld [vmem:[%s250] ss:$132 sm:%s251]
  %s253 = scalar_lea.vmem %s0, 4294967124
  %s254 = smov 12
  %v255 = vld [vmem:[%s253] ss:$132 sm:%s254]
  %vm256 = vcmask 1043458
  %v257 = vsel %vm256, %v255, %v252
  %s258 = scalar_lea.vmem %s0, 4294966828
  %s259 = smov 48
  %v260 = vld [vmem:[%s258] ss:$132 sm:%s259]
  %vm261 = vcmask 1045508
  %v262 = vsel %vm261, %v260, %v257
  %s263 = scalar_lea.vmem %s0, 4294966532
  %s264 = smov 192
  %v265 = vld [vmem:[%s263] ss:$132 sm:%s264]
  %vm266 = vcmask 1047558
  %v267 = vsel %vm266, %v265, %v262
  %vm268 = vcmask 130048
  %v269 = vsel %vm268, %v267, %v249
  %270 = vrot.lane.b32.xlu0 %v269, 112
  %v271 = vpop.permute.xlu0 %270
  %vm272 = vcmask 687104
  %s273 = scalar_lea.vmem %s1, 97
  %274 = vst.msk [vmem:[%s273] ss:$100 sm:$0x3] %vm272, %v271
  %s275 = scalar_lea.vmem %s1, 4294967168
  %276 = vst.msk [vmem:[%s275] ss:$100 sm:$0xc] %vm272, %v271
  %s277 = scalar_lea.vmem %s1, 4294966943
  %278 = vst.msk [vmem:[%s277] ss:$100 sm:$0x30] %vm272, %v271
  %s279 = scalar_lea.vmem %s1, 4294966718
  %280 = vst.msk [vmem:[%s279] ss:$100 sm:$0xc0] %vm272, %v271
  %vm281 = vcmask 1048448
  %s282 = scalar_lea.vmem %s1, 96
  %283 = vst.msk [vmem:[%s282] ss:$100 sm:$0x3] %vm281, %v271
  %s284 = scalar_lea.vmem %s1, 4294967167
  %285 = vst.msk [vmem:[%s284] ss:$100 sm:$0xc] %vm281, %v271
  %s286 = scalar_lea.vmem %s1, 4294966942
  %287 = vst.msk [vmem:[%s286] ss:$100 sm:$0x30] %vm281, %v271
  %s288 = scalar_lea.vmem %s1, 4294966717
  %289 = vst.msk [vmem:[%s288] ss:$100 sm:$0xc0] %vm281, %v271
  %s290 = scalar_lea.vmem %s0, 83
  %s291 = smov 3
  %v292 = vld [vmem:[%s290] ss:$132 sm:%s291]
  %s293 = scalar_lea.vmem %s0, 4294967083
  %s294 = smov 12
  %v295 = vld [vmem:[%s293] ss:$132 sm:%s294]
  %vm296 = vcmask 1043458
  %v297 = vsel %vm296, %v295, %v292
  %s298 = scalar_lea.vmem %s0, 4294966787
  %s299 = smov 48
  %v300 = vld [vmem:[%s298] ss:$132 sm:%s299]
  %vm301 = vcmask 1045508
  %v302 = vsel %vm301, %v300, %v297
  %s303 = scalar_lea.vmem %s0, 4294966619
  %s304 = smov 192
  %v305 = vld [vmem:[%s303] ss:$132 sm:%s304]
  %vm306 = vcmask 1047558
  %v307 = vsel %vm306, %v305, %v302
  %s308 = scalar_lea.vmem %s0, 83
  %s309 = smov 3
  %v310 = vld [vmem:[%s308] ss:$132 sm:%s309]
  %s311 = scalar_lea.vmem %s0, 4294967083
  %s312 = smov 12
  %v313 = vld [vmem:[%s311] ss:$132 sm:%s312]
  %vm314 = vcmask 1043458
  %v315 = vsel %vm314, %v313, %v310
  %s316 = scalar_lea.vmem %s0, 4294966787
  %s317 = smov 48
  %v318 = vld [vmem:[%s316] ss:$132 sm:%s317]
  %vm319 = vcmask 1045508
  %v320 = vsel %vm319, %v318, %v315
  %s321 = scalar_lea.vmem %s0, 4294966619
  %s322 = smov 192
  %v323 = vld [vmem:[%s321] ss:$132 sm:%s322]
  %vm324 = vcmask 1047558
  %v325 = vsel %vm324, %v323, %v320
  %vm326 = vcmask 162816
  %v327 = vsel %vm326, %v325, %v307
  %328 = vrot.lane.b32.xlu0 %v327, 108
  %v329 = vpop.permute.xlu0 %328
  %vm330 = vcmask 654336
  %s331 = scalar_lea.vmem %s1, 65
  %332 = vst.msk [vmem:[%s331] ss:$100 sm:$0x3] %vm330, %v329
  %s333 = scalar_lea.vmem %s1, 4294967136
  %334 = vst.msk [vmem:[%s333] ss:$100 sm:$0xc] %vm330, %v329
  %s335 = scalar_lea.vmem %s1, 4294966911
  %336 = vst.msk [vmem:[%s335] ss:$100 sm:$0x30] %vm330, %v329
  %s337 = scalar_lea.vmem %s1, 4294966786
  %338 = vst.msk [vmem:[%s337] ss:$100 sm:$0xc0] %vm330, %v329
  %vm339 = vcmask 1048416
  %s340 = scalar_lea.vmem %s1, 64
  %341 = vst.msk [vmem:[%s340] ss:$100 sm:$0x3] %vm339, %v329
  %s342 = scalar_lea.vmem %s1, 4294967135
  %343 = vst.msk [vmem:[%s342] ss:$100 sm:$0xc] %vm339, %v329
  %s344 = scalar_lea.vmem %s1, 4294966910
  %345 = vst.msk [vmem:[%s344] ss:$100 sm:$0x30] %vm339, %v329
  %s346 = scalar_lea.vmem %s1, 4294966785
  %347 = vst.msk [vmem:[%s346] ss:$100 sm:$0xc0] %vm339, %v329
  %s348 = scalar_lea.vmem %s0, 42
  %s349 = smov 3
  %v350 = vld [vmem:[%s348] ss:$132 sm:%s349]
  %s351 = scalar_lea.vmem %s0, 4294967042
  %s352 = smov 12
  %v353 = vld [vmem:[%s351] ss:$132 sm:%s352]
  %vm354 = vcmask 1043458
  %v355 = vsel %vm354, %v353, %v350
  %s356 = scalar_lea.vmem %s0, 4294966874
  %s357 = smov 48
  %v358 = vld [vmem:[%s356] ss:$132 sm:%s357]
  %vm359 = vcmask 1045508
  %v360 = vsel %vm359, %v358, %v355
  %s361 = scalar_lea.vmem %s0, 4294966578
  %s362 = smov 192
  %v363 = vld [vmem:[%s361] ss:$132 sm:%s362]
  %vm364 = vcmask 1047558
  %v365 = vsel %vm364, %v363, %v360
  %s366 = scalar_lea.vmem %s0, 42
  %s367 = smov 3
  %v368 = vld [vmem:[%s366] ss:$132 sm:%s367]
  %s369 = scalar_lea.vmem %s0, 4294967042
  %s370 = smov 12
  %v371 = vld [vmem:[%s369] ss:$132 sm:%s370]
  %vm372 = vcmask 1043458
  %v373 = vsel %vm372, %v371, %v368
  %s374 = scalar_lea.vmem %s0, 4294966874
  %s375 = smov 48
  %v376 = vld [vmem:[%s374] ss:$132 sm:%s375]
  %vm377 = vcmask 1045508
  %v378 = vsel %vm377, %v376, %v373
  %s379 = scalar_lea.vmem %s0, 4294966578
  %s380 = smov 192
  %v381 = vld [vmem:[%s379] ss:$132 sm:%s380]
  %vm382 = vcmask 1047558
  %v383 = vsel %vm382, %v381, %v378
  %vm384 = vcmask 195584
  %v385 = vsel %vm384, %v383, %v365
  %386 = vrot.lane.b32.xlu0 %v385, 104
  %v387 = vpop.permute.xlu0 %386
  %vm388 = vcmask 621568
  %s389 = scalar_lea.vmem %s1, 33
  %390 = vst.msk [vmem:[%s389] ss:$100 sm:$0x3] %vm388, %v387
  %s391 = scalar_lea.vmem %s1, 4294967104
  %392 = vst.msk [vmem:[%s391] ss:$100 sm:$0xc] %vm388, %v387
  %s393 = scalar_lea.vmem %s1, 4294966979
  %394 = vst.msk [vmem:[%s393] ss:$100 sm:$0x30] %vm388, %v387
  %s395 = scalar_lea.vmem %s1, 4294966754
  %396 = vst.msk [vmem:[%s395] ss:$100 sm:$0xc0] %vm388, %v387
  %vm397 = vcmask 1048384
  %s398 = scalar_lea.vmem %s1, 32
  %399 = vst.msk [vmem:[%s398] ss:$100 sm:$0x3] %vm397, %v387
  %s400 = scalar_lea.vmem %s1, 4294967103
  %401 = vst.msk [vmem:[%s400] ss:$100 sm:$0xc] %vm397, %v387
  %s402 = scalar_lea.vmem %s1, 4294966978
  %403 = vst.msk [vmem:[%s402] ss:$100 sm:$0x30] %vm397, %v387
  %s404 = scalar_lea.vmem %s1, 4294966753
  %405 = vst.msk [vmem:[%s404] ss:$100 sm:$0xc0] %vm397, %v387
  %s406 = scalar_lea.vmem %s0, 1
  %v407 = vld [vmem:[%s406] sm:$0x1]
  %s408 = scalar_lea.vmem %s0, 4294967293
  %s409 = smov 6
  %v410 = vld [vmem:[%s408] ss:$132 sm:%s409]
  %vm411 = vcmask 1042433
  %v412 = vsel %vm411, %v410, %v407
  %s413 = scalar_lea.vmem %s0, 4294966997
  %s414 = smov 24
  %v415 = vld [vmem:[%s413] ss:$132 sm:%s414]
  %vm416 = vcmask 1044483
  %v417 = vsel %vm416, %v415, %v412
  %s418 = scalar_lea.vmem %s0, 4294966701
  %s419 = smov 96
  %v420 = vld [vmem:[%s418] ss:$132 sm:%s419]
  %vm421 = vcmask 1046533
  %v422 = vsel %vm421, %v420, %v417
  %s423 = scalar_lea.vmem %s0, 26
  %v424 = vld [vmem:[%s423] sm:$0x80]
  %vm425 = vcmask 1047559
  %v426 = vsel %vm425, %v424, %v422
  %s427 = scalar_lea.vmem %s0, 1
  %v428 = vld [vmem:[%s427] sm:$0x1]
  %s429 = scalar_lea.vmem %s0, 4294967293
  %s430 = smov 6
  %v431 = vld [vmem:[%s429] ss:$132 sm:%s430]
  %vm432 = vcmask 1042433
  %v433 = vsel %vm432, %v431, %v428
  %s434 = scalar_lea.vmem %s0, 4294966997
  %s435 = smov 24
  %v436 = vld [vmem:[%s434] ss:$132 sm:%s435]
  %vm437 = vcmask 1044483
  %v438 = vsel %vm437, %v436, %v433
  %s439 = scalar_lea.vmem %s0, 4294966701
  %s440 = smov 96
  %v441 = vld [vmem:[%s439] ss:$132 sm:%s440]
  %vm442 = vcmask 1046533
  %v443 = vsel %vm442, %v441, %v438
  %s444 = scalar_lea.vmem %s0, 26
  %v445 = vld [vmem:[%s444] sm:$0x80]
  %vm446 = vcmask 1047559
  %v447 = vsel %vm446, %v445, %v443
  %vm448 = vcmask 228352
  %v449 = vsel %vm448, %v447, %v426
  %450 = vrot.lane.b32.xlu0 %v449, 100
  %v451 = vpop.permute.xlu0 %450
  %vm452 = vcmask 588800
  %s453 = scalar_lea.vmem %s1, 1
  %454 = vst.msk [vmem:[%s453] ss:$100 sm:$0x7] %vm452, %v451
  %s455 = scalar_lea.vmem %s1, 4294967072
  %456 = vst.msk [vmem:[%s455] ss:$100 sm:$0x18] %vm452, %v451
  %s457 = scalar_lea.vmem %s1, 4294966847
  %458 = vst.msk [vmem:[%s457] ss:$100 sm:$0x60] %vm452, %v451
  %s459 = scalar_lea.vmem %s1, 19
  %460 = vst.msk [vmem:[%s459] sm:$0x80] %vm452, %v451
  %vm461 = vcmask 1048352
  %462 = vst.msk [vmem:[%s1] ss:$100 sm:$0x7] %vm461, %v451
  %s463 = scalar_lea.vmem %s1, 4294967071
  %464 = vst.msk [vmem:[%s463] ss:$100 sm:$0x18] %vm461, %v451
  %s465 = scalar_lea.vmem %s1, 4294966846
  %466 = vst.msk [vmem:[%s465] ss:$100 sm:$0x60] %vm461, %v451
  %s467 = scalar_lea.vmem %s1, 18
  %468 = vst.msk [vmem:[%s467] sm:$0x80] %vm461, %v451
  %s469 = scalar_lea.vmem %s0, 165
  %v470 = vld [vmem:[%s469] sm:$0x1]
  %s471 = scalar_lea.vmem %s0, 165
  %v472 = vld [vmem:[%s471] sm:$0x1]
  %vm473 = vcmask 228352
  %v474 = vsel %vm473, %v472, %v470
  %475 = vrot.lane.b32.xlu0 %v474, 100
  %v476 = vpop.permute.xlu0 %475
  %vm477 = vcmask 588800
  %s478 = scalar_lea.vmem %s1, 126
  %479 = vst.msk [vmem:[%s478] sm:$0x1] %vm477, %v476
  %vm480 = vcmask 1048352
  %s481 = scalar_lea.vmem %s1, 125
  %482 = vst.msk [vmem:[%s481] sm:$0x1] %vm480, %v476
  %s483 = scalar_lea.vmem %s0, 252
  %s484 = smov 3
  %v485 = vld [vmem:[%s483] ss:$-164 sm:%s484]
  %s486 = scalar_lea.vmem %s0, 548
  %s487 = smov 12
  %v488 = vld [vmem:[%s486] ss:$-164 sm:%s487]
  %vm489 = vcmask 1043458
  %v490 = vsel %vm489, %v488, %v485
  %s491 = scalar_lea.vmem %s0, 844
  %s492 = smov 48
  %v493 = vld [vmem:[%s491] ss:$-164 sm:%s492]
  %vm494 = vcmask 1045508
  %v495 = vsel %vm494, %v493, %v490
  %s496 = scalar_lea.vmem %s0, 372
  %s497 = smov 192
  %v498 = vld [vmem:[%s496] ss:$-36 sm:%s497]
  %vm499 = vcmask 1047558
  %v500 = vsel %vm499, %v498, %v495
  %s501 = scalar_lea.vmem %s0, 252
  %s502 = smov 3
  %v503 = vld [vmem:[%s501] ss:$-164 sm:%s502]
  %s504 = scalar_lea.vmem %s0, 548
  %s505 = smov 12
  %v506 = vld [vmem:[%s504] ss:$-164 sm:%s505]
  %vm507 = vcmask 1043458
  %v508 = vsel %vm507, %v506, %v503
  %s509 = scalar_lea.vmem %s0, 844
  %s510 = smov 48
  %v511 = vld [vmem:[%s509] ss:$-164 sm:%s510]
  %vm512 = vcmask 1045508
  %v513 = vsel %vm512, %v511, %v508
  %s514 = scalar_lea.vmem %s0, 372
  %s515 = smov 192
  %v516 = vld [vmem:[%s514] ss:$-36 sm:%s515]
  %vm517 = vcmask 1047558
  %v518 = vsel %vm517, %v516, %v513
  %vm519 = vcmask 261120
  %v520 = vsel %vm519, %v518, %v500
  %521 = vrot.lane.b32.xlu0 %v520, 96
  %v522 = vpop.permute.xlu0 %521
  %vm523 = vcmask 556032
  %s524 = scalar_lea.vmem %s1, 194
  %525 = vst.msk [vmem:[%s524] ss:$-125 sm:$0x3] %vm523, %v522
  %s526 = scalar_lea.vmem %s1, 419
  %527 = vst.msk [vmem:[%s526] ss:$-125 sm:$0xc] %vm523, %v522
  %s528 = scalar_lea.vmem %s1, 644
  %529 = vst.msk [vmem:[%s528] ss:$-125 sm:$0x30] %vm523, %v522
  %s530 = scalar_lea.vmem %s1, 269
  %531 = vst.msk [vmem:[%s530] ss:$-25 sm:$0xc0] %vm523, %v522
  %vm532 = vcmask 1048320
  %s533 = scalar_lea.vmem %s1, 193
  %534 = vst.msk [vmem:[%s533] ss:$-125 sm:$0x3] %vm532, %v522
  %s535 = scalar_lea.vmem %s1, 418
  %536 = vst.msk [vmem:[%s535] ss:$-125 sm:$0xc] %vm532, %v522
  %s537 = scalar_lea.vmem %s1, 643
  %538 = vst.msk [vmem:[%s537] ss:$-125 sm:$0x30] %vm532, %v522
  %s539 = scalar_lea.vmem %s1, 268
  %540 = vst.msk [vmem:[%s539] ss:$-25 sm:$0xc0] %vm532, %v522
  %s541 = scalar_lea.vmem %s0, 211
  %s542 = smov 3
  %v543 = vld [vmem:[%s541] ss:$-164 sm:%s542]
  %s544 = scalar_lea.vmem %s0, 507
  %s545 = smov 12
  %v546 = vld [vmem:[%s544] ss:$-164 sm:%s545]
  %vm547 = vcmask 1043458
  %v548 = vsel %vm547, %v546, %v543
  %s549 = scalar_lea.vmem %s0, 291
  %s550 = smov 48
  %v551 = vld [vmem:[%s549] ss:$-36 sm:%s550]
  %vm552 = vcmask 1045508
  %v553 = vsel %vm552, %v551, %v548
  %s554 = scalar_lea.vmem %s0, 1227
  %s555 = smov 192
  %v556 = vld [vmem:[%s554] ss:$-164 sm:%s555]
  %vm557 = vcmask 1047558
  %v558 = vsel %vm557, %v556, %v553
  %s559 = scalar_lea.vmem %s0, 211
  %s560 = smov 3
  %v561 = vld [vmem:[%s559] ss:$-164 sm:%s560]
  %s562 = scalar_lea.vmem %s0, 507
  %s563 = smov 12
  %v564 = vld [vmem:[%s562] ss:$-164 sm:%s563]
  %vm565 = vcmask 1043458
  %v566 = vsel %vm565, %v564, %v561
  %s567 = scalar_lea.vmem %s0, 291
  %s568 = smov 48
  %v569 = vld [vmem:[%s567] ss:$-36 sm:%s568]
  %vm570 = vcmask 1045508
  %v571 = vsel %vm570, %v569, %v566
  %s572 = scalar_lea.vmem %s0, 1227
  %s573 = smov 192
  %v574 = vld [vmem:[%s572] ss:$-164 sm:%s573]
  %vm575 = vcmask 1047558
  %v576 = vsel %vm575, %v574, %v571
  %vm577 = vcmask 293888
  %v578 = vsel %vm577, %v576, %v558
  %579 = vrot.lane.b32.xlu0 %v578, 92
  %v580 = vpop.permute.xlu0 %579
  %vm581 = vcmask 523264
  %s582 = scalar_lea.vmem %s1, 162
  %583 = vst.msk [vmem:[%s582] ss:$-125 sm:$0x3] %vm581, %v580
  %s584 = scalar_lea.vmem %s1, 387
  %585 = vst.msk [vmem:[%s584] ss:$-125 sm:$0xc] %vm581, %v580
  %s586 = scalar_lea.vmem %s1, 212
  %587 = vst.msk [vmem:[%s586] ss:$-25 sm:$0x30] %vm581, %v580
  %s588 = scalar_lea.vmem %s1, 937
  %589 = vst.msk [vmem:[%s588] ss:$-125 sm:$0xc0] %vm581, %v580
  %vm590 = vcmask 1048288
  %s591 = scalar_lea.vmem %s1, 161
  %592 = vst.msk [vmem:[%s591] ss:$-125 sm:$0x3] %vm590, %v580
  %s593 = scalar_lea.vmem %s1, 386
  %594 = vst.msk [vmem:[%s593] ss:$-125 sm:$0xc] %vm590, %v580
  %s595 = scalar_lea.vmem %s1, 211
  %596 = vst.msk [vmem:[%s595] ss:$-25 sm:$0x30] %vm590, %v580
  %s597 = scalar_lea.vmem %s1, 936
  %598 = vst.msk [vmem:[%s597] ss:$-125 sm:$0xc0] %vm590, %v580
  %s599 = scalar_lea.vmem %s0, 170
  %s600 = smov 3
  %v601 = vld [vmem:[%s599] ss:$-164 sm:%s600]
  %s602 = scalar_lea.vmem %s0, 136
  %v603 = vld [vmem:[%s602] sm:$0x4]
  %vm604 = vcmask 1042434
  %v605 = vsel %vm604, %v603, %v601
  %s606 = scalar_lea.vmem %s0, 758
  %s607 = smov 24
  %v608 = vld [vmem:[%s606] ss:$-164 sm:%s607]
  %vm609 = vcmask 1044483
  %v610 = vsel %vm609, %v608, %v605
  %s611 = scalar_lea.vmem %s0, 1054
  %s612 = smov 96
  %v613 = vld [vmem:[%s611] ss:$-164 sm:%s612]
  %vm614 = vcmask 1046533
  %v615 = vsel %vm614, %v613, %v610
  %s616 = scalar_lea.vmem %s0, 195
  %v617 = vld [vmem:[%s616] sm:$0x80]
  %vm618 = vcmask 1047559
  %v619 = vsel %vm618, %v617, %v615
  %s620 = scalar_lea.vmem %s0, 170
  %s621 = smov 3
  %v622 = vld [vmem:[%s620] ss:$-164 sm:%s621]
  %s623 = scalar_lea.vmem %s0, 136
  %v624 = vld [vmem:[%s623] sm:$0x4]
  %vm625 = vcmask 1042434
  %v626 = vsel %vm625, %v624, %v622
  %s627 = scalar_lea.vmem %s0, 758
  %s628 = smov 24
  %v629 = vld [vmem:[%s627] ss:$-164 sm:%s628]
  %vm630 = vcmask 1044483
  %v631 = vsel %vm630, %v629, %v626
  %s632 = scalar_lea.vmem %s0, 1054
  %s633 = smov 96
  %v634 = vld [vmem:[%s632] ss:$-164 sm:%s633]
  %vm635 = vcmask 1046533
  %v636 = vsel %vm635, %v634, %v631
  %s637 = scalar_lea.vmem %s0, 195
  %v638 = vld [vmem:[%s637] sm:$0x80]
  %vm639 = vcmask 1047559
  %v640 = vsel %vm639, %v638, %v636
  %vm641 = vcmask 326656
  %v642 = vsel %vm641, %v640, %v619
  %643 = vrot.lane.b32.xlu0 %v642, 88
  %v644 = vpop.permute.xlu0 %643
  %vm645 = vcmask 490496
  %s646 = scalar_lea.vmem %s1, 130
  %647 = vst.msk [vmem:[%s646] ss:$-125 sm:$0x3] %vm645, %v644
  %s648 = scalar_lea.vmem %s1, 4294967201
  %649 = vst.msk [vmem:[%s648] ss:$100 sm:$0xc] %vm645, %v644
  %s650 = scalar_lea.vmem %s1, 4294966976
  %651 = vst.msk [vmem:[%s650] ss:$100 sm:$0x30] %vm645, %v644
  %s652 = scalar_lea.vmem %s1, 4294966751
  %653 = vst.msk [vmem:[%s652] ss:$100 sm:$0xc0] %vm645, %v644
  %vm654 = vcmask 1048256
  %s655 = scalar_lea.vmem %s1, 129
  %656 = vst.msk [vmem:[%s655] ss:$-125 sm:$0x3] %vm654, %v644
  %s657 = scalar_lea.vmem %s1, 4294967200
  %658 = vst.msk [vmem:[%s657] ss:$100 sm:$0xc] %vm654, %v644
  %s659 = scalar_lea.vmem %s1, 4294966975
  %660 = vst.msk [vmem:[%s659] ss:$100 sm:$0x30] %vm654, %v644
  %s661 = scalar_lea.vmem %s1, 4294966750
  %662 = vst.msk [vmem:[%s661] ss:$100 sm:$0xc0] %vm654, %v644
  %s663 = scalar_lea.vmem %s0, 38
  %v664 = vld [vmem:[%s663] sm:$0x1]
  %s665 = scalar_lea.vmem %s0, 38
  %v666 = vld [vmem:[%s665] sm:$0x1]
  %vm667 = vcmask 326656
  %v668 = vsel %vm667, %v666, %v664
  %669 = vrot.lane.b32.xlu0 %v668, 88
  %v670 = vpop.permute.xlu0 %669
  %vm671 = vcmask 490496
  %s672 = scalar_lea.vmem %s1, 30
  %673 = vst.msk [vmem:[%s672] sm:$0x1] %vm671, %v670
  %vm674 = vcmask 1048256
  %s675 = scalar_lea.vmem %s1, 29
  %676 = vst.msk [vmem:[%s675] sm:$0x1] %vm674, %v670
  %s677 = scalar_lea.vmem %s0, 125
  %s678 = smov 3
  %v679 = vld [vmem:[%s677] ss:$132 sm:%s678]
  %s680 = scalar_lea.vmem %s0, 4294967125
  %s681 = smov 12
  %v682 = vld [vmem:[%s680] ss:$132 sm:%s681]
  %vm683 = vcmask 1043458
  %v684 = vsel %vm683, %v682, %v679
  %s685 = scalar_lea.vmem %s0, 4294966829
  %s686 = smov 48
  %v687 = vld [vmem:[%s685] ss:$132 sm:%s686]
  %vm688 = vcmask 1045508
  %v689 = vsel %vm688, %v687, %v684
  %s690 = scalar_lea.vmem %s0, 4294966533
  %s691 = smov 192
  %v692 = vld [vmem:[%s690] ss:$132 sm:%s691]
  %vm693 = vcmask 1047558
  %v694 = vsel %vm693, %v692, %v689
  %s695 = scalar_lea.vmem %s0, 125
  %s696 = smov 3
  %v697 = vld [vmem:[%s695] ss:$132 sm:%s696]
  %s698 = scalar_lea.vmem %s0, 4294967125
  %s699 = smov 12
  %v700 = vld [vmem:[%s698] ss:$132 sm:%s699]
  %vm701 = vcmask 1043458
  %v702 = vsel %vm701, %v700, %v697
  %s703 = scalar_lea.vmem %s0, 4294966829
  %s704 = smov 48
  %v705 = vld [vmem:[%s703] ss:$132 sm:%s704]
  %vm706 = vcmask 1045508
  %v707 = vsel %vm706, %v705, %v702
  %s708 = scalar_lea.vmem %s0, 4294966533
  %s709 = smov 192
  %v710 = vld [vmem:[%s708] ss:$132 sm:%s709]
  %vm711 = vcmask 1047558
  %v712 = vsel %vm711, %v710, %v707
  %vm713 = vcmask 359424
  %v714 = vsel %vm713, %v712, %v694
  %715 = vrot.lane.b32.xlu0 %v714, 84
  %v716 = vpop.permute.xlu0 %715
  %vm717 = vcmask 457728
  %s718 = scalar_lea.vmem %s1, 98
  %719 = vst.msk [vmem:[%s718] ss:$100 sm:$0x3] %vm717, %v716
  %s720 = scalar_lea.vmem %s1, 4294967169
  %721 = vst.msk [vmem:[%s720] ss:$100 sm:$0xc] %vm717, %v716
  %s722 = scalar_lea.vmem %s1, 4294966944
  %723 = vst.msk [vmem:[%s722] ss:$100 sm:$0x30] %vm717, %v716
  %s724 = scalar_lea.vmem %s1, 4294966719
  %725 = vst.msk [vmem:[%s724] ss:$100 sm:$0xc0] %vm717, %v716
  %vm726 = vcmask 1048224
  %s727 = scalar_lea.vmem %s1, 97
  %728 = vst.msk [vmem:[%s727] ss:$100 sm:$0x3] %vm726, %v716
  %s729 = scalar_lea.vmem %s1, 4294967168
  %730 = vst.msk [vmem:[%s729] ss:$100 sm:$0xc] %vm726, %v716
  %s731 = scalar_lea.vmem %s1, 4294966943
  %732 = vst.msk [vmem:[%s731] ss:$100 sm:$0x30] %vm726, %v716
  %s733 = scalar_lea.vmem %s1, 4294966718
  %734 = vst.msk [vmem:[%s733] ss:$100 sm:$0xc0] %vm726, %v716
  %s735 = scalar_lea.vmem %s0, 84
  %s736 = smov 3
  %v737 = vld [vmem:[%s735] ss:$132 sm:%s736]
  %s738 = scalar_lea.vmem %s0, 4294967084
  %s739 = smov 12
  %v740 = vld [vmem:[%s738] ss:$132 sm:%s739]
  %vm741 = vcmask 1043458
  %v742 = vsel %vm741, %v740, %v737
  %s743 = scalar_lea.vmem %s0, 4294966788
  %s744 = smov 48
  %v745 = vld [vmem:[%s743] ss:$132 sm:%s744]
  %vm746 = vcmask 1045508
  %v747 = vsel %vm746, %v745, %v742
  %s748 = scalar_lea.vmem %s0, 4294966620
  %s749 = smov 192
  %v750 = vld [vmem:[%s748] ss:$132 sm:%s749]
  %vm751 = vcmask 1047558
  %v752 = vsel %vm751, %v750, %v747
  %s753 = scalar_lea.vmem %s0, 84
  %s754 = smov 3
  %v755 = vld [vmem:[%s753] ss:$132 sm:%s754]
  %s756 = scalar_lea.vmem %s0, 4294967084
  %s757 = smov 12
  %v758 = vld [vmem:[%s756] ss:$132 sm:%s757]
  %vm759 = vcmask 1043458
  %v760 = vsel %vm759, %v758, %v755
  %s761 = scalar_lea.vmem %s0, 4294966788
  %s762 = smov 48
  %v763 = vld [vmem:[%s761] ss:$132 sm:%s762]
  %vm764 = vcmask 1045508
  %v765 = vsel %vm764, %v763, %v760
  %s766 = scalar_lea.vmem %s0, 4294966620
  %s767 = smov 192
  %v768 = vld [vmem:[%s766] ss:$132 sm:%s767]
  %vm769 = vcmask 1047558
  %v770 = vsel %vm769, %v768, %v765
  %vm771 = vcmask 392192
  %v772 = vsel %vm771, %v770, %v752
  %773 = vrot.lane.b32.xlu0 %v772, 80
  %v774 = vpop.permute.xlu0 %773
  %vm775 = vcmask 424960
  %s776 = scalar_lea.vmem %s1, 66
  %777 = vst.msk [vmem:[%s776] ss:$100 sm:$0x3] %vm775, %v774
  %s778 = scalar_lea.vmem %s1, 4294967137
  %779 = vst.msk [vmem:[%s778] ss:$100 sm:$0xc] %vm775, %v774
  %s780 = scalar_lea.vmem %s1, 4294966912
  %781 = vst.msk [vmem:[%s780] ss:$100 sm:$0x30] %vm775, %v774
  %s782 = scalar_lea.vmem %s1, 4294966787
  %783 = vst.msk [vmem:[%s782] ss:$100 sm:$0xc0] %vm775, %v774
  %vm784 = vcmask 1048192
  %s785 = scalar_lea.vmem %s1, 65
  %786 = vst.msk [vmem:[%s785] ss:$100 sm:$0x3] %vm784, %v774
  %s787 = scalar_lea.vmem %s1, 4294967136
  %788 = vst.msk [vmem:[%s787] ss:$100 sm:$0xc] %vm784, %v774
  %s789 = scalar_lea.vmem %s1, 4294966911
  %790 = vst.msk [vmem:[%s789] ss:$100 sm:$0x30] %vm784, %v774
  %s791 = scalar_lea.vmem %s1, 4294966786
  %792 = vst.msk [vmem:[%s791] ss:$100 sm:$0xc0] %vm784, %v774
  %s793 = scalar_lea.vmem %s0, 43
  %s794 = smov 3
  %v795 = vld [vmem:[%s793] ss:$132 sm:%s794]
  %s796 = scalar_lea.vmem %s0, 4294967043
  %s797 = smov 12
  %v798 = vld [vmem:[%s796] ss:$132 sm:%s797]
  %vm799 = vcmask 1043458
  %v800 = vsel %vm799, %v798, %v795
  %s801 = scalar_lea.vmem %s0, 4294966875
  %s802 = smov 48
  %v803 = vld [vmem:[%s801] ss:$132 sm:%s802]
  %vm804 = vcmask 1045508
  %v805 = vsel %vm804, %v803, %v800
  %s806 = scalar_lea.vmem %s0, 4294966579
  %s807 = smov 192
  %v808 = vld [vmem:[%s806] ss:$132 sm:%s807]
  %vm809 = vcmask 1047558
  %v810 = vsel %vm809, %v808, %v805
  %s811 = scalar_lea.vmem %s0, 43
  %s812 = smov 3
  %v813 = vld [vmem:[%s811] ss:$132 sm:%s812]
  %s814 = scalar_lea.vmem %s0, 4294967043
  %s815 = smov 12
  %v816 = vld [vmem:[%s814] ss:$132 sm:%s815]
  %vm817 = vcmask 1043458
  %v818 = vsel %vm817, %v816, %v813
  %s819 = scalar_lea.vmem %s0, 4294966875
  %s820 = smov 48
  %v821 = vld [vmem:[%s819] ss:$132 sm:%s820]
  %vm822 = vcmask 1045508
  %v823 = vsel %vm822, %v821, %v818
  %s824 = scalar_lea.vmem %s0, 4294966579
  %s825 = smov 192
  %v826 = vld [vmem:[%s824] ss:$132 sm:%s825]
  %vm827 = vcmask 1047558
  %v828 = vsel %vm827, %v826, %v823
  %vm829 = vcmask 424960
  %v830 = vsel %vm829, %v828, %v810
  %831 = vrot.lane.b32.xlu0 %v830, 76
  %v832 = vpop.permute.xlu0 %831
  %vm833 = vcmask 392192
  %s834 = scalar_lea.vmem %s1, 34
  %835 = vst.msk [vmem:[%s834] ss:$100 sm:$0x3] %vm833, %v832
  %s836 = scalar_lea.vmem %s1, 4294967105
  %837 = vst.msk [vmem:[%s836] ss:$100 sm:$0xc] %vm833, %v832
  %s838 = scalar_lea.vmem %s1, 4294966980
  %839 = vst.msk [vmem:[%s838] ss:$100 sm:$0x30] %vm833, %v832
  %s840 = scalar_lea.vmem %s1, 4294966755
  %841 = vst.msk [vmem:[%s840] ss:$100 sm:$0xc0] %vm833, %v832
  %vm842 = vcmask 1048160
  %s843 = scalar_lea.vmem %s1, 33
  %844 = vst.msk [vmem:[%s843] ss:$100 sm:$0x3] %vm842, %v832
  %s845 = scalar_lea.vmem %s1, 4294967104
  %846 = vst.msk [vmem:[%s845] ss:$100 sm:$0xc] %vm842, %v832
  %s847 = scalar_lea.vmem %s1, 4294966979
  %848 = vst.msk [vmem:[%s847] ss:$100 sm:$0x30] %vm842, %v832
  %s849 = scalar_lea.vmem %s1, 4294966754
  %850 = vst.msk [vmem:[%s849] ss:$100 sm:$0xc0] %vm842, %v832
  %s851 = scalar_lea.vmem %s0, 2
  %v852 = vld [vmem:[%s851] sm:$0x1]
  %s853 = scalar_lea.vmem %s0, 4294967294
  %s854 = smov 6
  %v855 = vld [vmem:[%s853] ss:$132 sm:%s854]
  %vm856 = vcmask 1042433
  %v857 = vsel %vm856, %v855, %v852
  %s858 = scalar_lea.vmem %s0, 4294966998
  %s859 = smov 24
  %v860 = vld [vmem:[%s858] ss:$132 sm:%s859]
  %vm861 = vcmask 1044483
  %v862 = vsel %vm861, %v860, %v857
  %s863 = scalar_lea.vmem %s0, 4294966702
  %s864 = smov 96
  %v865 = vld [vmem:[%s863] ss:$132 sm:%s864]
  %vm866 = vcmask 1046533
  %v867 = vsel %vm866, %v865, %v862
  %s868 = scalar_lea.vmem %s0, 27
  %v869 = vld [vmem:[%s868] sm:$0x80]
  %vm870 = vcmask 1047559
  %v871 = vsel %vm870, %v869, %v867
  %s872 = scalar_lea.vmem %s0, 2
  %v873 = vld [vmem:[%s872] sm:$0x1]
  %s874 = scalar_lea.vmem %s0, 4294967294
  %s875 = smov 6
  %v876 = vld [vmem:[%s874] ss:$132 sm:%s875]
  %vm877 = vcmask 1042433
  %v878 = vsel %vm877, %v876, %v873
  %s879 = scalar_lea.vmem %s0, 4294966998
  %s880 = smov 24
  %v881 = vld [vmem:[%s879] ss:$132 sm:%s880]
  %vm882 = vcmask 1044483
  %v883 = vsel %vm882, %v881, %v878
  %s884 = scalar_lea.vmem %s0, 4294966702
  %s885 = smov 96
  %v886 = vld [vmem:[%s884] ss:$132 sm:%s885]
  %vm887 = vcmask 1046533
  %v888 = vsel %vm887, %v886, %v883
  %s889 = scalar_lea.vmem %s0, 27
  %v890 = vld [vmem:[%s889] sm:$0x80]
  %vm891 = vcmask 1047559
  %v892 = vsel %vm891, %v890, %v888
  %vm893 = vcmask 457728
  %v894 = vsel %vm893, %v892, %v871
  %895 = vrot.lane.b32.xlu0 %v894, 72
  %v896 = vpop.permute.xlu0 %895
  %vm897 = vcmask 359424
  %s898 = scalar_lea.vmem %s1, 2
  %899 = vst.msk [vmem:[%s898] ss:$100 sm:$0x7] %vm897, %v896
  %s900 = scalar_lea.vmem %s1, 4294967073
  %901 = vst.msk [vmem:[%s900] ss:$100 sm:$0x18] %vm897, %v896
  %s902 = scalar_lea.vmem %s1, 4294966848
  %903 = vst.msk [vmem:[%s902] ss:$100 sm:$0x60] %vm897, %v896
  %s904 = scalar_lea.vmem %s1, 20
  %905 = vst.msk [vmem:[%s904] sm:$0x80] %vm897, %v896
  %vm906 = vcmask 1048128
  %s907 = scalar_lea.vmem %s1, 1
  %908 = vst.msk [vmem:[%s907] ss:$100 sm:$0x7] %vm906, %v896
  %s909 = scalar_lea.vmem %s1, 4294967072
  %910 = vst.msk [vmem:[%s909] ss:$100 sm:$0x18] %vm906, %v896
  %s911 = scalar_lea.vmem %s1, 4294966847
  %912 = vst.msk [vmem:[%s911] ss:$100 sm:$0x60] %vm906, %v896
  %s913 = scalar_lea.vmem %s1, 19
  %914 = vst.msk [vmem:[%s913] sm:$0x80] %vm906, %v896
  %s915 = scalar_lea.vmem %s0, 166
  %v916 = vld [vmem:[%s915] sm:$0x1]
  %s917 = scalar_lea.vmem %s0, 166
  %v918 = vld [vmem:[%s917] sm:$0x1]
  %vm919 = vcmask 457728
  %v920 = vsel %vm919, %v918, %v916
  %921 = vrot.lane.b32.xlu0 %v920, 72
  %v922 = vpop.permute.xlu0 %921
  %vm923 = vcmask 359424
  %s924 = scalar_lea.vmem %s1, 127
  %925 = vst.msk [vmem:[%s924] sm:$0x1] %vm923, %v922
  %vm926 = vcmask 1048128
  %s927 = scalar_lea.vmem %s1, 126
  %928 = vst.msk [vmem:[%s927] sm:$0x1] %vm926, %v922
  %s929 = scalar_lea.vmem %s0, 253
  %s930 = smov 3
  %v931 = vld [vmem:[%s929] ss:$-164 sm:%s930]
  %s932 = scalar_lea.vmem %s0, 549
  %s933 = smov 12
  %v934 = vld [vmem:[%s932] ss:$-164 sm:%s933]
  %vm935 = vcmask 1043458
  %v936 = vsel %vm935, %v934, %v931
  %s937 = scalar_lea.vmem %s0, 845
  %s938 = smov 48
  %v939 = vld [vmem:[%s937] ss:$-164 sm:%s938]
  %vm940 = vcmask 1045508
  %v941 = vsel %vm940, %v939, %v936
  %s942 = scalar_lea.vmem %s0, 373
  %s943 = smov 192
  %v944 = vld [vmem:[%s942] ss:$-36 sm:%s943]
  %vm945 = vcmask 1047558
  %v946 = vsel %vm945, %v944, %v941
  %s947 = scalar_lea.vmem %s0, 253
  %s948 = smov 3
  %v949 = vld [vmem:[%s947] ss:$-164 sm:%s948]
  %s950 = scalar_lea.vmem %s0, 549
  %s951 = smov 12
  %v952 = vld [vmem:[%s950] ss:$-164 sm:%s951]
  %vm953 = vcmask 1043458
  %v954 = vsel %vm953, %v952, %v949
  %s955 = scalar_lea.vmem %s0, 845
  %s956 = smov 48
  %v957 = vld [vmem:[%s955] ss:$-164 sm:%s956]
  %vm958 = vcmask 1045508
  %v959 = vsel %vm958, %v957, %v954
  %s960 = scalar_lea.vmem %s0, 373
  %s961 = smov 192
  %v962 = vld [vmem:[%s960] ss:$-36 sm:%s961]
  %vm963 = vcmask 1047558
  %v964 = vsel %vm963, %v962, %v959
  %vm965 = vcmask 490496
  %v966 = vsel %vm965, %v964, %v946
  %967 = vrot.lane.b32.xlu0 %v966, 68
  %v968 = vpop.permute.xlu0 %967
  %vm969 = vcmask 326656
  %s970 = scalar_lea.vmem %s1, 195
  %971 = vst.msk [vmem:[%s970] ss:$-125 sm:$0x3] %vm969, %v968
  %s972 = scalar_lea.vmem %s1, 420
  %973 = vst.msk [vmem:[%s972] ss:$-125 sm:$0xc] %vm969, %v968
  %s974 = scalar_lea.vmem %s1, 645
  %975 = vst.msk [vmem:[%s974] ss:$-125 sm:$0x30] %vm969, %v968
  %s976 = scalar_lea.vmem %s1, 270
  %977 = vst.msk [vmem:[%s976] ss:$-25 sm:$0xc0] %vm969, %v968
  %vm978 = vcmask 1048096
  %s979 = scalar_lea.vmem %s1, 194
  %980 = vst.msk [vmem:[%s979] ss:$-125 sm:$0x3] %vm978, %v968
  %s981 = scalar_lea.vmem %s1, 419
  %982 = vst.msk [vmem:[%s981] ss:$-125 sm:$0xc] %vm978, %v968
  %s983 = scalar_lea.vmem %s1, 644
  %984 = vst.msk [vmem:[%s983] ss:$-125 sm:$0x30] %vm978, %v968
  %s985 = scalar_lea.vmem %s1, 269
  %986 = vst.msk [vmem:[%s985] ss:$-25 sm:$0xc0] %vm978, %v968
  %s987 = scalar_lea.vmem %s0, 212
  %s988 = smov 3
  %v989 = vld [vmem:[%s987] ss:$-164 sm:%s988]
  %s990 = scalar_lea.vmem %s0, 508
  %s991 = smov 12
  %v992 = vld [vmem:[%s990] ss:$-164 sm:%s991]
  %vm993 = vcmask 1043458
  %v994 = vsel %vm993, %v992, %v989
  %s995 = scalar_lea.vmem %s0, 292
  %s996 = smov 48
  %v997 = vld [vmem:[%s995] ss:$-36 sm:%s996]
  %vm998 = vcmask 1045508
  %v999 = vsel %vm998, %v997, %v994
  %s1000 = scalar_lea.vmem %s0, 1228
  %s1001 = smov 192
  %v1002 = vld [vmem:[%s1000] ss:$-164 sm:%s1001]
  %vm1003 = vcmask 1047558
  %v1004 = vsel %vm1003, %v1002, %v999
  %s1005 = scalar_lea.vmem %s0, 212
  %s1006 = smov 3
  %v1007 = vld [vmem:[%s1005] ss:$-164 sm:%s1006]
  %s1008 = scalar_lea.vmem %s0, 508
  %s1009 = smov 12
  %v1010 = vld [vmem:[%s1008] ss:$-164 sm:%s1009]
  %vm1011 = vcmask 1043458
  %v1012 = vsel %vm1011, %v1010, %v1007
  %s1013 = scalar_lea.vmem %s0, 292
  %s1014 = smov 48
  %v1015 = vld [vmem:[%s1013] ss:$-36 sm:%s1014]
  %vm1016 = vcmask 1045508
  %v1017 = vsel %vm1016, %v1015, %v1012
  %s1018 = scalar_lea.vmem %s0, 1228
  %s1019 = smov 192
  %v1020 = vld [vmem:[%s1018] ss:$-164 sm:%s1019]
  %vm1021 = vcmask 1047558
  %v1022 = vsel %vm1021, %v1020, %v1017
  %vm1023 = vcmask 523264
  %v1024 = vsel %vm1023, %v1022, %v1004
  %1025 = vrot.lane.b32.xlu0 %v1024, 64
  %v1026 = vpop.permute.xlu0 %1025
  %vm1027 = vcmask 293888
  %s1028 = scalar_lea.vmem %s1, 163
  %1029 = vst.msk [vmem:[%s1028] ss:$-125 sm:$0x3] %vm1027, %v1026
  %s1030 = scalar_lea.vmem %s1, 388
  %1031 = vst.msk [vmem:[%s1030] ss:$-125 sm:$0xc] %vm1027, %v1026
  %s1032 = scalar_lea.vmem %s1, 213
  %1033 = vst.msk [vmem:[%s1032] ss:$-25 sm:$0x30] %vm1027, %v1026
  %s1034 = scalar_lea.vmem %s1, 938
  %1035 = vst.msk [vmem:[%s1034] ss:$-125 sm:$0xc0] %vm1027, %v1026
  %vm1036 = vcmask 1048064
  %s1037 = scalar_lea.vmem %s1, 162
  %1038 = vst.msk [vmem:[%s1037] ss:$-125 sm:$0x3] %vm1036, %v1026
  %s1039 = scalar_lea.vmem %s1, 387
  %1040 = vst.msk [vmem:[%s1039] ss:$-125 sm:$0xc] %vm1036, %v1026
  %s1041 = scalar_lea.vmem %s1, 212
  %1042 = vst.msk [vmem:[%s1041] ss:$-25 sm:$0x30] %vm1036, %v1026
  %s1043 = scalar_lea.vmem %s1, 937
  %1044 = vst.msk [vmem:[%s1043] ss:$-125 sm:$0xc0] %vm1036, %v1026
  %s1045 = scalar_lea.vmem %s0, 171
  %s1046 = smov 3
  %v1047 = vld [vmem:[%s1045] ss:$-164 sm:%s1046]
  %s1048 = scalar_lea.vmem %s0, 137
  %v1049 = vld [vmem:[%s1048] sm:$0x4]
  %vm1050 = vcmask 1042434
  %v1051 = vsel %vm1050, %v1049, %v1047
  %s1052 = scalar_lea.vmem %s0, 759
  %s1053 = smov 24
  %v1054 = vld [vmem:[%s1052] ss:$-164 sm:%s1053]
  %vm1055 = vcmask 1044483
  %v1056 = vsel %vm1055, %v1054, %v1051
  %s1057 = scalar_lea.vmem %s0, 1055
  %s1058 = smov 96
  %v1059 = vld [vmem:[%s1057] ss:$-164 sm:%s1058]
  %vm1060 = vcmask 1046533
  %v1061 = vsel %vm1060, %v1059, %v1056
  %s1062 = scalar_lea.vmem %s0, 196
  %v1063 = vld [vmem:[%s1062] sm:$0x80]
  %vm1064 = vcmask 1047559
  %v1065 = vsel %vm1064, %v1063, %v1061
  %s1066 = scalar_lea.vmem %s0, 171
  %s1067 = smov 3
  %v1068 = vld [vmem:[%s1066] ss:$-164 sm:%s1067]
  %s1069 = scalar_lea.vmem %s0, 137
  %v1070 = vld [vmem:[%s1069] sm:$0x4]
  %vm1071 = vcmask 1042434
  %v1072 = vsel %vm1071, %v1070, %v1068
  %s1073 = scalar_lea.vmem %s0, 759
  %s1074 = smov 24
  %v1075 = vld [vmem:[%s1073] ss:$-164 sm:%s1074]
  %vm1076 = vcmask 1044483
  %v1077 = vsel %vm1076, %v1075, %v1072
  %s1078 = scalar_lea.vmem %s0, 1055
  %s1079 = smov 96
  %v1080 = vld [vmem:[%s1078] ss:$-164 sm:%s1079]
  %vm1081 = vcmask 1046533
  %v1082 = vsel %vm1081, %v1080, %v1077
  %s1083 = scalar_lea.vmem %s0, 196
  %v1084 = vld [vmem:[%s1083] sm:$0x80]
  %vm1085 = vcmask 1047559
  %v1086 = vsel %vm1085, %v1084, %v1082
  %vm1087 = vcmask 556032
  %v1088 = vsel %vm1087, %v1086, %v1065
  %1089 = vrot.lane.b32.xlu0 %v1088, 60
  %v1090 = vpop.permute.xlu0 %1089
  %vm1091 = vcmask 261120
  %s1092 = scalar_lea.vmem %s1, 131
  %1093 = vst.msk [vmem:[%s1092] ss:$-125 sm:$0x3] %vm1091, %v1090
  %s1094 = scalar_lea.vmem %s1, 4294967202
  %1095 = vst.msk [vmem:[%s1094] ss:$100 sm:$0xc] %vm1091, %v1090
  %s1096 = scalar_lea.vmem %s1, 4294966977
  %1097 = vst.msk [vmem:[%s1096] ss:$100 sm:$0x30] %vm1091, %v1090
  %s1098 = scalar_lea.vmem %s1, 4294966752
  %1099 = vst.msk [vmem:[%s1098] ss:$100 sm:$0xc0] %vm1091, %v1090
  %vm1100 = vcmask 1048032
  %s1101 = scalar_lea.vmem %s1, 130
  %1102 = vst.msk [vmem:[%s1101] ss:$-125 sm:$0x3] %vm1100, %v1090
  %s1103 = scalar_lea.vmem %s1, 4294967201
  %1104 = vst.msk [vmem:[%s1103] ss:$100 sm:$0xc] %vm1100, %v1090
  %s1105 = scalar_lea.vmem %s1, 4294966976
  %1106 = vst.msk [vmem:[%s1105] ss:$100 sm:$0x30] %vm1100, %v1090
  %s1107 = scalar_lea.vmem %s1, 4294966751
  %1108 = vst.msk [vmem:[%s1107] ss:$100 sm:$0xc0] %vm1100, %v1090
  %s1109 = scalar_lea.vmem %s0, 39
  %v1110 = vld [vmem:[%s1109] sm:$0x1]
  %s1111 = scalar_lea.vmem %s0, 39
  %v1112 = vld [vmem:[%s1111] sm:$0x1]
  %vm1113 = vcmask 556032
  %v1114 = vsel %vm1113, %v1112, %v1110
  %1115 = vrot.lane.b32.xlu0 %v1114, 60
  %v1116 = vpop.permute.xlu0 %1115
  %vm1117 = vcmask 261120
  %s1118 = scalar_lea.vmem %s1, 31
  %1119 = vst.msk [vmem:[%s1118] sm:$0x1] %vm1117, %v1116
  %vm1120 = vcmask 1048032
  %s1121 = scalar_lea.vmem %s1, 30
  %1122 = vst.msk [vmem:[%s1121] sm:$0x1] %vm1120, %v1116
  %s1123 = scalar_lea.vmem %s0, 126
  %s1124 = smov 3
  %v1125 = vld [vmem:[%s1123] ss:$132 sm:%s1124]
  %s1126 = scalar_lea.vmem %s0, 4294967126
  %s1127 = smov 12
  %v1128 = vld [vmem:[%s1126] ss:$132 sm:%s1127]
  %vm1129 = vcmask 1043458
  %v1130 = vsel %vm1129, %v1128, %v1125
  %s1131 = scalar_lea.vmem %s0, 4294966830
  %s1132 = smov 48
  %v1133 = vld [vmem:[%s1131] ss:$132 sm:%s1132]
  %vm1134 = vcmask 1045508
  %v1135 = vsel %vm1134, %v1133, %v1130
  %s1136 = scalar_lea.vmem %s0, 4294966534
  %s1137 = smov 192
  %v1138 = vld [vmem:[%s1136] ss:$132 sm:%s1137]
  %vm1139 = vcmask 1047558
  %v1140 = vsel %vm1139, %v1138, %v1135
  %s1141 = scalar_lea.vmem %s0, 126
  %s1142 = smov 3
  %v1143 = vld [vmem:[%s1141] ss:$132 sm:%s1142]
  %s1144 = scalar_lea.vmem %s0, 4294967126
  %s1145 = smov 12
  %v1146 = vld [vmem:[%s1144] ss:$132 sm:%s1145]
  %vm1147 = vcmask 1043458
  %v1148 = vsel %vm1147, %v1146, %v1143
  %s1149 = scalar_lea.vmem %s0, 4294966830
  %s1150 = smov 48
  %v1151 = vld [vmem:[%s1149] ss:$132 sm:%s1150]
  %vm1152 = vcmask 1045508
  %v1153 = vsel %vm1152, %v1151, %v1148
  %s1154 = scalar_lea.vmem %s0, 4294966534
  %s1155 = smov 192
  %v1156 = vld [vmem:[%s1154] ss:$132 sm:%s1155]
  %vm1157 = vcmask 1047558
  %v1158 = vsel %vm1157, %v1156, %v1153
  %vm1159 = vcmask 588800
  %v1160 = vsel %vm1159, %v1158, %v1140
  %1161 = vrot.lane.b32.xlu0 %v1160, 56
  %v1162 = vpop.permute.xlu0 %1161
  %vm1163 = vcmask 228352
  %s1164 = scalar_lea.vmem %s1, 99
  %1165 = vst.msk [vmem:[%s1164] ss:$100 sm:$0x3] %vm1163, %v1162
  %s1166 = scalar_lea.vmem %s1, 4294967170
  %1167 = vst.msk [vmem:[%s1166] ss:$100 sm:$0xc] %vm1163, %v1162
  %s1168 = scalar_lea.vmem %s1, 4294966945
  %1169 = vst.msk [vmem:[%s1168] ss:$100 sm:$0x30] %vm1163, %v1162
  %s1170 = scalar_lea.vmem %s1, 4294966720
  %1171 = vst.msk [vmem:[%s1170] ss:$100 sm:$0xc0] %vm1163, %v1162
  %vm1172 = vcmask 1048000
  %s1173 = scalar_lea.vmem %s1, 98
  %1174 = vst.msk [vmem:[%s1173] ss:$100 sm:$0x3] %vm1172, %v1162
  %s1175 = scalar_lea.vmem %s1, 4294967169
  %1176 = vst.msk [vmem:[%s1175] ss:$100 sm:$0xc] %vm1172, %v1162
  %s1177 = scalar_lea.vmem %s1, 4294966944
  %1178 = vst.msk [vmem:[%s1177] ss:$100 sm:$0x30] %vm1172, %v1162
  %s1179 = scalar_lea.vmem %s1, 4294966719
  %1180 = vst.msk [vmem:[%s1179] ss:$100 sm:$0xc0] %vm1172, %v1162
  %s1181 = scalar_lea.vmem %s0, 249
  %s1182 = smov 3
  %v1183 = vld [vmem:[%s1181] ss:$-164 sm:%s1182]
  %s1184 = scalar_lea.vmem %s0, 545
  %s1185 = smov 12
  %v1186 = vld [vmem:[%s1184] ss:$-164 sm:%s1185]
  %vm1187 = vcmask 1043458
  %v1188 = vsel %vm1187, %v1186, %v1183
  %s1189 = scalar_lea.vmem %s0, 841
  %s1190 = smov 48
  %v1191 = vld [vmem:[%s1189] ss:$-164 sm:%s1190]
  %vm1192 = vcmask 1045508
  %v1193 = vsel %vm1192, %v1191, %v1188
  %s1194 = scalar_lea.vmem %s0, 369
  %s1195 = smov 192
  %v1196 = vld [vmem:[%s1194] ss:$-36 sm:%s1195]
  %vm1197 = vcmask 1047558
  %v1198 = vsel %vm1197, %v1196, %v1193
  %s1199 = scalar_lea.vmem %s0, 85
  %s1200 = smov 3
  %v1201 = vld [vmem:[%s1199] ss:$132 sm:%s1200]
  %s1202 = scalar_lea.vmem %s0, 4294967085
  %s1203 = smov 12
  %v1204 = vld [vmem:[%s1202] ss:$132 sm:%s1203]
  %vm1205 = vcmask 1043458
  %v1206 = vsel %vm1205, %v1204, %v1201
  %s1207 = scalar_lea.vmem %s0, 4294966789
  %s1208 = smov 48
  %v1209 = vld [vmem:[%s1207] ss:$132 sm:%s1208]
  %vm1210 = vcmask 1045508
  %v1211 = vsel %vm1210, %v1209, %v1206
  %s1212 = scalar_lea.vmem %s0, 4294966621
  %s1213 = smov 192
  %v1214 = vld [vmem:[%s1212] ss:$132 sm:%s1213]
  %vm1215 = vcmask 1047558
  %v1216 = vsel %vm1215, %v1214, %v1211
  %vm1217 = vcmask 621568
  %v1218 = vsel %vm1217, %v1216, %v1198
  %1219 = vrot.lane.b32.xlu0 %v1218, 52
  %v1220 = vpop.permute.xlu0 %1219
  %vm1221 = vcmask 195584
  %s1222 = scalar_lea.vmem %s1, 192
  %1223 = vst.msk [vmem:[%s1222] ss:$-125 sm:$0x3] %vm1221, %v1220
  %s1224 = scalar_lea.vmem %s1, 417
  %1225 = vst.msk [vmem:[%s1224] ss:$-125 sm:$0xc] %vm1221, %v1220
  %s1226 = scalar_lea.vmem %s1, 642
  %1227 = vst.msk [vmem:[%s1226] ss:$-125 sm:$0x30] %vm1221, %v1220
  %s1228 = scalar_lea.vmem %s1, 267
  %1229 = vst.msk [vmem:[%s1228] ss:$-25 sm:$0xc0] %vm1221, %v1220
  %vm1230 = vcmask 1047968
  %s1231 = scalar_lea.vmem %s1, 66
  %1232 = vst.msk [vmem:[%s1231] ss:$100 sm:$0x3] %vm1230, %v1220
  %s1233 = scalar_lea.vmem %s1, 4294967137
  %1234 = vst.msk [vmem:[%s1233] ss:$100 sm:$0xc] %vm1230, %v1220
  %s1235 = scalar_lea.vmem %s1, 4294966912
  %1236 = vst.msk [vmem:[%s1235] ss:$100 sm:$0x30] %vm1230, %v1220
  %s1237 = scalar_lea.vmem %s1, 4294966787
  %1238 = vst.msk [vmem:[%s1237] ss:$100 sm:$0xc0] %vm1230, %v1220
  %s1239 = scalar_lea.vmem %s0, 208
  %s1240 = smov 3
  %v1241 = vld [vmem:[%s1239] ss:$-164 sm:%s1240]
  %s1242 = scalar_lea.vmem %s0, 504
  %s1243 = smov 12
  %v1244 = vld [vmem:[%s1242] ss:$-164 sm:%s1243]
  %vm1245 = vcmask 1043458
  %v1246 = vsel %vm1245, %v1244, %v1241
  %s1247 = scalar_lea.vmem %s0, 288
  %s1248 = smov 48
  %v1249 = vld [vmem:[%s1247] ss:$-36 sm:%s1248]
  %vm1250 = vcmask 1045508
  %v1251 = vsel %vm1250, %v1249, %v1246
  %s1252 = scalar_lea.vmem %s0, 1224
  %s1253 = smov 192
  %v1254 = vld [vmem:[%s1252] ss:$-164 sm:%s1253]
  %vm1255 = vcmask 1047558
  %v1256 = vsel %vm1255, %v1254, %v1251
  %s1257 = scalar_lea.vmem %s0, 44
  %s1258 = smov 3
  %v1259 = vld [vmem:[%s1257] ss:$132 sm:%s1258]
  %s1260 = scalar_lea.vmem %s0, 4294967044
  %s1261 = smov 12
  %v1262 = vld [vmem:[%s1260] ss:$132 sm:%s1261]
  %vm1263 = vcmask 1043458
  %v1264 = vsel %vm1263, %v1262, %v1259
  %s1265 = scalar_lea.vmem %s0, 4294966876
  %s1266 = smov 48
  %v1267 = vld [vmem:[%s1265] ss:$132 sm:%s1266]
  %vm1268 = vcmask 1045508
  %v1269 = vsel %vm1268, %v1267, %v1264
  %s1270 = scalar_lea.vmem %s0, 4294966580
  %s1271 = smov 192
  %v1272 = vld [vmem:[%s1270] ss:$132 sm:%s1271]
  %vm1273 = vcmask 1047558
  %v1274 = vsel %vm1273, %v1272, %v1269
  %vm1275 = vcmask 654336
  %v1276 = vsel %vm1275, %v1274, %v1256
  %1277 = vrot.lane.b32.xlu0 %v1276, 48
  %v1278 = vpop.permute.xlu0 %1277
  %vm1279 = vcmask 162816
  %s1280 = scalar_lea.vmem %s1, 160
  %1281 = vst.msk [vmem:[%s1280] ss:$-125 sm:$0x3] %vm1279, %v1278
  %s1282 = scalar_lea.vmem %s1, 385
  %1283 = vst.msk [vmem:[%s1282] ss:$-125 sm:$0xc] %vm1279, %v1278
  %s1284 = scalar_lea.vmem %s1, 210
  %1285 = vst.msk [vmem:[%s1284] ss:$-25 sm:$0x30] %vm1279, %v1278
  %s1286 = scalar_lea.vmem %s1, 935
  %1287 = vst.msk [vmem:[%s1286] ss:$-125 sm:$0xc0] %vm1279, %v1278
  %vm1288 = vcmask 1047936
  %s1289 = scalar_lea.vmem %s1, 34
  %1290 = vst.msk [vmem:[%s1289] ss:$100 sm:$0x3] %vm1288, %v1278
  %s1291 = scalar_lea.vmem %s1, 4294967105
  %1292 = vst.msk [vmem:[%s1291] ss:$100 sm:$0xc] %vm1288, %v1278
  %s1293 = scalar_lea.vmem %s1, 4294966980
  %1294 = vst.msk [vmem:[%s1293] ss:$100 sm:$0x30] %vm1288, %v1278
  %s1295 = scalar_lea.vmem %s1, 4294966755
  %1296 = vst.msk [vmem:[%s1295] ss:$100 sm:$0xc0] %vm1288, %v1278
  %s1297 = scalar_lea.vmem %s0, 167
  %s1298 = smov 3
  %v1299 = vld [vmem:[%s1297] ss:$-164 sm:%s1298]
  %s1300 = scalar_lea.vmem %s0, 4294967163
  %s1301 = smov 12
  %v1302 = vld [vmem:[%s1300] ss:$132 sm:%s1301]
  %vm1303 = vcmask 1043458
  %v1304 = vsel %vm1303, %v1302, %v1299
  %s1305 = scalar_lea.vmem %s0, 4294966867
  %s1306 = smov 48
  %v1307 = vld [vmem:[%s1305] ss:$132 sm:%s1306]
  %vm1308 = vcmask 1045508
  %v1309 = vsel %vm1308, %v1307, %v1304
  %s1310 = scalar_lea.vmem %s0, 4294966571
  %s1311 = smov 192
  %v1312 = vld [vmem:[%s1310] ss:$132 sm:%s1311]
  %vm1313 = vcmask 1047558
  %v1314 = vsel %vm1313, %v1312, %v1309
  %s1315 = scalar_lea.vmem %s0, 3
  %v1316 = vld [vmem:[%s1315] sm:$0x1]
  %s1317 = scalar_lea.vmem %s0, 4294967295
  %s1318 = smov 6
  %v1319 = vld [vmem:[%s1317] ss:$132 sm:%s1318]
  %vm1320 = vcmask 1042433
  %v1321 = vsel %vm1320, %v1319, %v1316
  %s1322 = scalar_lea.vmem %s0, 4294966999
  %s1323 = smov 24
  %v1324 = vld [vmem:[%s1322] ss:$132 sm:%s1323]
  %vm1325 = vcmask 1044483
  %v1326 = vsel %vm1325, %v1324, %v1321
  %s1327 = scalar_lea.vmem %s0, 4294966703
  %s1328 = smov 96
  %v1329 = vld [vmem:[%s1327] ss:$132 sm:%s1328]
  %vm1330 = vcmask 1046533
  %v1331 = vsel %vm1330, %v1329, %v1326
  %s1332 = scalar_lea.vmem %s0, 28
  %v1333 = vld [vmem:[%s1332] sm:$0x80]
  %vm1334 = vcmask 1047559
  %v1335 = vsel %vm1334, %v1333, %v1331
  %vm1336 = vcmask 687104
  %v1337 = vsel %vm1336, %v1335, %v1314
  %1338 = vrot.lane.b32.xlu0 %v1337, 44
  %v1339 = vpop.permute.xlu0 %1338
  %vm1340 = vcmask 130048
  %s1341 = scalar_lea.vmem %s1, 128
  %1342 = vst.msk [vmem:[%s1341] ss:$-125 sm:$0x3] %vm1340, %v1339
  %s1343 = scalar_lea.vmem %s1, 4294967199
  %1344 = vst.msk [vmem:[%s1343] ss:$100 sm:$0xc] %vm1340, %v1339
  %s1345 = scalar_lea.vmem %s1, 4294966974
  %1346 = vst.msk [vmem:[%s1345] ss:$100 sm:$0x30] %vm1340, %v1339
  %s1347 = scalar_lea.vmem %s1, 4294966749
  %1348 = vst.msk [vmem:[%s1347] ss:$100 sm:$0xc0] %vm1340, %v1339
  %vm1349 = vcmask 1047904
  %s1350 = scalar_lea.vmem %s1, 2
  %1351 = vst.msk [vmem:[%s1350] ss:$100 sm:$0x7] %vm1349, %v1339
  %s1352 = scalar_lea.vmem %s1, 4294967073
  %1353 = vst.msk [vmem:[%s1352] ss:$100 sm:$0x18] %vm1349, %v1339
  %s1354 = scalar_lea.vmem %s1, 4294966848
  %1355 = vst.msk [vmem:[%s1354] ss:$100 sm:$0x60] %vm1349, %v1339
  %s1356 = scalar_lea.vmem %s1, 20
  %1357 = vst.msk [vmem:[%s1356] sm:$0x80] %vm1349, %v1339
  %s1358 = scalar_lea.vmem %s0, 35
  %v1359 = vld [vmem:[%s1358] sm:$0x1]
  %s1360 = scalar_lea.vmem %s0, 167
  %v1361 = vld [vmem:[%s1360] sm:$0x1]
  %vm1362 = vcmask 687104
  %v1363 = vsel %vm1362, %v1361, %v1359
  %1364 = vrot.lane.b32.xlu0 %v1363, 44
  %v1365 = vpop.permute.xlu0 %1364
  %vm1366 = vcmask 130048
  %s1367 = scalar_lea.vmem %s1, 28
  %1368 = vst.msk [vmem:[%s1367] sm:$0x1] %vm1366, %v1365
  %vm1369 = vcmask 1047904
  %s1370 = scalar_lea.vmem %s1, 127
  %1371 = vst.msk [vmem:[%s1370] sm:$0x1] %vm1369, %v1365
  %s1372 = scalar_lea.vmem %s0, 122
  %s1373 = smov 3
  %v1374 = vld [vmem:[%s1372] ss:$132 sm:%s1373]
  %s1375 = scalar_lea.vmem %s0, 4294967122
  %s1376 = smov 12
  %v1377 = vld [vmem:[%s1375] ss:$132 sm:%s1376]
  %vm1378 = vcmask 1043458
  %v1379 = vsel %vm1378, %v1377, %v1374
  %s1380 = scalar_lea.vmem %s0, 4294966826
  %s1381 = smov 48
  %v1382 = vld [vmem:[%s1380] ss:$132 sm:%s1381]
  %vm1383 = vcmask 1045508
  %v1384 = vsel %vm1383, %v1382, %v1379
  %s1385 = scalar_lea.vmem %s0, 4294966530
  %s1386 = smov 192
  %v1387 = vld [vmem:[%s1385] ss:$132 sm:%s1386]
  %vm1388 = vcmask 1047558
  %v1389 = vsel %vm1388, %v1387, %v1384
  %s1390 = scalar_lea.vmem %s0, 254
  %s1391 = smov 3
  %v1392 = vld [vmem:[%s1390] ss:$-164 sm:%s1391]
  %s1393 = scalar_lea.vmem %s0, 550
  %s1394 = smov 12
  %v1395 = vld [vmem:[%s1393] ss:$-164 sm:%s1394]
  %vm1396 = vcmask 1043458
  %v1397 = vsel %vm1396, %v1395, %v1392
  %s1398 = scalar_lea.vmem %s0, 846
  %s1399 = smov 48
  %v1400 = vld [vmem:[%s1398] ss:$-164 sm:%s1399]
  %vm1401 = vcmask 1045508
  %v1402 = vsel %vm1401, %v1400, %v1397
  %s1403 = scalar_lea.vmem %s0, 374
  %s1404 = smov 192
  %v1405 = vld [vmem:[%s1403] ss:$-36 sm:%s1404]
  %vm1406 = vcmask 1047558
  %v1407 = vsel %vm1406, %v1405, %v1402
  %vm1408 = vcmask 719872
  %v1409 = vsel %vm1408, %v1407, %v1389
  %1410 = vrot.lane.b32.xlu0 %v1409, 40
  %v1411 = vpop.permute.xlu0 %1410
  %vm1412 = vcmask 97280
  %s1413 = scalar_lea.vmem %s1, 96
  %1414 = vst.msk [vmem:[%s1413] ss:$100 sm:$0x3] %vm1412, %v1411
  %s1415 = scalar_lea.vmem %s1, 4294967167
  %1416 = vst.msk [vmem:[%s1415] ss:$100 sm:$0xc] %vm1412, %v1411
  %s1417 = scalar_lea.vmem %s1, 4294966942
  %1418 = vst.msk [vmem:[%s1417] ss:$100 sm:$0x30] %vm1412, %v1411
  %s1419 = scalar_lea.vmem %s1, 4294966717
  %1420 = vst.msk [vmem:[%s1419] ss:$100 sm:$0xc0] %vm1412, %v1411
  %vm1421 = vcmask 1047872
  %s1422 = scalar_lea.vmem %s1, 195
  %1423 = vst.msk [vmem:[%s1422] ss:$-125 sm:$0x3] %vm1421, %v1411
  %s1424 = scalar_lea.vmem %s1, 420
  %1425 = vst.msk [vmem:[%s1424] ss:$-125 sm:$0xc] %vm1421, %v1411
  %s1426 = scalar_lea.vmem %s1, 645
  %1427 = vst.msk [vmem:[%s1426] ss:$-125 sm:$0x30] %vm1421, %v1411
  %s1428 = scalar_lea.vmem %s1, 270
  %1429 = vst.msk [vmem:[%s1428] ss:$-25 sm:$0xc0] %vm1421, %v1411
  %s1430 = scalar_lea.vmem %s0, 81
  %s1431 = smov 3
  %v1432 = vld [vmem:[%s1430] ss:$132 sm:%s1431]
  %s1433 = scalar_lea.vmem %s0, 4294967081
  %s1434 = smov 12
  %v1435 = vld [vmem:[%s1433] ss:$132 sm:%s1434]
  %vm1436 = vcmask 1043458
  %v1437 = vsel %vm1436, %v1435, %v1432
  %s1438 = scalar_lea.vmem %s0, 4294966785
  %s1439 = smov 48
  %v1440 = vld [vmem:[%s1438] ss:$132 sm:%s1439]
  %vm1441 = vcmask 1045508
  %v1442 = vsel %vm1441, %v1440, %v1437
  %s1443 = scalar_lea.vmem %s0, 4294966617
  %s1444 = smov 192
  %v1445 = vld [vmem:[%s1443] ss:$132 sm:%s1444]
  %vm1446 = vcmask 1047558
  %v1447 = vsel %vm1446, %v1445, %v1442
  %s1448 = scalar_lea.vmem %s0, 213
  %s1449 = smov 3
  %v1450 = vld [vmem:[%s1448] ss:$-164 sm:%s1449]
  %s1451 = scalar_lea.vmem %s0, 509
  %s1452 = smov 12
  %v1453 = vld [vmem:[%s1451] ss:$-164 sm:%s1452]
  %vm1454 = vcmask 1043458
  %v1455 = vsel %vm1454, %v1453, %v1450
  %s1456 = scalar_lea.vmem %s0, 293
  %s1457 = smov 48
  %v1458 = vld [vmem:[%s1456] ss:$-36 sm:%s1457]
  %vm1459 = vcmask 1045508
  %v1460 = vsel %vm1459, %v1458, %v1455
  %s1461 = scalar_lea.vmem %s0, 1229
  %s1462 = smov 192
  %v1463 = vld [vmem:[%s1461] ss:$-164 sm:%s1462]
  %vm1464 = vcmask 1047558
  %v1465 = vsel %vm1464, %v1463, %v1460
  %vm1466 = vcmask 752640
  %v1467 = vsel %vm1466, %v1465, %v1447
  %1468 = vrot.lane.b32.xlu0 %v1467, 36
  %v1469 = vpop.permute.xlu0 %1468
  %vm1470 = vcmask 64512
  %s1471 = scalar_lea.vmem %s1, 64
  %1472 = vst.msk [vmem:[%s1471] ss:$100 sm:$0x3] %vm1470, %v1469
  %s1473 = scalar_lea.vmem %s1, 4294967135
  %1474 = vst.msk [vmem:[%s1473] ss:$100 sm:$0xc] %vm1470, %v1469
  %s1475 = scalar_lea.vmem %s1, 4294966910
  %1476 = vst.msk [vmem:[%s1475] ss:$100 sm:$0x30] %vm1470, %v1469
  %s1477 = scalar_lea.vmem %s1, 4294966785
  %1478 = vst.msk [vmem:[%s1477] ss:$100 sm:$0xc0] %vm1470, %v1469
  %vm1479 = vcmask 1047840
  %s1480 = scalar_lea.vmem %s1, 163
  %1481 = vst.msk [vmem:[%s1480] ss:$-125 sm:$0x3] %vm1479, %v1469
  %s1482 = scalar_lea.vmem %s1, 388
  %1483 = vst.msk [vmem:[%s1482] ss:$-125 sm:$0xc] %vm1479, %v1469
  %s1484 = scalar_lea.vmem %s1, 213
  %1485 = vst.msk [vmem:[%s1484] ss:$-25 sm:$0x30] %vm1479, %v1469
  %s1486 = scalar_lea.vmem %s1, 938
  %1487 = vst.msk [vmem:[%s1486] ss:$-125 sm:$0xc0] %vm1479, %v1469
  %s1488 = scalar_lea.vmem %s0, 40
  %s1489 = smov 3
  %v1490 = vld [vmem:[%s1488] ss:$132 sm:%s1489]
  %s1491 = scalar_lea.vmem %s0, 4294967040
  %s1492 = smov 12
  %v1493 = vld [vmem:[%s1491] ss:$132 sm:%s1492]
  %vm1494 = vcmask 1043458
  %v1495 = vsel %vm1494, %v1493, %v1490
  %s1496 = scalar_lea.vmem %s0, 4294966872
  %s1497 = smov 48
  %v1498 = vld [vmem:[%s1496] ss:$132 sm:%s1497]
  %vm1499 = vcmask 1045508
  %v1500 = vsel %vm1499, %v1498, %v1495
  %s1501 = scalar_lea.vmem %s0, 4294966576
  %s1502 = smov 192
  %v1503 = vld [vmem:[%s1501] ss:$132 sm:%s1502]
  %vm1504 = vcmask 1047558
  %v1505 = vsel %vm1504, %v1503, %v1500
  %s1506 = scalar_lea.vmem %s0, 172
  %s1507 = smov 3
  %v1508 = vld [vmem:[%s1506] ss:$-164 sm:%s1507]
  %s1509 = scalar_lea.vmem %s0, 212
  %s1510 = smov 12
  %v1511 = vld [vmem:[%s1509] ss:$-36 sm:%s1510]
  %vm1512 = vcmask 1043458
  %v1513 = vsel %vm1512, %v1511, %v1508
  %s1514 = scalar_lea.vmem %s0, 892
  %s1515 = smov 48
  %v1516 = vld [vmem:[%s1514] ss:$-164 sm:%s1515]
  %vm1517 = vcmask 1045508
  %v1518 = vsel %vm1517, %v1516, %v1513
  %s1519 = scalar_lea.vmem %s0, 1188
  %s1520 = smov 192
  %v1521 = vld [vmem:[%s1519] ss:$-164 sm:%s1520]
  %vm1522 = vcmask 1047558
  %v1523 = vsel %vm1522, %v1521, %v1518
  %vm1524 = vcmask 785408
  %v1525 = vsel %vm1524, %v1523, %v1505
  %1526 = vrot.lane.b32.xlu0 %v1525, 32
  %v1527 = vpop.permute.xlu0 %1526
  %vm1528 = vcmask 31744
  %s1529 = scalar_lea.vmem %s1, 32
  %1530 = vst.msk [vmem:[%s1529] ss:$100 sm:$0x3] %vm1528, %v1527
  %s1531 = scalar_lea.vmem %s1, 4294967103
  %1532 = vst.msk [vmem:[%s1531] ss:$100 sm:$0xc] %vm1528, %v1527
  %s1533 = scalar_lea.vmem %s1, 4294966978
  %1534 = vst.msk [vmem:[%s1533] ss:$100 sm:$0x30] %vm1528, %v1527
  %s1535 = scalar_lea.vmem %s1, 4294966753
  %1536 = vst.msk [vmem:[%s1535] ss:$100 sm:$0xc0] %vm1528, %v1527
  %vm1537 = vcmask 1047808
  %s1538 = scalar_lea.vmem %s1, 131
  %1539 = vst.msk [vmem:[%s1538] ss:$-125 sm:$0x3] %vm1537, %v1527
  %s1540 = scalar_lea.vmem %s1, 156
  %1541 = vst.msk [vmem:[%s1540] ss:$-25 sm:$0xc] %vm1537, %v1527
  %s1542 = scalar_lea.vmem %s1, 681
  %1543 = vst.msk [vmem:[%s1542] ss:$-125 sm:$0x30] %vm1537, %v1527
  %s1544 = scalar_lea.vmem %s1, 906
  %1545 = vst.msk [vmem:[%s1544] ss:$-125 sm:$0xc0] %vm1537, %v1527
  %s1546 = scalar_lea.vmem %s0, 127
  %s1547 = smov 3
  %v1548 = vld [vmem:[%s1546] ss:$132 sm:%s1547]
  %s1549 = scalar_lea.vmem %s0, 4294967127
  %s1550 = smov 12
  %v1551 = vld [vmem:[%s1549] ss:$132 sm:%s1550]
  %vm1552 = vcmask 1043458
  %v1553 = vsel %vm1552, %v1551, %v1548
  %s1554 = scalar_lea.vmem %s0, 4294966831
  %s1555 = smov 48
  %v1556 = vld [vmem:[%s1554] ss:$132 sm:%s1555]
  %vm1557 = vcmask 1045508
  %v1558 = vsel %vm1557, %v1556, %v1553
  %s1559 = scalar_lea.vmem %s0, 4294966535
  %s1560 = smov 192
  %v1561 = vld [vmem:[%s1559] ss:$132 sm:%s1560]
  %vm1562 = vcmask 1047558
  %v1563 = vsel %vm1562, %v1561, %v1558
  %1564 = vrot.lane.b32.xlu0 %v1563, 28
  %v1565 = vpop.permute.xlu0 %1564
  %vm1566 = vcmask 1047776
  %s1567 = scalar_lea.vmem %s1, 99
  %1568 = vst.msk [vmem:[%s1567] ss:$100 sm:$0x3] %vm1566, %v1565
  %s1569 = scalar_lea.vmem %s1, 4294967170
  %1570 = vst.msk [vmem:[%s1569] ss:$100 sm:$0xc] %vm1566, %v1565
  %s1571 = scalar_lea.vmem %s1, 4294966945
  %1572 = vst.msk [vmem:[%s1571] ss:$100 sm:$0x30] %vm1566, %v1565
  %s1573 = scalar_lea.vmem %s1, 4294966720
  %1574 = vst.msk [vmem:[%s1573] ss:$100 sm:$0xc0] %vm1566, %v1565
  %s1575 = scalar_lea.vmem %s0, 250
  %s1576 = smov 3
  %v1577 = vld [vmem:[%s1575] ss:$-164 sm:%s1576]
  %s1578 = scalar_lea.vmem %s0, 546
  %s1579 = smov 12
  %v1580 = vld [vmem:[%s1578] ss:$-164 sm:%s1579]
  %vm1581 = vcmask 1043458
  %v1582 = vsel %vm1581, %v1580, %v1577
  %s1583 = scalar_lea.vmem %s0, 842
  %s1584 = smov 48
  %v1585 = vld [vmem:[%s1583] ss:$-164 sm:%s1584]
  %vm1586 = vcmask 1045508
  %v1587 = vsel %vm1586, %v1585, %v1582
  %s1588 = scalar_lea.vmem %s0, 370
  %s1589 = smov 192
  %v1590 = vld [vmem:[%s1588] ss:$-36 sm:%s1589]
  %vm1591 = vcmask 1047558
  %v1592 = vsel %vm1591, %v1590, %v1587
  %1593 = vrot.lane.b32.xlu0 %v1592, 24
  %v1594 = vpop.permute.xlu0 %1593
  %vm1595 = vcmask 1014976
  %s1596 = scalar_lea.vmem %s1, 192
  %1597 = vst.msk [vmem:[%s1596] ss:$-125 sm:$0x3] %vm1595, %v1594
  %s1598 = scalar_lea.vmem %s1, 417
  %1599 = vst.msk [vmem:[%s1598] ss:$-125 sm:$0xc] %vm1595, %v1594
  %s1600 = scalar_lea.vmem %s1, 642
  %1601 = vst.msk [vmem:[%s1600] ss:$-125 sm:$0x30] %vm1595, %v1594
  %s1602 = scalar_lea.vmem %s1, 267
  %1603 = vst.msk [vmem:[%s1602] ss:$-25 sm:$0xc0] %vm1595, %v1594
  %s1604 = scalar_lea.vmem %s0, 209
  %s1605 = smov 3
  %v1606 = vld [vmem:[%s1604] ss:$-164 sm:%s1605]
  %s1607 = scalar_lea.vmem %s0, 505
  %s1608 = smov 12
  %v1609 = vld [vmem:[%s1607] ss:$-164 sm:%s1608]
  %vm1610 = vcmask 1043458
  %v1611 = vsel %vm1610, %v1609, %v1606
  %s1612 = scalar_lea.vmem %s0, 289
  %s1613 = smov 48
  %v1614 = vld [vmem:[%s1612] ss:$-36 sm:%s1613]
  %vm1615 = vcmask 1045508
  %v1616 = vsel %vm1615, %v1614, %v1611
  %s1617 = scalar_lea.vmem %s0, 1225
  %s1618 = smov 192
  %v1619 = vld [vmem:[%s1617] ss:$-164 sm:%s1618]
  %vm1620 = vcmask 1047558
  %v1621 = vsel %vm1620, %v1619, %v1616
  %1622 = vrot.lane.b32.xlu0 %v1621, 20
  %v1623 = vpop.permute.xlu0 %1622
  %vm1624 = vcmask 982176
  %s1625 = scalar_lea.vmem %s1, 160
  %1626 = vst.msk [vmem:[%s1625] ss:$-125 sm:$0x3] %vm1624, %v1623
  %s1627 = scalar_lea.vmem %s1, 385
  %1628 = vst.msk [vmem:[%s1627] ss:$-125 sm:$0xc] %vm1624, %v1623
  %s1629 = scalar_lea.vmem %s1, 210
  %1630 = vst.msk [vmem:[%s1629] ss:$-25 sm:$0x30] %vm1624, %v1623
  %s1631 = scalar_lea.vmem %s1, 935
  %1632 = vst.msk [vmem:[%s1631] ss:$-125 sm:$0xc0] %vm1624, %v1623
  %s1633 = scalar_lea.vmem %s0, 168
  %s1634 = smov 3
  %v1635 = vld [vmem:[%s1633] ss:$-164 sm:%s1634]
  %s1636 = scalar_lea.vmem %s0, 134
  %v1637 = vld [vmem:[%s1636] sm:$0x4]
  %vm1638 = vcmask 1042434
  %v1639 = vsel %vm1638, %v1637, %v1635
  %s1640 = scalar_lea.vmem %s0, 756
  %s1641 = smov 24
  %v1642 = vld [vmem:[%s1640] ss:$-164 sm:%s1641]
  %vm1643 = vcmask 1044483
  %v1644 = vsel %vm1643, %v1642, %v1639
  %s1645 = scalar_lea.vmem %s0, 1052
  %s1646 = smov 96
  %v1647 = vld [vmem:[%s1645] ss:$-164 sm:%s1646]
  %vm1648 = vcmask 1046533
  %v1649 = vsel %vm1648, %v1647, %v1644
  %s1650 = scalar_lea.vmem %s0, 193
  %v1651 = vld [vmem:[%s1650] sm:$0x80]
  %vm1652 = vcmask 1047559
  %v1653 = vsel %vm1652, %v1651, %v1649
  %1654 = vrot.lane.b32.xlu0 %v1653, 16
  %v1655 = vpop.permute.xlu0 %1654
  %vm1656 = vcmask 949376
  %s1657 = scalar_lea.vmem %s1, 128
  %1658 = vst.msk [vmem:[%s1657] ss:$-125 sm:$0x3] %vm1656, %v1655
  %s1659 = scalar_lea.vmem %s1, 4294967199
  %1660 = vst.msk [vmem:[%s1659] ss:$100 sm:$0xc] %vm1656, %v1655
  %s1661 = scalar_lea.vmem %s1, 4294966974
  %1662 = vst.msk [vmem:[%s1661] ss:$100 sm:$0x30] %vm1656, %v1655
  %s1663 = scalar_lea.vmem %s1, 4294966749
  %1664 = vst.msk [vmem:[%s1663] ss:$100 sm:$0xc0] %vm1656, %v1655
  %s1665 = scalar_lea.vmem %s0, 36
  %v1666 = vld [vmem:[%s1665] sm:$0x1]
  %1667 = vrot.lane.b32.xlu0 %v1666, 16
  %v1668 = vpop.permute.xlu0 %1667
  %vm1669 = vcmask 949376
  %s1670 = scalar_lea.vmem %s1, 28
  %1671 = vst.msk [vmem:[%s1670] sm:$0x1] %vm1669, %v1668
  %s1672 = scalar_lea.vmem %s0, 123
  %s1673 = smov 3
  %v1674 = vld [vmem:[%s1672] ss:$132 sm:%s1673]
  %s1675 = scalar_lea.vmem %s0, 4294967123
  %s1676 = smov 12
  %v1677 = vld [vmem:[%s1675] ss:$132 sm:%s1676]
  %vm1678 = vcmask 1043458
  %v1679 = vsel %vm1678, %v1677, %v1674
  %s1680 = scalar_lea.vmem %s0, 4294966827
  %s1681 = smov 48
  %v1682 = vld [vmem:[%s1680] ss:$132 sm:%s1681]
  %vm1683 = vcmask 1045508
  %v1684 = vsel %vm1683, %v1682, %v1679
  %s1685 = scalar_lea.vmem %s0, 4294966531
  %s1686 = smov 192
  %v1687 = vld [vmem:[%s1685] ss:$132 sm:%s1686]
  %vm1688 = vcmask 1047558
  %v1689 = vsel %vm1688, %v1687, %v1684
  %1690 = vrot.lane.b32.xlu0 %v1689, 12
  %v1691 = vpop.permute.xlu0 %1690
  %vm1692 = vcmask 916576
  %s1693 = scalar_lea.vmem %s1, 96
  %1694 = vst.msk [vmem:[%s1693] ss:$100 sm:$0x3] %vm1692, %v1691
  %s1695 = scalar_lea.vmem %s1, 4294967167
  %1696 = vst.msk [vmem:[%s1695] ss:$100 sm:$0xc] %vm1692, %v1691
  %s1697 = scalar_lea.vmem %s1, 4294966942
  %1698 = vst.msk [vmem:[%s1697] ss:$100 sm:$0x30] %vm1692, %v1691
  %s1699 = scalar_lea.vmem %s1, 4294966717
  %1700 = vst.msk [vmem:[%s1699] ss:$100 sm:$0xc0] %vm1692, %v1691
  %s1701 = scalar_lea.vmem %s0, 82
  %s1702 = smov 3
  %v1703 = vld [vmem:[%s1701] ss:$132 sm:%s1702]
  %s1704 = scalar_lea.vmem %s0, 4294967082
  %s1705 = smov 12
  %v1706 = vld [vmem:[%s1704] ss:$132 sm:%s1705]
  %vm1707 = vcmask 1043458
  %v1708 = vsel %vm1707, %v1706, %v1703
  %s1709 = scalar_lea.vmem %s0, 4294966786
  %s1710 = smov 48
  %v1711 = vld [vmem:[%s1709] ss:$132 sm:%s1710]
  %vm1712 = vcmask 1045508
  %v1713 = vsel %vm1712, %v1711, %v1708
  %s1714 = scalar_lea.vmem %s0, 4294966618
  %s1715 = smov 192
  %v1716 = vld [vmem:[%s1714] ss:$132 sm:%s1715]
  %vm1717 = vcmask 1047558
  %v1718 = vsel %vm1717, %v1716, %v1713
  %1719 = vrot.lane.b32.xlu0 %v1718, 8
  %v1720 = vpop.permute.xlu0 %1719
  %vm1721 = vcmask 883776
  %s1722 = scalar_lea.vmem %s1, 64
  %1723 = vst.msk [vmem:[%s1722] ss:$100 sm:$0x3] %vm1721, %v1720
  %s1724 = scalar_lea.vmem %s1, 4294967135
  %1725 = vst.msk [vmem:[%s1724] ss:$100 sm:$0xc] %vm1721, %v1720
  %s1726 = scalar_lea.vmem %s1, 4294966910
  %1727 = vst.msk [vmem:[%s1726] ss:$100 sm:$0x30] %vm1721, %v1720
  %s1728 = scalar_lea.vmem %s1, 4294966785
  %1729 = vst.msk [vmem:[%s1728] ss:$100 sm:$0xc0] %vm1721, %v1720
  %s1730 = scalar_lea.vmem %s0, 41
  %s1731 = smov 3
  %v1732 = vld [vmem:[%s1730] ss:$132 sm:%s1731]
  %s1733 = scalar_lea.vmem %s0, 4294967041
  %s1734 = smov 12
  %v1735 = vld [vmem:[%s1733] ss:$132 sm:%s1734]
  %vm1736 = vcmask 1043458
  %v1737 = vsel %vm1736, %v1735, %v1732
  %s1738 = scalar_lea.vmem %s0, 4294966873
  %s1739 = smov 48
  %v1740 = vld [vmem:[%s1738] ss:$132 sm:%s1739]
  %vm1741 = vcmask 1045508
  %v1742 = vsel %vm1741, %v1740, %v1737
  %s1743 = scalar_lea.vmem %s0, 4294966577
  %s1744 = smov 192
  %v1745 = vld [vmem:[%s1743] ss:$132 sm:%s1744]
  %vm1746 = vcmask 1047558
  %v1747 = vsel %vm1746, %v1745, %v1742
  %1748 = vrot.lane.b32.xlu0 %v1747, 4
  %v1749 = vpop.permute.xlu0 %1748
  %vm1750 = vcmask 850976
  %s1751 = scalar_lea.vmem %s1, 32
  %1752 = vst.msk [vmem:[%s1751] ss:$100 sm:$0x3] %vm1750, %v1749
  %s1753 = scalar_lea.vmem %s1, 4294967103
  %1754 = vst.msk [vmem:[%s1753] ss:$100 sm:$0xc] %vm1750, %v1749
  %s1755 = scalar_lea.vmem %s1, 4294966978
  %1756 = vst.msk [vmem:[%s1755] ss:$100 sm:$0x30] %vm1750, %v1749
  %s1757 = scalar_lea.vmem %s1, 4294966753
  %1758 = vst.msk [vmem:[%s1757] ss:$100 sm:$0xc0] %vm1750, %v1749

// kernel: classification_loss.1
$region0: #{classification_loss.1}
  #allocation0 [shape = 'u32[]', space=smem, size = 0x4, offset = 0x4, fixed_abs, tag = 'smem constant byte address 0x4 - core index']
  #allocation1 [shape = 'u32[144,128]{1,0:T(1,128)}', space=vmem, size = 0x12000, scoped, tag = 'internal scratch']
  #allocation2 [shape = 'f32[8,128]{1,0:T(8,128)}', space=vmem, size = 0x1000, scoped, tag = 'scratch operand']
  %s0 = inlined_call_operand.vmem [shape: f32[224,128], index: 0, kind: input, shape index: {}]
  %s1 = inlined_call_operand.vmem [shape: f32[224,128], index: 1, kind: input, shape index: {}]
  %s2 = inlined_call_operand.vmem [shape: s8[224,128], index: 2, kind: input, shape index: {}]
  %s3 = inlined_call_operand.vmem [shape: f32[1,8,128], index: 3, kind: output, shape index: {}]
  %s4 = sld [smem:[#allocation0]]
  $region30: #{classification_loss.1} parent=0
    _
  %s6 = ssub.s32 1, %s4
  %s7 = scalar_select 0, %s6, %s4
  // Predicated region
  $region2: #{classification_loss.1} parent=0 // pred_check
    _
  $region3: #{classification_loss.1} parent=0 // pred_check_branch
    %9 = sbr.rel (0) target = $region5
  $region4: #{classification_loss.1} parent=0 // pred_region
    %s10 = sadd.s32 0, 0
    %s11 = smul.u32 28, %s10
    %p12 = scmp.lt.s32.totalorder %s11, 27
    %s13 = scalar_select %p12, %s11, 27
    %s14 = smul.addr %s13, 8
    %s15 = scalar_lea.vmem %s0, %s14
    %s16 = sadd.s32 0, 0
    %s17 = smul.u32 28, %s16
  $region5: #{classification_loss.1} parent=0 // pred_fallthru
    _
  // Predicated region
  $region6: #{classification_loss.1} parent=0 // pred_check
    _
  $region7: #{classification_loss.1} parent=0 // pred_check_branch
    %19 = sbr.rel (0) target = $region9
  $region8: #{classification_loss.1} parent=0 // pred_region
    %s20 = sadd.s32 0, 0
    %s21 = smul.u32 28, %s20
    %p22 = scmp.lt.s32.totalorder %s21, 27
    %s23 = scalar_select %p22, %s21, 27
    %s24 = smul.addr %s23, 8
    %s25 = scalar_lea.vmem %s1, %s24
    %s26 = sadd.s32 0, 0
    %s27 = smul.u32 28, %s26
  $region9: #{classification_loss.1} parent=0 // pred_fallthru
    _
  // Predicated region
  $region10: #{classification_loss.1} parent=0 // pred_check
    _
  $region11: #{classification_loss.1} parent=0 // pred_check_branch
    %29 = sbr.rel (0) target = $region13
  $region12: #{classification_loss.1} parent=0 // pred_region
    %s30 = sadd.s32 0, 0
    %s31 = smul.u32 7, %s30
    %p32 = scmp.lt.s32.totalorder %s31, 6
    %s33 = scalar_select %p32, %s31, 6
    %s34 = smul.addr %s33, 8
    %s35 = scalar_lea.vmem %s2, %s34
    %s36 = sadd.s32 0, 0
    %s37 = smul.u32 7, %s36
  $region13: #{classification_loss.1} parent=0 // pred_fallthru
    _
  %s38 = sadd.s32 0, 0
  %s39 = smul.u32 28, %s38
  %p40 = scmp.lt.s32.totalorder %s39, 27
  %s41 = scalar_select %p40, %s39, 27
  %s42 = smul.addr %s41, 8
  %s43 = scalar_lea.vmem %s0, %s42
  %s44 = sadd.s32 0, 0
  %s45 = smul.u32 28, %s44
  %p46 = scmp.lt.s32.totalorder %s45, 27
  %s47 = scalar_select %p46, %s45, 27
  %s48 = smul.addr %s47, 8
  %s49 = scalar_lea.vmem %s1, %s48
  %s50 = sadd.s32 0, 0
  %s51 = smul.u32 7, %s50
  %p52 = scmp.lt.s32.totalorder %s51, 6
  %s53 = scalar_select %p52, %s51, 6
  %s54 = smul.addr %s53, 8
  %s55 = scalar_lea.vmem %s2, %s54
  %s56 = sadd.s32 0, 0
  %s57 = smul.u32 28, %s56
  %p58 = scmp.lt.s32.totalorder %s57, 27
  %s59 = scalar_select %p58, %s57, 27
  %s60 = smul.addr %s59, 8
  %s61 = scalar_lea.vmem %s0, %s60
  %s62 = sadd.s32 0, 0
  %s63 = smul.u32 28, %s62
  %s64 = sadd.s32 0, 0
  %s65 = smul.u32 28, %s64
  %p66 = scmp.lt.s32.totalorder %s65, 27
  %s67 = scalar_select %p66, %s65, 27
  %s68 = smul.addr %s67, 8
  %s69 = scalar_lea.vmem %s1, %s68
  %s70 = sadd.s32 0, 0
  %s71 = smul.u32 28, %s70
  %s72 = sadd.s32 0, 0
  %s73 = smul.u32 7, %s72
  %p74 = scmp.lt.s32.totalorder %s73, 6
  %s75 = scalar_select %p74, %s73, 6
  %s76 = smul.addr %s75, 8
  %s77 = scalar_lea.vmem %s2, %s76
  %s78 = sadd.s32 0, 0
  %s79 = smul.u32 7, %s78
  %v80 = vld [vmem:[%s61] sm:$0xff]
  %v81 = vld [vmem:[%s61 + $0x8] sm:$0xff]
  %v82 = vld [vmem:[%s61 + $0x10] sm:$0xff]
  %v83 = vld [vmem:[%s61 + $0x18] sm:$0xff]
  %v84 = vld [vmem:[%s61 + $0x20] sm:$0xff]
  %v85 = vld [vmem:[%s61 + $0x28] sm:$0xff]
  %v86 = vld [vmem:[%s61 + $0x30] sm:$0xff]
  %v87 = vld [vmem:[%s61 + $0x38] sm:$0xff]
  %v88 = vld [vmem:[%s61 + $0x40] sm:$0xff]
  %v89 = vld [vmem:[%s61 + $0x48] sm:$0xff]
  %v90 = vld [vmem:[%s61 + $0x50] sm:$0xff]
  %v91 = vld [vmem:[%s61 + $0x58] sm:$0xff]
  %v92 = vld [vmem:[%s61 + $0x60] sm:$0xff]
  %v93 = vld [vmem:[%s61 + $0x68] sm:$0xff]
  %v94 = vld [vmem:[%s61 + $0x70] sm:$0xff]
  %v95 = vld [vmem:[%s61 + $0x78] sm:$0xff]
  %v96 = vld [vmem:[%s61 + $0x80] sm:$0xff]
  %v97 = vld [vmem:[%s61 + $0x88] sm:$0xff]
  %v98 = vld [vmem:[%s61 + $0x90] sm:$0xff]
  %v99 = vld [vmem:[%s61 + $0x98] sm:$0xff]
  %v100 = vld [vmem:[%s61 + $0xa0] sm:$0xff]
  %v101 = vld [vmem:[%s61 + $0xa8] sm:$0xff]
  %v102 = vld [vmem:[%s61 + $0xb0] sm:$0xff]
  %v103 = vld [vmem:[%s61 + $0xb8] sm:$0xff]
  %v104 = vld [vmem:[%s61 + $0xc0] sm:$0xff]
  %v105 = vld [vmem:[%s61 + $0xc8] sm:$0xff]
  %v106 = vld [vmem:[%s61 + $0xd0] sm:$0xff]
  %v107 = vld [vmem:[%s61 + $0xd8] sm:$0xff]
  %v108 = vld [vmem:[%s69] sm:$0xff]
  %v109 = vld [vmem:[%s69 + $0x8] sm:$0xff]
  %v110 = vld [vmem:[%s69 + $0x10] sm:$0xff]
  %v111 = vld [vmem:[%s69 + $0x18] sm:$0xff]
  %v112 = vld [vmem:[%s69 + $0x20] sm:$0xff]
  %v113 = vld [vmem:[%s69 + $0x28] sm:$0xff]
  %v114 = vld [vmem:[%s69 + $0x30] sm:$0xff]
  %v115 = vld [vmem:[%s69 + $0x38] sm:$0xff]
  %v116 = vld [vmem:[%s69 + $0x40] sm:$0xff]
  %v117 = vld [vmem:[%s69 + $0x48] sm:$0xff]
  %v118 = vld [vmem:[%s69 + $0x50] sm:$0xff]
  %v119 = vld [vmem:[%s69 + $0x58] sm:$0xff]
  %v120 = vld [vmem:[%s69 + $0x60] sm:$0xff]
  %v121 = vld [vmem:[%s69 + $0x68] sm:$0xff]
  %v122 = vld [vmem:[%s69 + $0x70] sm:$0xff]
  %v123 = vld [vmem:[%s69 + $0x78] sm:$0xff]
  %v124 = vld [vmem:[%s69 + $0x80] sm:$0xff]
  %v125 = vld [vmem:[%s69 + $0x88] sm:$0xff]
  %v126 = vld [vmem:[%s69 + $0x90] sm:$0xff]
  %v127 = vld [vmem:[%s69 + $0x98] sm:$0xff]
  %v128 = vld [vmem:[%s69 + $0xa0] sm:$0xff]
  %v129 = vld [vmem:[%s69 + $0xa8] sm:$0xff]
  %v130 = vld [vmem:[%s69 + $0xb0] sm:$0xff]
  %v131 = vld [vmem:[%s69 + $0xb8] sm:$0xff]
  %v132 = vld [vmem:[%s69 + $0xc0] sm:$0xff]
  %v133 = vld [vmem:[%s69 + $0xc8] sm:$0xff]
  %v134 = vld [vmem:[%s69 + $0xd0] sm:$0xff]
  %v135 = vld [vmem:[%s69 + $0xd8] sm:$0xff]
  %v136 = vld [vmem:[%s77] sm:$0xff]
  %v137 = vld [vmem:[%s77 + $0x8] sm:$0xff]
  %v138 = vld [vmem:[%s77 + $0x10] sm:$0xff]
  %v139 = vld [vmem:[%s77 + $0x18] sm:$0xff]
  %v140 = vld [vmem:[%s77 + $0x20] sm:$0xff]
  %v141 = vld [vmem:[%s77 + $0x28] sm:$0xff]
  %v142 = vld [vmem:[%s77 + $0x30] sm:$0xff]
  %v143 = vunpack.c.0.s8 %v136
  %v144 = vunpack.c.1.s8 %v136
  %v145 = vunpack.c.2.s8 %v136
  %v146 = vunpack.c.3.s8 %v136
  %v147 = vunpack.c.0.s8 %v137
  %v148 = vunpack.c.1.s8 %v137
  %v149 = vunpack.c.2.s8 %v137
  %v150 = vunpack.c.3.s8 %v137
  %v151 = vunpack.c.0.s8 %v138
  %v152 = vunpack.c.1.s8 %v138
  %v153 = vunpack.c.2.s8 %v138
  %v154 = vunpack.c.3.s8 %v138
  %v155 = vunpack.c.0.s8 %v139
  %v156 = vunpack.c.1.s8 %v139
  %v157 = vunpack.c.2.s8 %v139
  %v158 = vunpack.c.3.s8 %v139
  %v159 = vunpack.c.0.s8 %v140
  %v160 = vunpack.c.1.s8 %v140
  %v161 = vunpack.c.2.s8 %v140
  %v162 = vunpack.c.3.s8 %v140
  %v163 = vunpack.c.0.s8 %v141
  %v164 = vunpack.c.1.s8 %v141
  %v165 = vunpack.c.2.s8 %v141
  %v166 = vunpack.c.3.s8 %v141
  %v167 = vunpack.c.0.s8 %v142
  %v168 = vunpack.c.1.s8 %v142
  %v169 = vunpack.c.2.s8 %v142
  %v170 = vunpack.c.3.s8 %v142
  %v171 = vcvt.s32.f32 %v143
  %v172 = vcvt.s32.f32 %v144
  %v173 = vcvt.s32.f32 %v145
  %v174 = vcvt.s32.f32 %v146
  %v175 = vcvt.s32.f32 %v147
  %v176 = vcvt.s32.f32 %v148
  %v177 = vcvt.s32.f32 %v149
  %v178 = vcvt.s32.f32 %v150
  %v179 = vcvt.s32.f32 %v151
  %v180 = vcvt.s32.f32 %v152
  %v181 = vcvt.s32.f32 %v153
  %v182 = vcvt.s32.f32 %v154
  %v183 = vcvt.s32.f32 %v155
  %v184 = vcvt.s32.f32 %v156
  %v185 = vcvt.s32.f32 %v157
  %v186 = vcvt.s32.f32 %v158
  %v187 = vcvt.s32.f32 %v159
  %v188 = vcvt.s32.f32 %v160
  %v189 = vcvt.s32.f32 %v161
  %v190 = vcvt.s32.f32 %v162
  %v191 = vcvt.s32.f32 %v163
  %v192 = vcvt.s32.f32 %v164
  %v193 = vcvt.s32.f32 %v165
  %v194 = vcvt.s32.f32 %v166
  %v195 = vcvt.s32.f32 %v167
  %v196 = vcvt.s32.f32 %v168
  %v197 = vcvt.s32.f32 %v169
  %v198 = vcvt.s32.f32 %v170
  %v199 = vmul.f32 %v171, 2.0
  %v200 = vmul.f32 %v172, 2.0
  %v201 = vmul.f32 %v173, 2.0
  %v202 = vmul.f32 %v174, 2.0
  %v203 = vmul.f32 %v175, 2.0
  %v204 = vmul.f32 %v176, 2.0
  %v205 = vmul.f32 %v177, 2.0
  %v206 = vmul.f32 %v178, 2.0
  %v207 = vmul.f32 %v179, 2.0
  %v208 = vmul.f32 %v180, 2.0
  %v209 = vmul.f32 %v181, 2.0
  %v210 = vmul.f32 %v182, 2.0
  %v211 = vmul.f32 %v183, 2.0
  %v212 = vmul.f32 %v184, 2.0
  %v213 = vmul.f32 %v185, 2.0
  %v214 = vmul.f32 %v186, 2.0
  %v215 = vmul.f32 %v187, 2.0
  %v216 = vmul.f32 %v188, 2.0
  %v217 = vmul.f32 %v189, 2.0
  %v218 = vmul.f32 %v190, 2.0
  %v219 = vmul.f32 %v191, 2.0
  %v220 = vmul.f32 %v192, 2.0
  %v221 = vmul.f32 %v193, 2.0
  %v222 = vmul.f32 %v194, 2.0
  %v223 = vmul.f32 %v195, 2.0
  %v224 = vmul.f32 %v196, 2.0
  %v225 = vmul.f32 %v197, 2.0
  %v226 = vmul.f32 %v198, 2.0
  %v227 = vsub.f32 1.0, %v199
  %v228 = vsub.f32 1.0, %v200
  %v229 = vsub.f32 1.0, %v201
  %v230 = vsub.f32 1.0, %v202
  %v231 = vsub.f32 1.0, %v203
  %v232 = vsub.f32 1.0, %v204
  %v233 = vsub.f32 1.0, %v205
  %v234 = vsub.f32 1.0, %v206
  %v235 = vsub.f32 1.0, %v207
  %v236 = vsub.f32 1.0, %v208
  %v237 = vsub.f32 1.0, %v209
  %v238 = vsub.f32 1.0, %v210
  %v239 = vsub.f32 1.0, %v211
  %v240 = vsub.f32 1.0, %v212
  %v241 = vsub.f32 1.0, %v213
  %v242 = vsub.f32 1.0, %v214
  %v243 = vsub.f32 1.0, %v215
  %v244 = vsub.f32 1.0, %v216
  %v245 = vsub.f32 1.0, %v217
  %v246 = vsub.f32 1.0, %v218
  %v247 = vsub.f32 1.0, %v219
  %v248 = vsub.f32 1.0, %v220
  %v249 = vsub.f32 1.0, %v221
  %v250 = vsub.f32 1.0, %v222
  %v251 = vsub.f32 1.0, %v223
  %v252 = vsub.f32 1.0, %v224
  %v253 = vsub.f32 1.0, %v225
  %v254 = vsub.f32 1.0, %v226
  %v255 = vsub.f32 %v108, %v80
  %v256 = vsub.f32 %v109, %v81
  %v257 = vsub.f32 %v110, %v82
  %v258 = vsub.f32 %v111, %v83
  %v259 = vsub.f32 %v112, %v84
  %v260 = vsub.f32 %v113, %v85
  %v261 = vsub.f32 %v114, %v86
  %v262 = vsub.f32 %v115, %v87
  %v263 = vsub.f32 %v116, %v88
  %v264 = vsub.f32 %v117, %v89
  %v265 = vsub.f32 %v118, %v90
  %v266 = vsub.f32 %v119, %v91
  %v267 = vsub.f32 %v120, %v92
  %v268 = vsub.f32 %v121, %v93
  %v269 = vsub.f32 %v122, %v94
  %v270 = vsub.f32 %v123, %v95
  %v271 = vsub.f32 %v124, %v96
  %v272 = vsub.f32 %v125, %v97
  %v273 = vsub.f32 %v126, %v98
  %v274 = vsub.f32 %v127, %v99
  %v275 = vsub.f32 %v128, %v100
  %v276 = vsub.f32 %v129, %v101
  %v277 = vsub.f32 %v130, %v102
  %v278 = vsub.f32 %v131, %v103
  %v279 = vsub.f32 %v132, %v104
  %v280 = vsub.f32 %v133, %v105
  %v281 = vsub.f32 %v134, %v106
  %v282 = vsub.f32 %v135, %v107
  %v283 = vmul.f32 %v227, %v255
  %v284 = vmul.f32 %v228, %v256
  %v285 = vmul.f32 %v229, %v257
  %v286 = vmul.f32 %v230, %v258
  %v287 = vmul.f32 %v231, %v259
  %v288 = vmul.f32 %v232, %v260
  %v289 = vmul.f32 %v233, %v261
  %v290 = vmul.f32 %v234, %v262
  %v291 = vmul.f32 %v235, %v263
  %v292 = vmul.f32 %v236, %v264
  %v293 = vmul.f32 %v237, %v265
  %v294 = vmul.f32 %v238, %v266
  %v295 = vmul.f32 %v239, %v267
  %v296 = vmul.f32 %v240, %v268
  %v297 = vmul.f32 %v241, %v269
  %v298 = vmul.f32 %v242, %v270
  %v299 = vmul.f32 %v243, %v271
  %v300 = vmul.f32 %v244, %v272
  %v301 = vmul.f32 %v245, %v273
  %v302 = vmul.f32 %v246, %v274
  %v303 = vmul.f32 %v247, %v275
  %v304 = vmul.f32 %v248, %v276
  %v305 = vmul.f32 %v249, %v277
  %v306 = vmul.f32 %v250, %v278
  %v307 = vmul.f32 %v251, %v279
  %v308 = vmul.f32 %v252, %v280
  %v309 = vmul.f32 %v253, %v281
  %v310 = vmul.f32 %v254, %v282
  %v311 = vand.u32 2147483647, %v283
  %v312 = vand.u32 2147483647, %v284
  %v313 = vand.u32 2147483647, %v285
  %v314 = vand.u32 2147483647, %v286
  %v315 = vand.u32 2147483647, %v287
  %v316 = vand.u32 2147483647, %v288
  %v317 = vand.u32 2147483647, %v289
  %v318 = vand.u32 2147483647, %v290
  %v319 = vand.u32 2147483647, %v291
  %v320 = vand.u32 2147483647, %v292
  %v321 = vand.u32 2147483647, %v293
  %v322 = vand.u32 2147483647, %v294
  %v323 = vand.u32 2147483647, %v295
  %v324 = vand.u32 2147483647, %v296
  %v325 = vand.u32 2147483647, %v297
  %v326 = vand.u32 2147483647, %v298
  %v327 = vand.u32 2147483647, %v299
  %v328 = vand.u32 2147483647, %v300
  %v329 = vand.u32 2147483647, %v301
  %v330 = vand.u32 2147483647, %v302
  %v331 = vand.u32 2147483647, %v303
  %v332 = vand.u32 2147483647, %v304
  %v333 = vand.u32 2147483647, %v305
  %v334 = vand.u32 2147483647, %v306
  %v335 = vand.u32 2147483647, %v307
  %v336 = vand.u32 2147483647, %v308
  %v337 = vand.u32 2147483647, %v309
  %v338 = vand.u32 2147483647, %v310
  %v339 = vsub.f32 0.0, %v311
  %v340 = vsub.f32 0.0, %v312
  %v341 = vsub.f32 0.0, %v313
  %v342 = vsub.f32 0.0, %v314
  %v343 = vsub.f32 0.0, %v315
  %v344 = vsub.f32 0.0, %v316
  %v345 = vsub.f32 0.0, %v317
  %v346 = vsub.f32 0.0, %v318
  %v347 = vsub.f32 0.0, %v319
  %v348 = vsub.f32 0.0, %v320
  %v349 = vsub.f32 0.0, %v321
  %v350 = vsub.f32 0.0, %v322
  %v351 = vsub.f32 0.0, %v323
  %v352 = vsub.f32 0.0, %v324
  %v353 = vsub.f32 0.0, %v325
  %v354 = vsub.f32 0.0, %v326
  %v355 = vsub.f32 0.0, %v327
  %v356 = vsub.f32 0.0, %v328
  %v357 = vsub.f32 0.0, %v329
  %v358 = vsub.f32 0.0, %v330
  %v359 = vsub.f32 0.0, %v331
  %v360 = vsub.f32 0.0, %v332
  %v361 = vsub.f32 0.0, %v333
  %v362 = vsub.f32 0.0, %v334
  %v363 = vsub.f32 0.0, %v335
  %v364 = vsub.f32 0.0, %v336
  %v365 = vsub.f32 0.0, %v337
  %v366 = vsub.f32 0.0, %v338
  %v367 = vmul.f32 %v339, 1.442695
  %v368 = vpow.pop %v367
  %v369 = vmul.f32 %v340, 1.442695
  %v370 = vpow.pop %v369
  %v371 = vmul.f32 %v341, 1.442695
  %v372 = vpow.pop %v371
  %v373 = vmul.f32 %v342, 1.442695
  %v374 = vpow.pop %v373
  %v375 = vmul.f32 %v343, 1.442695
  %v376 = vpow.pop %v375
  %v377 = vmul.f32 %v344, 1.442695
  %v378 = vpow.pop %v377
  %v379 = vmul.f32 %v345, 1.442695
  %v380 = vpow.pop %v379
  %v381 = vmul.f32 %v346, 1.442695
  %v382 = vpow.pop %v381
  %v383 = vmul.f32 %v347, 1.442695
  %v384 = vpow.pop %v383
  %v385 = vmul.f32 %v348, 1.442695
  %v386 = vpow.pop %v385
  %v387 = vmul.f32 %v349, 1.442695
  %v388 = vpow.pop %v387
  %v389 = vmul.f32 %v350, 1.442695
  %v390 = vpow.pop %v389
  %v391 = vmul.f32 %v351, 1.442695
  %v392 = vpow.pop %v391
  %v393 = vmul.f32 %v352, 1.442695
  %v394 = vpow.pop %v393
  %v395 = vmul.f32 %v353, 1.442695
  %v396 = vpow.pop %v395
  %v397 = vmul.f32 %v354, 1.442695
  %v398 = vpow.pop %v397
  %v399 = vmul.f32 %v355, 1.442695
  %v400 = vpow.pop %v399
  %v401 = vmul.f32 %v356, 1.442695
  %v402 = vpow.pop %v401
  %v403 = vmul.f32 %v357, 1.442695
  %v404 = vpow.pop %v403
  %v405 = vmul.f32 %v358, 1.442695
  %v406 = vpow.pop %v405
  %v407 = vmul.f32 %v359, 1.442695
  %v408 = vpow.pop %v407
  %v409 = vmul.f32 %v360, 1.442695
  %v410 = vpow.pop %v409
  %v411 = vmul.f32 %v361, 1.442695
  %v412 = vpow.pop %v411
  %v413 = vmul.f32 %v362, 1.442695
  %v414 = vpow.pop %v413
  %v415 = vmul.f32 %v363, 1.442695
  %v416 = vpow.pop %v415
  %v417 = vmul.f32 %v364, 1.442695
  %v418 = vpow.pop %v417
  %v419 = vmul.f32 %v365, 1.442695
  %v420 = vpow.pop %v419
  %v421 = vmul.f32 %v366, 1.442695
  %v422 = vpow.pop %v421
  %v423 = vmax.f32 %v283, 0.0
  %v424 = vmax.f32 %v284, 0.0
  %v425 = vmax.f32 %v285, 0.0
  %v426 = vmax.f32 %v286, 0.0
  %v427 = vmax.f32 %v287, 0.0
  %v428 = vmax.f32 %v288, 0.0
  %v429 = vmax.f32 %v289, 0.0
  %v430 = vmax.f32 %v290, 0.0
  %v431 = vmax.f32 %v291, 0.0
  %v432 = vmax.f32 %v292, 0.0
  %v433 = vmax.f32 %v293, 0.0
  %v434 = vmax.f32 %v294, 0.0
  %v435 = vmax.f32 %v295, 0.0
  %v436 = vmax.f32 %v296, 0.0
  %v437 = vmax.f32 %v297, 0.0
  %v438 = vmax.f32 %v298, 0.0
  %v439 = vmax.f32 %v299, 0.0
  %v440 = vmax.f32 %v300, 0.0
  %v441 = vmax.f32 %v301, 0.0
  %v442 = vmax.f32 %v302, 0.0
  %v443 = vmax.f32 %v303, 0.0
  %v444 = vmax.f32 %v304, 0.0
  %v445 = vmax.f32 %v305, 0.0
  %v446 = vmax.f32 %v306, 0.0
  %v447 = vmax.f32 %v307, 0.0
  %v448 = vmax.f32 %v308, 0.0
  %v449 = vmax.f32 %v309, 0.0
  %v450 = vmax.f32 %v310, 0.0
  %v451 = vadd.f32 %v368, 1.0
  %v452 = vlog2.pop %v451
  %v453 = vmul.f32 %v452, 0.6931472
  %v454 = vmul.f32 -0.5, %v368
  %v455 = vadd.f32 %v454, 1.0
  %v456 = vmul.f32 %v455, %v368
  %v457 = vand.u32 2147483647, %v368
  %vm458 = vcmp.lt.f32.partialorder %v457, 0.0004427343
  %v459 = vsel %vm458, %v456, %v453
  %v460 = vadd.f32 %v370, 1.0
  %v461 = vlog2.pop %v460
  %v462 = vmul.f32 %v461, 0.6931472
  %v463 = vmul.f32 -0.5, %v370
  %v464 = vadd.f32 %v463, 1.0
  %v465 = vmul.f32 %v464, %v370
  %v466 = vand.u32 2147483647, %v370
  %vm467 = vcmp.lt.f32.partialorder %v466, 0.0004427343
  %v468 = vsel %vm467, %v465, %v462
  %v469 = vadd.f32 %v372, 1.0
  %v470 = vlog2.pop %v469
  %v471 = vmul.f32 %v470, 0.6931472
  %v472 = vmul.f32 -0.5, %v372
  %v473 = vadd.f32 %v472, 1.0
  %v474 = vmul.f32 %v473, %v372
  %v475 = vand.u32 2147483647, %v372
  %vm476 = vcmp.lt.f32.partialorder %v475, 0.0004427343
  %v477 = vsel %vm476, %v474, %v471
  %v478 = vadd.f32 %v374, 1.0
  %v479 = vlog2.pop %v478
  %v480 = vmul.f32 %v479, 0.6931472
  %v481 = vmul.f32 -0.5, %v374
  %v482 = vadd.f32 %v481, 1.0
  %v483 = vmul.f32 %v482, %v374
  %v484 = vand.u32 2147483647, %v374
  %vm485 = vcmp.lt.f32.partialorder %v484, 0.0004427343
  %v486 = vsel %vm485, %v483, %v480
  %v487 = vadd.f32 %v376, 1.0
  %v488 = vlog2.pop %v487
  %v489 = vmul.f32 %v488, 0.6931472
  %v490 = vmul.f32 -0.5, %v376
  %v491 = vadd.f32 %v490, 1.0
  %v492 = vmul.f32 %v491, %v376
  %v493 = vand.u32 2147483647, %v376
  %vm494 = vcmp.lt.f32.partialorder %v493, 0.0004427343
  %v495 = vsel %vm494, %v492, %v489
  %v496 = vadd.f32 %v378, 1.0
  %v497 = vlog2.pop %v496
  %v498 = vmul.f32 %v497, 0.6931472
  %v499 = vmul.f32 -0.5, %v378
  %v500 = vadd.f32 %v499, 1.0
  %v501 = vmul.f32 %v500, %v378
  %v502 = vand.u32 2147483647, %v378
  %vm503 = vcmp.lt.f32.partialorder %v502, 0.0004427343
  %v504 = vsel %vm503, %v501, %v498
  %v505 = vadd.f32 %v380, 1.0
  %v506 = vlog2.pop %v505
  %v507 = vmul.f32 %v506, 0.6931472
  %v508 = vmul.f32 -0.5, %v380
  %v509 = vadd.f32 %v508, 1.0
  %v510 = vmul.f32 %v509, %v380
  %v511 = vand.u32 2147483647, %v380
  %vm512 = vcmp.lt.f32.partialorder %v511, 0.0004427343
  %v513 = vsel %vm512, %v510, %v507
  %v514 = vadd.f32 %v382, 1.0
  %v515 = vlog2.pop %v514
  %v516 = vmul.f32 %v515, 0.6931472
  %v517 = vmul.f32 -0.5, %v382
  %v518 = vadd.f32 %v517, 1.0
  %v519 = vmul.f32 %v518, %v382
  %v520 = vand.u32 2147483647, %v382
  %vm521 = vcmp.lt.f32.partialorder %v520, 0.0004427343
  %v522 = vsel %vm521, %v519, %v516
  %v523 = vadd.f32 %v384, 1.0
  %v524 = vlog2.pop %v523
  %v525 = vmul.f32 %v524, 0.6931472
  %v526 = vmul.f32 -0.5, %v384
  %v527 = vadd.f32 %v526, 1.0
  %v528 = vmul.f32 %v527, %v384
  %v529 = vand.u32 2147483647, %v384
  %vm530 = vcmp.lt.f32.partialorder %v529, 0.0004427343
  %v531 = vsel %vm530, %v528, %v525
  %v532 = vadd.f32 %v386, 1.0
  %v533 = vlog2.pop %v532
  %v534 = vmul.f32 %v533, 0.6931472
  %v535 = vmul.f32 -0.5, %v386
  %v536 = vadd.f32 %v535, 1.0
  %v537 = vmul.f32 %v536, %v386
  %v538 = vand.u32 2147483647, %v386
  %vm539 = vcmp.lt.f32.partialorder %v538, 0.0004427343
  %v540 = vsel %vm539, %v537, %v534
  %v541 = vadd.f32 %v388, 1.0
  %v542 = vlog2.pop %v541
  %v543 = vmul.f32 %v542, 0.6931472
  %v544 = vmul.f32 -0.5, %v388
  %v545 = vadd.f32 %v544, 1.0
  %v546 = vmul.f32 %v545, %v388
  %v547 = vand.u32 2147483647, %v388
  %vm548 = vcmp.lt.f32.partialorder %v547, 0.0004427343
  %v549 = vsel %vm548, %v546, %v543
  %v550 = vadd.f32 %v390, 1.0
  %v551 = vlog2.pop %v550
  %v552 = vmul.f32 %v551, 0.6931472
  %v553 = vmul.f32 -0.5, %v390
  %v554 = vadd.f32 %v553, 1.0
  %v555 = vmul.f32 %v554, %v390
  %v556 = vand.u32 2147483647, %v390
  %vm557 = vcmp.lt.f32.partialorder %v556, 0.0004427343
  %v558 = vsel %vm557, %v555, %v552
  %v559 = vadd.f32 %v392, 1.0
  %v560 = vlog2.pop %v559
  %v561 = vmul.f32 %v560, 0.6931472
  %v562 = vmul.f32 -0.5, %v392
  %v563 = vadd.f32 %v562, 1.0
  %v564 = vmul.f32 %v563, %v392
  %v565 = vand.u32 2147483647, %v392
  %vm566 = vcmp.lt.f32.partialorder %v565, 0.0004427343
  %v567 = vsel %vm566, %v564, %v561
  %v568 = vadd.f32 %v394, 1.0
  %v569 = vlog2.pop %v568
  %v570 = vmul.f32 %v569, 0.6931472
  %v571 = vmul.f32 -0.5, %v394
  %v572 = vadd.f32 %v571, 1.0
  %v573 = vmul.f32 %v572, %v394
  %v574 = vand.u32 2147483647, %v394
  %vm575 = vcmp.lt.f32.partialorder %v574, 0.0004427343
  %v576 = vsel %vm575, %v573, %v570
  %v577 = vadd.f32 %v396, 1.0
  %v578 = vlog2.pop %v577
  %v579 = vmul.f32 %v578, 0.6931472
  %v580 = vmul.f32 -0.5, %v396
  %v581 = vadd.f32 %v580, 1.0
  %v582 = vmul.f32 %v581, %v396
  %v583 = vand.u32 2147483647, %v396
  %vm584 = vcmp.lt.f32.partialorder %v583, 0.0004427343
  %v585 = vsel %vm584, %v582, %v579
  %v586 = vadd.f32 %v398, 1.0
  %v587 = vlog2.pop %v586
  %v588 = vmul.f32 %v587, 0.6931472
  %v589 = vmul.f32 -0.5, %v398
  %v590 = vadd.f32 %v589, 1.0
  %v591 = vmul.f32 %v590, %v398
  %v592 = vand.u32 2147483647, %v398
  %vm593 = vcmp.lt.f32.partialorder %v592, 0.0004427343
  %v594 = vsel %vm593, %v591, %v588
  %v595 = vadd.f32 %v400, 1.0
  %v596 = vlog2.pop %v595
  %v597 = vmul.f32 %v596, 0.6931472
  %v598 = vmul.f32 -0.5, %v400
  %v599 = vadd.f32 %v598, 1.0
  %v600 = vmul.f32 %v599, %v400
  %v601 = vand.u32 2147483647, %v400
  %vm602 = vcmp.lt.f32.partialorder %v601, 0.0004427343
  %v603 = vsel %vm602, %v600, %v597
  %v604 = vadd.f32 %v402, 1.0
  %v605 = vlog2.pop %v604
  %v606 = vmul.f32 %v605, 0.6931472
  %v607 = vmul.f32 -0.5, %v402
  %v608 = vadd.f32 %v607, 1.0
  %v609 = vmul.f32 %v608, %v402
  %v610 = vand.u32 2147483647, %v402
  %vm611 = vcmp.lt.f32.partialorder %v610, 0.0004427343
  %v612 = vsel %vm611, %v609, %v606
  %v613 = vadd.f32 %v404, 1.0
  %v614 = vlog2.pop %v613
  %v615 = vmul.f32 %v614, 0.6931472
  %v616 = vmul.f32 -0.5, %v404
  %v617 = vadd.f32 %v616, 1.0
  %v618 = vmul.f32 %v617, %v404
  %v619 = vand.u32 2147483647, %v404
  %vm620 = vcmp.lt.f32.partialorder %v619, 0.0004427343
  %v621 = vsel %vm620, %v618, %v615
  %v622 = vadd.f32 %v406, 1.0
  %v623 = vlog2.pop %v622
  %v624 = vmul.f32 %v623, 0.6931472
  %v625 = vmul.f32 -0.5, %v406
  %v626 = vadd.f32 %v625, 1.0
  %v627 = vmul.f32 %v626, %v406
  %v628 = vand.u32 2147483647, %v406
  %vm629 = vcmp.lt.f32.partialorder %v628, 0.0004427343
  %v630 = vsel %vm629, %v627, %v624
  %v631 = vadd.f32 %v408, 1.0
  %v632 = vlog2.pop %v631
  %v633 = vmul.f32 %v632, 0.6931472
  %v634 = vmul.f32 -0.5, %v408
  %v635 = vadd.f32 %v634, 1.0
  %v636 = vmul.f32 %v635, %v408
  %v637 = vand.u32 2147483647, %v408
  %vm638 = vcmp.lt.f32.partialorder %v637, 0.0004427343
  %v639 = vsel %vm638, %v636, %v633
  %v640 = vadd.f32 %v410, 1.0
  %v641 = vlog2.pop %v640
  %v642 = vmul.f32 %v641, 0.6931472
  %v643 = vmul.f32 -0.5, %v410
  %v644 = vadd.f32 %v643, 1.0
  %v645 = vmul.f32 %v644, %v410
  %v646 = vand.u32 2147483647, %v410
  %vm647 = vcmp.lt.f32.partialorder %v646, 0.0004427343
  %v648 = vsel %vm647, %v645, %v642
  %v649 = vadd.f32 %v412, 1.0
  %v650 = vlog2.pop %v649
  %v651 = vmul.f32 %v650, 0.6931472
  %v652 = vmul.f32 -0.5, %v412
  %v653 = vadd.f32 %v652, 1.0
  %v654 = vmul.f32 %v653, %v412
  %v655 = vand.u32 2147483647, %v412
  %vm656 = vcmp.lt.f32.partialorder %v655, 0.0004427343
  %v657 = vsel %vm656, %v654, %v651
  %v658 = vadd.f32 %v414, 1.0
  %v659 = vlog2.pop %v658
  %v660 = vmul.f32 %v659, 0.6931472
  %v661 = vmul.f32 -0.5, %v414
  %v662 = vadd.f32 %v661, 1.0
  %v663 = vmul.f32 %v662, %v414
  %v664 = vand.u32 2147483647, %v414
  %vm665 = vcmp.lt.f32.partialorder %v664, 0.0004427343
  %v666 = vsel %vm665, %v663, %v660
  %v667 = vadd.f32 %v416, 1.0
  %v668 = vlog2.pop %v667
  %v669 = vmul.f32 %v668, 0.6931472
  %v670 = vmul.f32 -0.5, %v416
  %v671 = vadd.f32 %v670, 1.0
  %v672 = vmul.f32 %v671, %v416
  %v673 = vand.u32 2147483647, %v416
  %vm674 = vcmp.lt.f32.partialorder %v673, 0.0004427343
  %v675 = vsel %vm674, %v672, %v669
  %v676 = vadd.f32 %v418, 1.0
  %v677 = vlog2.pop %v676
  %v678 = vmul.f32 %v677, 0.6931472
  %v679 = vmul.f32 -0.5, %v418
  %v680 = vadd.f32 %v679, 1.0
  %v681 = vmul.f32 %v680, %v418
  %v682 = vand.u32 2147483647, %v418
  %vm683 = vcmp.lt.f32.partialorder %v682, 0.0004427343
  %v684 = vsel %vm683, %v681, %v678
  %v685 = vadd.f32 %v420, 1.0
  %v686 = vlog2.pop %v685
  %v687 = vmul.f32 %v686, 0.6931472
  %v688 = vmul.f32 -0.5, %v420
  %v689 = vadd.f32 %v688, 1.0
  %v690 = vmul.f32 %v689, %v420
  %v691 = vand.u32 2147483647, %v420
  %vm692 = vcmp.lt.f32.partialorder %v691, 0.0004427343
  %v693 = vsel %vm692, %v690, %v687
  %v694 = vadd.f32 %v422, 1.0
  %v695 = vlog2.pop %v694
  %v696 = vmul.f32 %v695, 0.6931472
  %v697 = vmul.f32 -0.5, %v422
  %v698 = vadd.f32 %v697, 1.0
  %v699 = vmul.f32 %v698, %v422
  %v700 = vand.u32 2147483647, %v422
  %vm701 = vcmp.lt.f32.partialorder %v700, 0.0004427343
  %v702 = vsel %vm701, %v699, %v696
  %v703 = vadd.f32 %v423, %v459
  %v704 = vadd.f32 %v424, %v468
  %v705 = vadd.f32 %v425, %v477
  %v706 = vadd.f32 %v426, %v486
  %v707 = vadd.f32 %v427, %v495
  %v708 = vadd.f32 %v428, %v504
  %v709 = vadd.f32 %v429, %v513
  %v710 = vadd.f32 %v430, %v522
  %v711 = vadd.f32 %v431, %v531
  %v712 = vadd.f32 %v432, %v540
  %v713 = vadd.f32 %v433, %v549
  %v714 = vadd.f32 %v434, %v558
  %v715 = vadd.f32 %v435, %v567
  %v716 = vadd.f32 %v436, %v576
  %v717 = vadd.f32 %v437, %v585
  %v718 = vadd.f32 %v438, %v594
  %v719 = vadd.f32 %v439, %v603
  %v720 = vadd.f32 %v440, %v612
  %v721 = vadd.f32 %v441, %v621
  %v722 = vadd.f32 %v442, %v630
  %v723 = vadd.f32 %v443, %v639
  %v724 = vadd.f32 %v444, %v648
  %v725 = vadd.f32 %v445, %v657
  %v726 = vadd.f32 %v446, %v666
  %v727 = vadd.f32 %v447, %v675
  %v728 = vadd.f32 %v448, %v684
  %v729 = vadd.f32 %v449, %v693
  %v730 = vadd.f32 %v450, %v702
  %v731 = vsub.f32 0.0, %v227
  %v732 = vsub.f32 0.0, %v228
  %v733 = vsub.f32 0.0, %v229
  %v734 = vsub.f32 0.0, %v230
  %v735 = vsub.f32 0.0, %v231
  %v736 = vsub.f32 0.0, %v232
  %v737 = vsub.f32 0.0, %v233
  %v738 = vsub.f32 0.0, %v234
  %v739 = vsub.f32 0.0, %v235
  %v740 = vsub.f32 0.0, %v236
  %v741 = vsub.f32 0.0, %v237
  %v742 = vsub.f32 0.0, %v238
  %v743 = vsub.f32 0.0, %v239
  %v744 = vsub.f32 0.0, %v240
  %v745 = vsub.f32 0.0, %v241
  %v746 = vsub.f32 0.0, %v242
  %v747 = vsub.f32 0.0, %v243
  %v748 = vsub.f32 0.0, %v244
  %v749 = vsub.f32 0.0, %v245
  %v750 = vsub.f32 0.0, %v246
  %v751 = vsub.f32 0.0, %v247
  %v752 = vsub.f32 0.0, %v248
  %v753 = vsub.f32 0.0, %v249
  %v754 = vsub.f32 0.0, %v250
  %v755 = vsub.f32 0.0, %v251
  %v756 = vsub.f32 0.0, %v252
  %v757 = vsub.f32 0.0, %v253
  %v758 = vsub.f32 0.0, %v254
  %v759 = vmul.f32 %v731, %v80
  %v760 = vmul.f32 %v732, %v81
  %v761 = vmul.f32 %v733, %v82
  %v762 = vmul.f32 %v734, %v83
  %v763 = vmul.f32 %v735, %v84
  %v764 = vmul.f32 %v736, %v85
  %v765 = vmul.f32 %v737, %v86
  %v766 = vmul.f32 %v738, %v87
  %v767 = vmul.f32 %v739, %v88
  %v768 = vmul.f32 %v740, %v89
  %v769 = vmul.f32 %v741, %v90
  %v770 = vmul.f32 %v742, %v91
  %v771 = vmul.f32 %v743, %v92
  %v772 = vmul.f32 %v744, %v93
  %v773 = vmul.f32 %v745, %v94
  %v774 = vmul.f32 %v746, %v95
  %v775 = vmul.f32 %v747, %v96
  %v776 = vmul.f32 %v748, %v97
  %v777 = vmul.f32 %v749, %v98
  %v778 = vmul.f32 %v750, %v99
  %v779 = vmul.f32 %v751, %v100
  %v780 = vmul.f32 %v752, %v101
  %v781 = vmul.f32 %v753, %v102
  %v782 = vmul.f32 %v754, %v103
  %v783 = vmul.f32 %v755, %v104
  %v784 = vmul.f32 %v756, %v105
  %v785 = vmul.f32 %v757, %v106
  %v786 = vmul.f32 %v758, %v107
  %v787 = vmul.f32 %v227, %v108
  %v788 = vmul.f32 %v228, %v109
  %v789 = vmul.f32 %v229, %v110
  %v790 = vmul.f32 %v230, %v111
  %v791 = vmul.f32 %v231, %v112
  %v792 = vmul.f32 %v232, %v113
  %v793 = vmul.f32 %v233, %v114
  %v794 = vmul.f32 %v234, %v115
  %v795 = vmul.f32 %v235, %v116
  %v796 = vmul.f32 %v236, %v117
  %v797 = vmul.f32 %v237, %v118
  %v798 = vmul.f32 %v238, %v119
  %v799 = vmul.f32 %v239, %v120
  %v800 = vmul.f32 %v240, %v121
  %v801 = vmul.f32 %v241, %v122
  %v802 = vmul.f32 %v242, %v123
  %v803 = vmul.f32 %v243, %v124
  %v804 = vmul.f32 %v244, %v125
  %v805 = vmul.f32 %v245, %v126
  %v806 = vmul.f32 %v246, %v127
  %v807 = vmul.f32 %v247, %v128
  %v808 = vmul.f32 %v248, %v129
  %v809 = vmul.f32 %v249, %v130
  %v810 = vmul.f32 %v250, %v131
  %v811 = vmul.f32 %v251, %v132
  %v812 = vmul.f32 %v252, %v133
  %v813 = vmul.f32 %v253, %v134
  %v814 = vmul.f32 %v254, %v135
  %v815 = vand.u32 2147483647, %v759
  %v816 = vand.u32 2147483647, %v760
  %v817 = vand.u32 2147483647, %v761
  %v818 = vand.u32 2147483647, %v762
  %v819 = vand.u32 2147483647, %v763
  %v820 = vand.u32 2147483647, %v764
  %v821 = vand.u32 2147483647, %v765
  %v822 = vand.u32 2147483647, %v766
  %v823 = vand.u32 2147483647, %v767
  %v824 = vand.u32 2147483647, %v768
  %v825 = vand.u32 2147483647, %v769
  %v826 = vand.u32 2147483647, %v770
  %v827 = vand.u32 2147483647, %v771
  %v828 = vand.u32 2147483647, %v772
  %v829 = vand.u32 2147483647, %v773
  %v830 = vand.u32 2147483647, %v774
  %v831 = vand.u32 2147483647, %v775
  %v832 = vand.u32 2147483647, %v776
  %v833 = vand.u32 2147483647, %v777
  %v834 = vand.u32 2147483647, %v778
  %v835 = vand.u32 2147483647, %v779
  %v836 = vand.u32 2147483647, %v780
  %v837 = vand.u32 2147483647, %v781
  %v838 = vand.u32 2147483647, %v782
  %v839 = vand.u32 2147483647, %v783
  %v840 = vand.u32 2147483647, %v784
  %v841 = vand.u32 2147483647, %v785
  %v842 = vand.u32 2147483647, %v786
  %v843 = vsub.f32 0.0, %v815
  %v844 = vsub.f32 0.0, %v816
  %v845 = vsub.f32 0.0, %v817
  %v846 = vsub.f32 0.0, %v818
  %v847 = vsub.f32 0.0, %v819
  %v848 = vsub.f32 0.0, %v820
  %v849 = vsub.f32 0.0, %v821
  %v850 = vsub.f32 0.0, %v822
  %v851 = vsub.f32 0.0, %v823
  %v852 = vsub.f32 0.0, %v824
  %v853 = vsub.f32 0.0, %v825
  %v854 = vsub.f32 0.0, %v826
  %v855 = vsub.f32 0.0, %v827
  %v856 = vsub.f32 0.0, %v828
  %v857 = vsub.f32 0.0, %v829
  %v858 = vsub.f32 0.0, %v830
  %v859 = vsub.f32 0.0, %v831
  %v860 = vsub.f32 0.0, %v832
  %v861 = vsub.f32 0.0, %v833
  %v862 = vsub.f32 0.0, %v834
  %v863 = vsub.f32 0.0, %v835
  %v864 = vsub.f32 0.0, %v836
  %v865 = vsub.f32 0.0, %v837
  %v866 = vsub.f32 0.0, %v838
  %v867 = vsub.f32 0.0, %v839
  %v868 = vsub.f32 0.0, %v840
  %v869 = vsub.f32 0.0, %v841
  %v870 = vsub.f32 0.0, %v842
  %v871 = vmul.f32 %v843, 1.442695
  %v872 = vpow.pop %v871
  %v873 = vmul.f32 %v844, 1.442695
  %v874 = vpow.pop %v873
  %v875 = vmul.f32 %v845, 1.442695
  %v876 = vpow.pop %v875
  %v877 = vmul.f32 %v846, 1.442695
  %v878 = vpow.pop %v877
  %v879 = vmul.f32 %v847, 1.442695
  %v880 = vpow.pop %v879
  %v881 = vmul.f32 %v848, 1.442695
  %v882 = vpow.pop %v881
  %v883 = vmul.f32 %v849, 1.442695
  %v884 = vpow.pop %v883
  %v885 = vmul.f32 %v850, 1.442695
  %v886 = vpow.pop %v885
  %v887 = vmul.f32 %v851, 1.442695
  %v888 = vpow.pop %v887
  %v889 = vmul.f32 %v852, 1.442695
  %v890 = vpow.pop %v889
  %v891 = vmul.f32 %v853, 1.442695
  %v892 = vpow.pop %v891
  %v893 = vmul.f32 %v854, 1.442695
  %v894 = vpow.pop %v893
  %v895 = vmul.f32 %v855, 1.442695
  %v896 = vpow.pop %v895
  %v897 = vmul.f32 %v856, 1.442695
  %v898 = vpow.pop %v897
  %v899 = vmul.f32 %v857, 1.442695
  %v900 = vpow.pop %v899
  %v901 = vmul.f32 %v858, 1.442695
  %v902 = vpow.pop %v901
  %v903 = vmul.f32 %v859, 1.442695
  %v904 = vpow.pop %v903
  %v905 = vmul.f32 %v860, 1.442695
  %v906 = vpow.pop %v905
  %v907 = vmul.f32 %v861, 1.442695
  %v908 = vpow.pop %v907
  %v909 = vmul.f32 %v862, 1.442695
  %v910 = vpow.pop %v909
  %v911 = vmul.f32 %v863, 1.442695
  %v912 = vpow.pop %v911
  %v913 = vmul.f32 %v864, 1.442695
  %v914 = vpow.pop %v913
  %v915 = vmul.f32 %v865, 1.442695
  %v916 = vpow.pop %v915
  %v917 = vmul.f32 %v866, 1.442695
  %v918 = vpow.pop %v917
  %v919 = vmul.f32 %v867, 1.442695
  %v920 = vpow.pop %v919
  %v921 = vmul.f32 %v868, 1.442695
  %v922 = vpow.pop %v921
  %v923 = vmul.f32 %v869, 1.442695
  %v924 = vpow.pop %v923
  %v925 = vmul.f32 %v870, 1.442695
  %v926 = vpow.pop %v925
  %v927 = vmax.f32 %v759, 0.0
  %v928 = vmax.f32 %v760, 0.0
  %v929 = vmax.f32 %v761, 0.0
  %v930 = vmax.f32 %v762, 0.0
  %v931 = vmax.f32 %v763, 0.0
  %v932 = vmax.f32 %v764, 0.0
  %v933 = vmax.f32 %v765, 0.0
  %v934 = vmax.f32 %v766, 0.0
  %v935 = vmax.f32 %v767, 0.0
  %v936 = vmax.f32 %v768, 0.0
  %v937 = vmax.f32 %v769, 0.0
  %v938 = vmax.f32 %v770, 0.0
  %v939 = vmax.f32 %v771, 0.0
  %v940 = vmax.f32 %v772, 0.0
  %v941 = vmax.f32 %v773, 0.0
  %v942 = vmax.f32 %v774, 0.0
  %v943 = vmax.f32 %v775, 0.0
  %v944 = vmax.f32 %v776, 0.0
  %v945 = vmax.f32 %v777, 0.0
  %v946 = vmax.f32 %v778, 0.0
  %v947 = vmax.f32 %v779, 0.0
  %v948 = vmax.f32 %v780, 0.0
  %v949 = vmax.f32 %v781, 0.0
  %v950 = vmax.f32 %v782, 0.0
  %v951 = vmax.f32 %v783, 0.0
  %v952 = vmax.f32 %v784, 0.0
  %v953 = vmax.f32 %v785, 0.0
  %v954 = vmax.f32 %v786, 0.0
  %v955 = vadd.f32 %v872, 1.0
  %v956 = vlog2.pop %v955
  %v957 = vmul.f32 %v956, 0.6931472
  %v958 = vmul.f32 -0.5, %v872
  %v959 = vadd.f32 %v958, 1.0
  %v960 = vmul.f32 %v959, %v872
  %v961 = vand.u32 2147483647, %v872
  %vm962 = vcmp.lt.f32.partialorder %v961, 0.0004427343
  %v963 = vsel %vm962, %v960, %v957
  %v964 = vadd.f32 %v874, 1.0
  %v965 = vlog2.pop %v964
  %v966 = vmul.f32 %v965, 0.6931472
  %v967 = vmul.f32 -0.5, %v874
  %v968 = vadd.f32 %v967, 1.0
  %v969 = vmul.f32 %v968, %v874
  %v970 = vand.u32 2147483647, %v874
  %vm971 = vcmp.lt.f32.partialorder %v970, 0.0004427343
  %v972 = vsel %vm971, %v969, %v966
  %v973 = vadd.f32 %v876, 1.0
  %v974 = vlog2.pop %v973
  %v975 = vmul.f32 %v974, 0.6931472
  %v976 = vmul.f32 -0.5, %v876
  %v977 = vadd.f32 %v976, 1.0
  %v978 = vmul.f32 %v977, %v876
  %v979 = vand.u32 2147483647, %v876
  %vm980 = vcmp.lt.f32.partialorder %v979, 0.0004427343
  %v981 = vsel %vm980, %v978, %v975
  %v982 = vadd.f32 %v878, 1.0
  %v983 = vlog2.pop %v982
  %v984 = vmul.f32 %v983, 0.6931472
  %v985 = vmul.f32 -0.5, %v878
  %v986 = vadd.f32 %v985, 1.0
  %v987 = vmul.f32 %v986, %v878
  %v988 = vand.u32 2147483647, %v878
  %vm989 = vcmp.lt.f32.partialorder %v988, 0.0004427343
  %v990 = vsel %vm989, %v987, %v984
  %v991 = vadd.f32 %v880, 1.0
  %v992 = vlog2.pop %v991
  %v993 = vmul.f32 %v992, 0.6931472
  %v994 = vmul.f32 -0.5, %v880
  %v995 = vadd.f32 %v994, 1.0
  %v996 = vmul.f32 %v995, %v880
  %v997 = vand.u32 2147483647, %v880
  %vm998 = vcmp.lt.f32.partialorder %v997, 0.0004427343
  %v999 = vsel %vm998, %v996, %v993
  %v1000 = vadd.f32 %v882, 1.0
  %v1001 = vlog2.pop %v1000
  %v1002 = vmul.f32 %v1001, 0.6931472
  %v1003 = vmul.f32 -0.5, %v882
  %v1004 = vadd.f32 %v1003, 1.0
  %v1005 = vmul.f32 %v1004, %v882
  %v1006 = vand.u32 2147483647, %v882
  %vm1007 = vcmp.lt.f32.partialorder %v1006, 0.0004427343
  %v1008 = vsel %vm1007, %v1005, %v1002
  %v1009 = vadd.f32 %v884, 1.0
  %v1010 = vlog2.pop %v1009
  %v1011 = vmul.f32 %v1010, 0.6931472
  %v1012 = vmul.f32 -0.5, %v884
  %v1013 = vadd.f32 %v1012, 1.0
  %v1014 = vmul.f32 %v1013, %v884
  %v1015 = vand.u32 2147483647, %v884
  %vm1016 = vcmp.lt.f32.partialorder %v1015, 0.0004427343
  %v1017 = vsel %vm1016, %v1014, %v1011
  %v1018 = vadd.f32 %v886, 1.0
  %v1019 = vlog2.pop %v1018
  %v1020 = vmul.f32 %v1019, 0.6931472
  %v1021 = vmul.f32 -0.5, %v886
  %v1022 = vadd.f32 %v1021, 1.0
  %v1023 = vmul.f32 %v1022, %v886
  %v1024 = vand.u32 2147483647, %v886
  %vm1025 = vcmp.lt.f32.partialorder %v1024, 0.0004427343
  %v1026 = vsel %vm1025, %v1023, %v1020
  %v1027 = vadd.f32 %v888, 1.0
  %v1028 = vlog2.pop %v1027
  %v1029 = vmul.f32 %v1028, 0.6931472
  %v1030 = vmul.f32 -0.5, %v888
  %v1031 = vadd.f32 %v1030, 1.0
  %v1032 = vmul.f32 %v1031, %v888
  %v1033 = vand.u32 2147483647, %v888
  %vm1034 = vcmp.lt.f32.partialorder %v1033, 0.0004427343
  %v1035 = vsel %vm1034, %v1032, %v1029
  %v1036 = vadd.f32 %v890, 1.0
  %v1037 = vlog2.pop %v1036
  %v1038 = vmul.f32 %v1037, 0.6931472
  %v1039 = vmul.f32 -0.5, %v890
  %v1040 = vadd.f32 %v1039, 1.0
  %v1041 = vmul.f32 %v1040, %v890
  %v1042 = vand.u32 2147483647, %v890
  %vm1043 = vcmp.lt.f32.partialorder %v1042, 0.0004427343
  %v1044 = vsel %vm1043, %v1041, %v1038
  %v1045 = vadd.f32 %v892, 1.0
  %v1046 = vlog2.pop %v1045
  %v1047 = vmul.f32 %v1046, 0.6931472
  %v1048 = vmul.f32 -0.5, %v892
  %v1049 = vadd.f32 %v1048, 1.0
  %v1050 = vmul.f32 %v1049, %v892
  %v1051 = vand.u32 2147483647, %v892
  %vm1052 = vcmp.lt.f32.partialorder %v1051, 0.0004427343
  %v1053 = vsel %vm1052, %v1050, %v1047
  %v1054 = vadd.f32 %v894, 1.0
  %v1055 = vlog2.pop %v1054
  %v1056 = vmul.f32 %v1055, 0.6931472
  %v1057 = vmul.f32 -0.5, %v894
  %v1058 = vadd.f32 %v1057, 1.0
  %v1059 = vmul.f32 %v1058, %v894
  %v1060 = vand.u32 2147483647, %v894
  %vm1061 = vcmp.lt.f32.partialorder %v1060, 0.0004427343
  %v1062 = vsel %vm1061, %v1059, %v1056
  %v1063 = vadd.f32 %v896, 1.0
  %v1064 = vlog2.pop %v1063
  %v1065 = vmul.f32 %v1064, 0.6931472
  %v1066 = vmul.f32 -0.5, %v896
  %v1067 = vadd.f32 %v1066, 1.0
  %v1068 = vmul.f32 %v1067, %v896
  %v1069 = vand.u32 2147483647, %v896
  %vm1070 = vcmp.lt.f32.partialorder %v1069, 0.0004427343
  %v1071 = vsel %vm1070, %v1068, %v1065
  %v1072 = vadd.f32 %v898, 1.0
  %v1073 = vlog2.pop %v1072
  %v1074 = vmul.f32 %v1073, 0.6931472
  %v1075 = vmul.f32 -0.5, %v898
  %v1076 = vadd.f32 %v1075, 1.0
  %v1077 = vmul.f32 %v1076, %v898
  %v1078 = vand.u32 2147483647, %v898
  %vm1079 = vcmp.lt.f32.partialorder %v1078, 0.0004427343
  %v1080 = vsel %vm1079, %v1077, %v1074
  %v1081 = vadd.f32 %v900, 1.0
  %v1082 = vlog2.pop %v1081
  %v1083 = vmul.f32 %v1082, 0.6931472
  %v1084 = vmul.f32 -0.5, %v900
  %v1085 = vadd.f32 %v1084, 1.0
  %v1086 = vmul.f32 %v1085, %v900
  %v1087 = vand.u32 2147483647, %v900
  %vm1088 = vcmp.lt.f32.partialorder %v1087, 0.0004427343
  %v1089 = vsel %vm1088, %v1086, %v1083
  %v1090 = vadd.f32 %v902, 1.0
  %v1091 = vlog2.pop %v1090
  %v1092 = vmul.f32 %v1091, 0.6931472
  %v1093 = vmul.f32 -0.5, %v902
  %v1094 = vadd.f32 %v1093, 1.0
  %v1095 = vmul.f32 %v1094, %v902
  %v1096 = vand.u32 2147483647, %v902
  %vm1097 = vcmp.lt.f32.partialorder %v1096, 0.0004427343
  %v1098 = vsel %vm1097, %v1095, %v1092
  %v1099 = vadd.f32 %v904, 1.0
  %v1100 = vlog2.pop %v1099
  %v1101 = vmul.f32 %v1100, 0.6931472
  %v1102 = vmul.f32 -0.5, %v904
  %v1103 = vadd.f32 %v1102, 1.0
  %v1104 = vmul.f32 %v1103, %v904
  %v1105 = vand.u32 2147483647, %v904
  %vm1106 = vcmp.lt.f32.partialorder %v1105, 0.0004427343
  %v1107 = vsel %vm1106, %v1104, %v1101
  %v1108 = vadd.f32 %v906, 1.0
  %v1109 = vlog2.pop %v1108
  %v1110 = vmul.f32 %v1109, 0.6931472
  %v1111 = vmul.f32 -0.5, %v906
  %v1112 = vadd.f32 %v1111, 1.0
  %v1113 = vmul.f32 %v1112, %v906
  %v1114 = vand.u32 2147483647, %v906
  %vm1115 = vcmp.lt.f32.partialorder %v1114, 0.0004427343
  %v1116 = vsel %vm1115, %v1113, %v1110
  %v1117 = vadd.f32 %v908, 1.0
  %v1118 = vlog2.pop %v1117
  %v1119 = vmul.f32 %v1118, 0.6931472
  %v1120 = vmul.f32 -0.5, %v908
  %v1121 = vadd.f32 %v1120, 1.0
  %v1122 = vmul.f32 %v1121, %v908
  %v1123 = vand.u32 2147483647, %v908
  %vm1124 = vcmp.lt.f32.partialorder %v1123, 0.0004427343
  %v1125 = vsel %vm1124, %v1122, %v1119
  %v1126 = vadd.f32 %v910, 1.0
  %v1127 = vlog2.pop %v1126
  %v1128 = vmul.f32 %v1127, 0.6931472
  %v1129 = vmul.f32 -0.5, %v910
  %v1130 = vadd.f32 %v1129, 1.0
  %v1131 = vmul.f32 %v1130, %v910
  %v1132 = vand.u32 2147483647, %v910
  %vm1133 = vcmp.lt.f32.partialorder %v1132, 0.0004427343
  %v1134 = vsel %vm1133, %v1131, %v1128
  %v1135 = vadd.f32 %v912, 1.0
  %v1136 = vlog2.pop %v1135
  %v1137 = vmul.f32 %v1136, 0.6931472
  %v1138 = vmul.f32 -0.5, %v912
  %v1139 = vadd.f32 %v1138, 1.0
  %v1140 = vmul.f32 %v1139, %v912
  %v1141 = vand.u32 2147483647, %v912
  %vm1142 = vcmp.lt.f32.partialorder %v1141, 0.0004427343
  %v1143 = vsel %vm1142, %v1140, %v1137
  %v1144 = vadd.f32 %v914, 1.0
  %v1145 = vlog2.pop %v1144
  %v1146 = vmul.f32 %v1145, 0.6931472
  %v1147 = vmul.f32 -0.5, %v914
  %v1148 = vadd.f32 %v1147, 1.0
  %v1149 = vmul.f32 %v1148, %v914
  %v1150 = vand.u32 2147483647, %v914
  %vm1151 = vcmp.lt.f32.partialorder %v1150, 0.0004427343
  %v1152 = vsel %vm1151, %v1149, %v1146
  %v1153 = vadd.f32 %v916, 1.0
  %v1154 = vlog2.pop %v1153
  %v1155 = vmul.f32 %v1154, 0.6931472
  %v1156 = vmul.f32 -0.5, %v916
  %v1157 = vadd.f32 %v1156, 1.0
  %v1158 = vmul.f32 %v1157, %v916
  %v1159 = vand.u32 2147483647, %v916
  %vm1160 = vcmp.lt.f32.partialorder %v1159, 0.0004427343
  %v1161 = vsel %vm1160, %v1158, %v1155
  %v1162 = vadd.f32 %v918, 1.0
  %v1163 = vlog2.pop %v1162
  %v1164 = vmul.f32 %v1163, 0.6931472
  %v1165 = vmul.f32 -0.5, %v918
  %v1166 = vadd.f32 %v1165, 1.0
  %v1167 = vmul.f32 %v1166, %v918
  %v1168 = vand.u32 2147483647, %v918
  %vm1169 = vcmp.lt.f32.partialorder %v1168, 0.0004427343
  %v1170 = vsel %vm1169, %v1167, %v1164
  %v1171 = vadd.f32 %v920, 1.0
  %v1172 = vlog2.pop %v1171
  %v1173 = vmul.f32 %v1172, 0.6931472
  %v1174 = vmul.f32 -0.5, %v920
  %v1175 = vadd.f32 %v1174, 1.0
  %v1176 = vmul.f32 %v1175, %v920
  %v1177 = vand.u32 2147483647, %v920
  %vm1178 = vcmp.lt.f32.partialorder %v1177, 0.0004427343
  %v1179 = vsel %vm1178, %v1176, %v1173
  %v1180 = vadd.f32 %v922, 1.0
  %v1181 = vlog2.pop %v1180
  %v1182 = vmul.f32 %v1181, 0.6931472
  %v1183 = vmul.f32 -0.5, %v922
  %v1184 = vadd.f32 %v1183, 1.0
  %v1185 = vmul.f32 %v1184, %v922
  %v1186 = vand.u32 2147483647, %v922
  %vm1187 = vcmp.lt.f32.partialorder %v1186, 0.0004427343
  %v1188 = vsel %vm1187, %v1185, %v1182
  %v1189 = vadd.f32 %v924, 1.0
  %v1190 = vlog2.pop %v1189
  %v1191 = vmul.f32 %v1190, 0.6931472
  %v1192 = vmul.f32 -0.5, %v924
  %v1193 = vadd.f32 %v1192, 1.0
  %v1194 = vmul.f32 %v1193, %v924
  %v1195 = vand.u32 2147483647, %v924
  %vm1196 = vcmp.lt.f32.partialorder %v1195, 0.0004427343
  %v1197 = vsel %vm1196, %v1194, %v1191
  %v1198 = vadd.f32 %v926, 1.0
  %v1199 = vlog2.pop %v1198
  %v1200 = vmul.f32 %v1199, 0.6931472
  %v1201 = vmul.f32 -0.5, %v926
  %v1202 = vadd.f32 %v1201, 1.0
  %v1203 = vmul.f32 %v1202, %v926
  %v1204 = vand.u32 2147483647, %v926
  %vm1205 = vcmp.lt.f32.partialorder %v1204, 0.0004427343
  %v1206 = vsel %vm1205, %v1203, %v1200
  %v1207 = vadd.f32 %v927, %v963
  %v1208 = vadd.f32 %v928, %v972
  %v1209 = vadd.f32 %v929, %v981
  %v1210 = vadd.f32 %v930, %v990
  %v1211 = vadd.f32 %v931, %v999
  %v1212 = vadd.f32 %v932, %v1008
  %v1213 = vadd.f32 %v933, %v1017
  %v1214 = vadd.f32 %v934, %v1026
  %v1215 = vadd.f32 %v935, %v1035
  %v1216 = vadd.f32 %v936, %v1044
  %v1217 = vadd.f32 %v937, %v1053
  %v1218 = vadd.f32 %v938, %v1062
  %v1219 = vadd.f32 %v939, %v1071
  %v1220 = vadd.f32 %v940, %v1080
  %v1221 = vadd.f32 %v941, %v1089
  %v1222 = vadd.f32 %v942, %v1098
  %v1223 = vadd.f32 %v943, %v1107
  %v1224 = vadd.f32 %v944, %v1116
  %v1225 = vadd.f32 %v945, %v1125
  %v1226 = vadd.f32 %v946, %v1134
  %v1227 = vadd.f32 %v947, %v1143
  %v1228 = vadd.f32 %v948, %v1152
  %v1229 = vadd.f32 %v949, %v1161
  %v1230 = vadd.f32 %v950, %v1170
  %v1231 = vadd.f32 %v951, %v1179
  %v1232 = vadd.f32 %v952, %v1188
  %v1233 = vadd.f32 %v953, %v1197
  %v1234 = vadd.f32 %v954, %v1206
  %v1235 = vand.u32 2147483647, %v787
  %v1236 = vand.u32 2147483647, %v788
  %v1237 = vand.u32 2147483647, %v789
  %v1238 = vand.u32 2147483647, %v790
  %v1239 = vand.u32 2147483647, %v791
  %v1240 = vand.u32 2147483647, %v792
  %v1241 = vand.u32 2147483647, %v793
  %v1242 = vand.u32 2147483647, %v794
  %v1243 = vand.u32 2147483647, %v795
  %v1244 = vand.u32 2147483647, %v796
  %v1245 = vand.u32 2147483647, %v797
  %v1246 = vand.u32 2147483647, %v798
  %v1247 = vand.u32 2147483647, %v799
  %v1248 = vand.u32 2147483647, %v800
  %v1249 = vand.u32 2147483647, %v801
  %v1250 = vand.u32 2147483647, %v802
  %v1251 = vand.u32 2147483647, %v803
  %v1252 = vand.u32 2147483647, %v804
  %v1253 = vand.u32 2147483647, %v805
  %v1254 = vand.u32 2147483647, %v806
  %v1255 = vand.u32 2147483647, %v807
  %v1256 = vand.u32 2147483647, %v808
  %v1257 = vand.u32 2147483647, %v809
  %v1258 = vand.u32 2147483647, %v810
  %v1259 = vand.u32 2147483647, %v811
  %v1260 = vand.u32 2147483647, %v812
  %v1261 = vand.u32 2147483647, %v813
  %v1262 = vand.u32 2147483647, %v814
  %v1263 = vsub.f32 0.0, %v1235
  %v1264 = vsub.f32 0.0, %v1236
  %v1265 = vsub.f32 0.0, %v1237
  %v1266 = vsub.f32 0.0, %v1238
  %v1267 = vsub.f32 0.0, %v1239
  %v1268 = vsub.f32 0.0, %v1240
  %v1269 = vsub.f32 0.0, %v1241
  %v1270 = vsub.f32 0.0, %v1242
  %v1271 = vsub.f32 0.0, %v1243
  %v1272 = vsub.f32 0.0, %v1244
  %v1273 = vsub.f32 0.0, %v1245
  %v1274 = vsub.f32 0.0, %v1246
  %v1275 = vsub.f32 0.0, %v1247
  %v1276 = vsub.f32 0.0, %v1248
  %v1277 = vsub.f32 0.0, %v1249
  %v1278 = vsub.f32 0.0, %v1250
  %v1279 = vsub.f32 0.0, %v1251
  %v1280 = vsub.f32 0.0, %v1252
  %v1281 = vsub.f32 0.0, %v1253
  %v1282 = vsub.f32 0.0, %v1254
  %v1283 = vsub.f32 0.0, %v1255
  %v1284 = vsub.f32 0.0, %v1256
  %v1285 = vsub.f32 0.0, %v1257
  %v1286 = vsub.f32 0.0, %v1258
  %v1287 = vsub.f32 0.0, %v1259
  %v1288 = vsub.f32 0.0, %v1260
  %v1289 = vsub.f32 0.0, %v1261
  %v1290 = vsub.f32 0.0, %v1262
  %v1291 = vmul.f32 %v1263, 1.442695
  %v1292 = vpow.pop %v1291
  %v1293 = vmul.f32 %v1264, 1.442695
  %v1294 = vpow.pop %v1293
  %v1295 = vmul.f32 %v1265, 1.442695
  %v1296 = vpow.pop %v1295
  %v1297 = vmul.f32 %v1266, 1.442695
  %v1298 = vpow.pop %v1297
  %v1299 = vmul.f32 %v1267, 1.442695
  %v1300 = vpow.pop %v1299
  %v1301 = vmul.f32 %v1268, 1.442695
  %v1302 = vpow.pop %v1301
  %v1303 = vmul.f32 %v1269, 1.442695
  %v1304 = vpow.pop %v1303
  %v1305 = vmul.f32 %v1270, 1.442695
  %v1306 = vpow.pop %v1305
  %v1307 = vmul.f32 %v1271, 1.442695
  %v1308 = vpow.pop %v1307
  %v1309 = vmul.f32 %v1272, 1.442695
  %v1310 = vpow.pop %v1309
  %v1311 = vmul.f32 %v1273, 1.442695
  %v1312 = vpow.pop %v1311
  %v1313 = vmul.f32 %v1274, 1.442695
  %v1314 = vpow.pop %v1313
  %v1315 = vmul.f32 %v1275, 1.442695
  %v1316 = vpow.pop %v1315
  %v1317 = vmul.f32 %v1276, 1.442695
  %v1318 = vpow.pop %v1317
  %v1319 = vmul.f32 %v1277, 1.442695
  %v1320 = vpow.pop %v1319
  %v1321 = vmul.f32 %v1278, 1.442695
  %v1322 = vpow.pop %v1321
  %v1323 = vmul.f32 %v1279, 1.442695
  %v1324 = vpow.pop %v1323
  %v1325 = vmul.f32 %v1280, 1.442695
  %v1326 = vpow.pop %v1325
  %v1327 = vmul.f32 %v1281, 1.442695
  %v1328 = vpow.pop %v1327
  %v1329 = vmul.f32 %v1282, 1.442695
  %v1330 = vpow.pop %v1329
  %v1331 = vmul.f32 %v1283, 1.442695
  %v1332 = vpow.pop %v1331
  %v1333 = vmul.f32 %v1284, 1.442695
  %v1334 = vpow.pop %v1333
  %v1335 = vmul.f32 %v1285, 1.442695
  %v1336 = vpow.pop %v1335
  %v1337 = vmul.f32 %v1286, 1.442695
  %v1338 = vpow.pop %v1337
  %v1339 = vmul.f32 %v1287, 1.442695
  %v1340 = vpow.pop %v1339
  %v1341 = vmul.f32 %v1288, 1.442695
  %v1342 = vpow.pop %v1341
  %v1343 = vmul.f32 %v1289, 1.442695
  %v1344 = vpow.pop %v1343
  %v1345 = vmul.f32 %v1290, 1.442695
  %v1346 = vpow.pop %v1345
  %v1347 = vmax.f32 %v787, 0.0
  %v1348 = vmax.f32 %v788, 0.0
  %v1349 = vmax.f32 %v789, 0.0
  %v1350 = vmax.f32 %v790, 0.0
  %v1351 = vmax.f32 %v791, 0.0
  %v1352 = vmax.f32 %v792, 0.0
  %v1353 = vmax.f32 %v793, 0.0
  %v1354 = vmax.f32 %v794, 0.0
  %v1355 = vmax.f32 %v795, 0.0
  %v1356 = vmax.f32 %v796, 0.0
  %v1357 = vmax.f32 %v797, 0.0
  %v1358 = vmax.f32 %v798, 0.0
  %v1359 = vmax.f32 %v799, 0.0
  %v1360 = vmax.f32 %v800, 0.0
  %v1361 = vmax.f32 %v801, 0.0
  %v1362 = vmax.f32 %v802, 0.0
  %v1363 = vmax.f32 %v803, 0.0
  %v1364 = vmax.f32 %v804, 0.0
  %v1365 = vmax.f32 %v805, 0.0
  %v1366 = vmax.f32 %v806, 0.0
  %v1367 = vmax.f32 %v807, 0.0
  %v1368 = vmax.f32 %v808, 0.0
  %v1369 = vmax.f32 %v809, 0.0
  %v1370 = vmax.f32 %v810, 0.0
  %v1371 = vmax.f32 %v811, 0.0
  %v1372 = vmax.f32 %v812, 0.0
  %v1373 = vmax.f32 %v813, 0.0
  %v1374 = vmax.f32 %v814, 0.0
  %v1375 = vadd.f32 %v1292, 1.0
  %v1376 = vlog2.pop %v1375
  %v1377 = vmul.f32 %v1376, 0.6931472
  %v1378 = vmul.f32 -0.5, %v1292
  %v1379 = vadd.f32 %v1378, 1.0
  %v1380 = vmul.f32 %v1379, %v1292
  %v1381 = vand.u32 2147483647, %v1292
  %vm1382 = vcmp.lt.f32.partialorder %v1381, 0.0004427343
  %v1383 = vsel %vm1382, %v1380, %v1377
  %v1384 = vadd.f32 %v1294, 1.0
  %v1385 = vlog2.pop %v1384
  %v1386 = vmul.f32 %v1385, 0.6931472
  %v1387 = vmul.f32 -0.5, %v1294
  %v1388 = vadd.f32 %v1387, 1.0
  %v1389 = vmul.f32 %v1388, %v1294
  %v1390 = vand.u32 2147483647, %v1294
  %vm1391 = vcmp.lt.f32.partialorder %v1390, 0.0004427343
  %v1392 = vsel %vm1391, %v1389, %v1386
  %v1393 = vadd.f32 %v1296, 1.0
  %v1394 = vlog2.pop %v1393
  %v1395 = vmul.f32 %v1394, 0.6931472
  %v1396 = vmul.f32 -0.5, %v1296
  %v1397 = vadd.f32 %v1396, 1.0
  %v1398 = vmul.f32 %v1397, %v1296
  %v1399 = vand.u32 2147483647, %v1296
  %vm1400 = vcmp.lt.f32.partialorder %v1399, 0.0004427343
  %v1401 = vsel %vm1400, %v1398, %v1395
  %v1402 = vadd.f32 %v1298, 1.0
  %v1403 = vlog2.pop %v1402
  %v1404 = vmul.f32 %v1403, 0.6931472
  %v1405 = vmul.f32 -0.5, %v1298
  %v1406 = vadd.f32 %v1405, 1.0
  %v1407 = vmul.f32 %v1406, %v1298
  %v1408 = vand.u32 2147483647, %v1298
  %vm1409 = vcmp.lt.f32.partialorder %v1408, 0.0004427343
  %v1410 = vsel %vm1409, %v1407, %v1404
  %v1411 = vadd.f32 %v1300, 1.0
  %v1412 = vlog2.pop %v1411
  %v1413 = vmul.f32 %v1412, 0.6931472
  %v1414 = vmul.f32 -0.5, %v1300
  %v1415 = vadd.f32 %v1414, 1.0
  %v1416 = vmul.f32 %v1415, %v1300
  %v1417 = vand.u32 2147483647, %v1300
  %vm1418 = vcmp.lt.f32.partialorder %v1417, 0.0004427343
  %v1419 = vsel %vm1418, %v1416, %v1413
  %v1420 = vadd.f32 %v1302, 1.0
  %v1421 = vlog2.pop %v1420
  %v1422 = vmul.f32 %v1421, 0.6931472
  %v1423 = vmul.f32 -0.5, %v1302
  %v1424 = vadd.f32 %v1423, 1.0
  %v1425 = vmul.f32 %v1424, %v1302
  %v1426 = vand.u32 2147483647, %v1302
  %vm1427 = vcmp.lt.f32.partialorder %v1426, 0.0004427343
  %v1428 = vsel %vm1427, %v1425, %v1422
  %v1429 = vadd.f32 %v1304, 1.0
  %v1430 = vlog2.pop %v1429
  %v1431 = vmul.f32 %v1430, 0.6931472
  %v1432 = vmul.f32 -0.5, %v1304
  %v1433 = vadd.f32 %v1432, 1.0
  %v1434 = vmul.f32 %v1433, %v1304
  %v1435 = vand.u32 2147483647, %v1304
  %vm1436 = vcmp.lt.f32.partialorder %v1435, 0.0004427343
  %v1437 = vsel %vm1436, %v1434, %v1431
  %v1438 = vadd.f32 %v1306, 1.0
  %v1439 = vlog2.pop %v1438
  %v1440 = vmul.f32 %v1439, 0.6931472
  %v1441 = vmul.f32 -0.5, %v1306
  %v1442 = vadd.f32 %v1441, 1.0
  %v1443 = vmul.f32 %v1442, %v1306
  %v1444 = vand.u32 2147483647, %v1306
  %vm1445 = vcmp.lt.f32.partialorder %v1444, 0.0004427343
  %v1446 = vsel %vm1445, %v1443, %v1440
  %v1447 = vadd.f32 %v1308, 1.0
  %v1448 = vlog2.pop %v1447
  %v1449 = vmul.f32 %v1448, 0.6931472
  %v1450 = vmul.f32 -0.5, %v1308
  %v1451 = vadd.f32 %v1450, 1.0
  %v1452 = vmul.f32 %v1451, %v1308
  %v1453 = vand.u32 2147483647, %v1308
  %vm1454 = vcmp.lt.f32.partialorder %v1453, 0.0004427343
  %v1455 = vsel %vm1454, %v1452, %v1449
  %v1456 = vadd.f32 %v1310, 1.0
  %v1457 = vlog2.pop %v1456
  %v1458 = vmul.f32 %v1457, 0.6931472
  %v1459 = vmul.f32 -0.5, %v1310
  %v1460 = vadd.f32 %v1459, 1.0
  %v1461 = vmul.f32 %v1460, %v1310
  %v1462 = vand.u32 2147483647, %v1310
  %vm1463 = vcmp.lt.f32.partialorder %v1462, 0.0004427343
  %v1464 = vsel %vm1463, %v1461, %v1458
  %v1465 = vadd.f32 %v1312, 1.0
  %v1466 = vlog2.pop %v1465
  %v1467 = vmul.f32 %v1466, 0.6931472
  %v1468 = vmul.f32 -0.5, %v1312
  %v1469 = vadd.f32 %v1468, 1.0
  %v1470 = vmul.f32 %v1469, %v1312
  %v1471 = vand.u32 2147483647, %v1312
  %vm1472 = vcmp.lt.f32.partialorder %v1471, 0.0004427343
  %v1473 = vsel %vm1472, %v1470, %v1467
  %v1474 = vadd.f32 %v1314, 1.0
  %v1475 = vlog2.pop %v1474
  %v1476 = vmul.f32 %v1475, 0.6931472
  %v1477 = vmul.f32 -0.5, %v1314
  %v1478 = vadd.f32 %v1477, 1.0
  %v1479 = vmul.f32 %v1478, %v1314
  %v1480 = vand.u32 2147483647, %v1314
  %vm1481 = vcmp.lt.f32.partialorder %v1480, 0.0004427343
  %v1482 = vsel %vm1481, %v1479, %v1476
  %v1483 = vadd.f32 %v1316, 1.0
  %v1484 = vlog2.pop %v1483
  %v1485 = vmul.f32 %v1484, 0.6931472
  %v1486 = vmul.f32 -0.5, %v1316
  %v1487 = vadd.f32 %v1486, 1.0
  %v1488 = vmul.f32 %v1487, %v1316
  %v1489 = vand.u32 2147483647, %v1316
  %vm1490 = vcmp.lt.f32.partialorder %v1489, 0.0004427343
  %v1491 = vsel %vm1490, %v1488, %v1485
  %v1492 = vadd.f32 %v1318, 1.0
  %v1493 = vlog2.pop %v1492
  %v1494 = vmul.f32 %v1493, 0.6931472
  %v1495 = vmul.f32 -0.5, %v1318
  %v1496 = vadd.f32 %v1495, 1.0
  %v1497 = vmul.f32 %v1496, %v1318
  %v1498 = vand.u32 2147483647, %v1318
  %vm1499 = vcmp.lt.f32.partialorder %v1498, 0.0004427343
  %v1500 = vsel %vm1499, %v1497, %v1494
  %v1501 = vadd.f32 %v1320, 1.0
  %v1502 = vlog2.pop %v1501
  %v1503 = vmul.f32 %v1502, 0.6931472
  %v1504 = vmul.f32 -0.5, %v1320
  %v1505 = vadd.f32 %v1504, 1.0
  %v1506 = vmul.f32 %v1505, %v1320
  %v1507 = vand.u32 2147483647, %v1320
  %vm1508 = vcmp.lt.f32.partialorder %v1507, 0.0004427343
  %v1509 = vsel %vm1508, %v1506, %v1503
  %v1510 = vadd.f32 %v1322, 1.0
  %v1511 = vlog2.pop %v1510
  %v1512 = vmul.f32 %v1511, 0.6931472
  %v1513 = vmul.f32 -0.5, %v1322
  %v1514 = vadd.f32 %v1513, 1.0
  %v1515 = vmul.f32 %v1514, %v1322
  %v1516 = vand.u32 2147483647, %v1322
  %vm1517 = vcmp.lt.f32.partialorder %v1516, 0.0004427343
  %v1518 = vsel %vm1517, %v1515, %v1512
  %v1519 = vadd.f32 %v1324, 1.0
  %v1520 = vlog2.pop %v1519
  %v1521 = vmul.f32 %v1520, 0.6931472
  %v1522 = vmul.f32 -0.5, %v1324
  %v1523 = vadd.f32 %v1522, 1.0
  %v1524 = vmul.f32 %v1523, %v1324
  %v1525 = vand.u32 2147483647, %v1324
  %vm1526 = vcmp.lt.f32.partialorder %v1525, 0.0004427343
  %v1527 = vsel %vm1526, %v1524, %v1521
  %v1528 = vadd.f32 %v1326, 1.0
  %v1529 = vlog2.pop %v1528
  %v1530 = vmul.f32 %v1529, 0.6931472
  %v1531 = vmul.f32 -0.5, %v1326
  %v1532 = vadd.f32 %v1531, 1.0
  %v1533 = vmul.f32 %v1532, %v1326
  %v1534 = vand.u32 2147483647, %v1326
  %vm1535 = vcmp.lt.f32.partialorder %v1534, 0.0004427343
  %v1536 = vsel %vm1535, %v1533, %v1530
  %v1537 = vadd.f32 %v1328, 1.0
  %v1538 = vlog2.pop %v1537
  %v1539 = vmul.f32 %v1538, 0.6931472
  %v1540 = vmul.f32 -0.5, %v1328
  %v1541 = vadd.f32 %v1540, 1.0
  %v1542 = vmul.f32 %v1541, %v1328
  %v1543 = vand.u32 2147483647, %v1328
  %vm1544 = vcmp.lt.f32.partialorder %v1543, 0.0004427343
  %v1545 = vsel %vm1544, %v1542, %v1539
  %v1546 = vadd.f32 %v1330, 1.0
  %v1547 = vlog2.pop %v1546
  %v1548 = vmul.f32 %v1547, 0.6931472
  %v1549 = vmul.f32 -0.5, %v1330
  %v1550 = vadd.f32 %v1549, 1.0
  %v1551 = vmul.f32 %v1550, %v1330
  %v1552 = vand.u32 2147483647, %v1330
  %vm1553 = vcmp.lt.f32.partialorder %v1552, 0.0004427343
  %v1554 = vsel %vm1553, %v1551, %v1548
  %v1555 = vadd.f32 %v1332, 1.0
  %v1556 = vlog2.pop %v1555
  %v1557 = vmul.f32 %v1556, 0.6931472
  %v1558 = vmul.f32 -0.5, %v1332
  %v1559 = vadd.f32 %v1558, 1.0
  %v1560 = vmul.f32 %v1559, %v1332
  %v1561 = vand.u32 2147483647, %v1332
  %vm1562 = vcmp.lt.f32.partialorder %v1561, 0.0004427343
  %v1563 = vsel %vm1562, %v1560, %v1557
  %v1564 = vadd.f32 %v1334, 1.0
  %v1565 = vlog2.pop %v1564
  %v1566 = vmul.f32 %v1565, 0.6931472
  %v1567 = vmul.f32 -0.5, %v1334
  %v1568 = vadd.f32 %v1567, 1.0
  %v1569 = vmul.f32 %v1568, %v1334
  %v1570 = vand.u32 2147483647, %v1334
  %vm1571 = vcmp.lt.f32.partialorder %v1570, 0.0004427343
  %v1572 = vsel %vm1571, %v1569, %v1566
  %v1573 = vadd.f32 %v1336, 1.0
  %v1574 = vlog2.pop %v1573
  %v1575 = vmul.f32 %v1574, 0.6931472
  %v1576 = vmul.f32 -0.5, %v1336
  %v1577 = vadd.f32 %v1576, 1.0
  %v1578 = vmul.f32 %v1577, %v1336
  %v1579 = vand.u32 2147483647, %v1336
  %vm1580 = vcmp.lt.f32.partialorder %v1579, 0.0004427343
  %v1581 = vsel %vm1580, %v1578, %v1575
  %v1582 = vadd.f32 %v1338, 1.0
  %v1583 = vlog2.pop %v1582
  %v1584 = vmul.f32 %v1583, 0.6931472
  %v1585 = vmul.f32 -0.5, %v1338
  %v1586 = vadd.f32 %v1585, 1.0
  %v1587 = vmul.f32 %v1586, %v1338
  %v1588 = vand.u32 2147483647, %v1338
  %vm1589 = vcmp.lt.f32.partialorder %v1588, 0.0004427343
  %v1590 = vsel %vm1589, %v1587, %v1584
  %v1591 = vadd.f32 %v1340, 1.0
  %v1592 = vlog2.pop %v1591
  %v1593 = vmul.f32 %v1592, 0.6931472
  %v1594 = vmul.f32 -0.5, %v1340
  %v1595 = vadd.f32 %v1594, 1.0
  %v1596 = vmul.f32 %v1595, %v1340
  %v1597 = vand.u32 2147483647, %v1340
  %vm1598 = vcmp.lt.f32.partialorder %v1597, 0.0004427343
  %v1599 = vsel %vm1598, %v1596, %v1593
  %v1600 = vadd.f32 %v1342, 1.0
  %v1601 = vlog2.pop %v1600
  %v1602 = vmul.f32 %v1601, 0.6931472
  %v1603 = vmul.f32 -0.5, %v1342
  %v1604 = vadd.f32 %v1603, 1.0
  %v1605 = vmul.f32 %v1604, %v1342
  %v1606 = vand.u32 2147483647, %v1342
  %vm1607 = vcmp.lt.f32.partialorder %v1606, 0.0004427343
  %v1608 = vsel %vm1607, %v1605, %v1602
  %v1609 = vadd.f32 %v1344, 1.0
  %v1610 = vlog2.pop %v1609
  %v1611 = vmul.f32 %v1610, 0.6931472
  %v1612 = vmul.f32 -0.5, %v1344
  %v1613 = vadd.f32 %v1612, 1.0
  %v1614 = vmul.f32 %v1613, %v1344
  %v1615 = vand.u32 2147483647, %v1344
  %vm1616 = vcmp.lt.f32.partialorder %v1615, 0.0004427343
  %v1617 = vsel %vm1616, %v1614, %v1611
  %v1618 = vadd.f32 %v1346, 1.0
  %v1619 = vlog2.pop %v1618
  %v1620 = vmul.f32 %v1619, 0.6931472
  %v1621 = vmul.f32 -0.5, %v1346
  %v1622 = vadd.f32 %v1621, 1.0
  %v1623 = vmul.f32 %v1622, %v1346
  %v1624 = vand.u32 2147483647, %v1346
  %vm1625 = vcmp.lt.f32.partialorder %v1624, 0.0004427343
  %v1626 = vsel %vm1625, %v1623, %v1620
  %v1627 = vadd.f32 %v1347, %v1383
  %v1628 = vadd.f32 %v1348, %v1392
  %v1629 = vadd.f32 %v1349, %v1401
  %v1630 = vadd.f32 %v1350, %v1410
  %v1631 = vadd.f32 %v1351, %v1419
  %v1632 = vadd.f32 %v1352, %v1428
  %v1633 = vadd.f32 %v1353, %v1437
  %v1634 = vadd.f32 %v1354, %v1446
  %v1635 = vadd.f32 %v1355, %v1455
  %v1636 = vadd.f32 %v1356, %v1464
  %v1637 = vadd.f32 %v1357, %v1473
  %v1638 = vadd.f32 %v1358, %v1482
  %v1639 = vadd.f32 %v1359, %v1491
  %v1640 = vadd.f32 %v1360, %v1500
  %v1641 = vadd.f32 %v1361, %v1509
  %v1642 = vadd.f32 %v1362, %v1518
  %v1643 = vadd.f32 %v1363, %v1527
  %v1644 = vadd.f32 %v1364, %v1536
  %v1645 = vadd.f32 %v1365, %v1545
  %v1646 = vadd.f32 %v1366, %v1554
  %v1647 = vadd.f32 %v1367, %v1563
  %v1648 = vadd.f32 %v1368, %v1572
  %v1649 = vadd.f32 %v1369, %v1581
  %v1650 = vadd.f32 %v1370, %v1590
  %v1651 = vadd.f32 %v1371, %v1599
  %v1652 = vadd.f32 %v1372, %v1608
  %v1653 = vadd.f32 %v1373, %v1617
  %v1654 = vadd.f32 %v1374, %v1626
  %vm1655 = vcmp.ge.f32.partialorder %v759, 0.0
  %vm1656 = vcmp.ge.f32.partialorder %v760, 0.0
  %vm1657 = vcmp.ge.f32.partialorder %v761, 0.0
  %vm1658 = vcmp.ge.f32.partialorder %v762, 0.0
  %vm1659 = vcmp.ge.f32.partialorder %v763, 0.0
  %vm1660 = vcmp.ge.f32.partialorder %v764, 0.0
  %vm1661 = vcmp.ge.f32.partialorder %v765, 0.0
  %vm1662 = vcmp.ge.f32.partialorder %v766, 0.0
  %vm1663 = vcmp.ge.f32.partialorder %v767, 0.0
  %vm1664 = vcmp.ge.f32.partialorder %v768, 0.0
  %vm1665 = vcmp.ge.f32.partialorder %v769, 0.0
  %vm1666 = vcmp.ge.f32.partialorder %v770, 0.0
  %vm1667 = vcmp.ge.f32.partialorder %v771, 0.0
  %vm1668 = vcmp.ge.f32.partialorder %v772, 0.0
  %vm1669 = vcmp.ge.f32.partialorder %v773, 0.0
  %vm1670 = vcmp.ge.f32.partialorder %v774, 0.0
  %vm1671 = vcmp.ge.f32.partialorder %v775, 0.0
  %vm1672 = vcmp.ge.f32.partialorder %v776, 0.0
  %vm1673 = vcmp.ge.f32.partialorder %v777, 0.0
  %vm1674 = vcmp.ge.f32.partialorder %v778, 0.0
  %vm1675 = vcmp.ge.f32.partialorder %v779, 0.0
  %vm1676 = vcmp.ge.f32.partialorder %v780, 0.0
  %vm1677 = vcmp.ge.f32.partialorder %v781, 0.0
  %vm1678 = vcmp.ge.f32.partialorder %v782, 0.0
  %vm1679 = vcmp.ge.f32.partialorder %v783, 0.0
  %vm1680 = vcmp.ge.f32.partialorder %v784, 0.0
  %vm1681 = vcmp.ge.f32.partialorder %v785, 0.0
  %vm1682 = vcmp.ge.f32.partialorder %v786, 0.0
  %v1683 = vsel %vm1655, 1.0, %v872
  %v1684 = vsel %vm1656, 1.0, %v874
  %v1685 = vsel %vm1657, 1.0, %v876
  %v1686 = vsel %vm1658, 1.0, %v878
  %v1687 = vsel %vm1659, 1.0, %v880
  %v1688 = vsel %vm1660, 1.0, %v882
  %v1689 = vsel %vm1661, 1.0, %v884
  %v1690 = vsel %vm1662, 1.0, %v886
  %v1691 = vsel %vm1663, 1.0, %v888
  %v1692 = vsel %vm1664, 1.0, %v890
  %v1693 = vsel %vm1665, 1.0, %v892
  %v1694 = vsel %vm1666, 1.0, %v894
  %v1695 = vsel %vm1667, 1.0, %v896
  %v1696 = vsel %vm1668, 1.0, %v898
  %v1697 = vsel %vm1669, 1.0, %v900
  %v1698 = vsel %vm1670, 1.0, %v902
  %v1699 = vsel %vm1671, 1.0, %v904
  %v1700 = vsel %vm1672, 1.0, %v906
  %v1701 = vsel %vm1673, 1.0, %v908
  %v1702 = vsel %vm1674, 1.0, %v910
  %v1703 = vsel %vm1675, 1.0, %v912
  %v1704 = vsel %vm1676, 1.0, %v914
  %v1705 = vsel %vm1677, 1.0, %v916
  %v1706 = vsel %vm1678, 1.0, %v918
  %v1707 = vsel %vm1679, 1.0, %v920
  %v1708 = vsel %vm1680, 1.0, %v922
  %v1709 = vsel %vm1681, 1.0, %v924
  %v1710 = vsel %vm1682, 1.0, %v926
  %v1711 = vadd.f32 %v872, 1.0
  %v1712 = vadd.f32 %v874, 1.0
  %v1713 = vadd.f32 %v876, 1.0
  %v1714 = vadd.f32 %v878, 1.0
  %v1715 = vadd.f32 %v880, 1.0
  %v1716 = vadd.f32 %v882, 1.0
  %v1717 = vadd.f32 %v884, 1.0
  %v1718 = vadd.f32 %v886, 1.0
  %v1719 = vadd.f32 %v888, 1.0
  %v1720 = vadd.f32 %v890, 1.0
  %v1721 = vadd.f32 %v892, 1.0
  %v1722 = vadd.f32 %v894, 1.0
  %v1723 = vadd.f32 %v896, 1.0
  %v1724 = vadd.f32 %v898, 1.0
  %v1725 = vadd.f32 %v900, 1.0
  %v1726 = vadd.f32 %v902, 1.0
  %v1727 = vadd.f32 %v904, 1.0
  %v1728 = vadd.f32 %v906, 1.0
  %v1729 = vadd.f32 %v908, 1.0
  %v1730 = vadd.f32 %v910, 1.0
  %v1731 = vadd.f32 %v912, 1.0
  %v1732 = vadd.f32 %v914, 1.0
  %v1733 = vadd.f32 %v916, 1.0
  %v1734 = vadd.f32 %v918, 1.0
  %v1735 = vadd.f32 %v920, 1.0
  %v1736 = vadd.f32 %v922, 1.0
  %v1737 = vadd.f32 %v924, 1.0
  %v1738 = vadd.f32 %v926, 1.0
  %v1739 = vrcp.pop %v1711
  %v1740 = vmul.f32 %v1683, %v1739
  %v1741 = vrcp.pop %v1712
  %v1742 = vmul.f32 %v1684, %v1741
  %v1743 = vrcp.pop %v1713
  %v1744 = vmul.f32 %v1685, %v1743
  %v1745 = vrcp.pop %v1714
  %v1746 = vmul.f32 %v1686, %v1745
  %v1747 = vrcp.pop %v1715
  %v1748 = vmul.f32 %v1687, %v1747
  %v1749 = vrcp.pop %v1716
  %v1750 = vmul.f32 %v1688, %v1749
  %v1751 = vrcp.pop %v1717
  %v1752 = vmul.f32 %v1689, %v1751
  %v1753 = vrcp.pop %v1718
  %v1754 = vmul.f32 %v1690, %v1753
  %v1755 = vrcp.pop %v1719
  %v1756 = vmul.f32 %v1691, %v1755
  %v1757 = vrcp.pop %v1720
  %v1758 = vmul.f32 %v1692, %v1757
  %v1759 = vrcp.pop %v1721
  %v1760 = vmul.f32 %v1693, %v1759
  %v1761 = vrcp.pop %v1722
  %v1762 = vmul.f32 %v1694, %v1761
  %v1763 = vrcp.pop %v1723
  %v1764 = vmul.f32 %v1695, %v1763
  %v1765 = vrcp.pop %v1724
  %v1766 = vmul.f32 %v1696, %v1765
  %v1767 = vrcp.pop %v1725
  %v1768 = vmul.f32 %v1697, %v1767
  %v1769 = vrcp.pop %v1726
  %v1770 = vmul.f32 %v1698, %v1769
  %v1771 = vrcp.pop %v1727
  %v1772 = vmul.f32 %v1699, %v1771
  %v1773 = vrcp.pop %v1728
  %v1774 = vmul.f32 %v1700, %v1773
  %v1775 = vrcp.pop %v1729
  %v1776 = vmul.f32 %v1701, %v1775
  %v1777 = vrcp.pop %v1730
  %v1778 = vmul.f32 %v1702, %v1777
  %v1779 = vrcp.pop %v1731
  %v1780 = vmul.f32 %v1703, %v1779
  %v1781 = vrcp.pop %v1732
  %v1782 = vmul.f32 %v1704, %v1781
  %v1783 = vrcp.pop %v1733
  %v1784 = vmul.f32 %v1705, %v1783
  %v1785 = vrcp.pop %v1734
  %v1786 = vmul.f32 %v1706, %v1785
  %v1787 = vrcp.pop %v1735
  %v1788 = vmul.f32 %v1707, %v1787
  %v1789 = vrcp.pop %v1736
  %v1790 = vmul.f32 %v1708, %v1789
  %v1791 = vrcp.pop %v1737
  %v1792 = vmul.f32 %v1709, %v1791
  %v1793 = vrcp.pop %v1738
  %v1794 = vmul.f32 %v1710, %v1793
  %vm1795 = vcmp.ge.f32.partialorder %v787, 0.0
  %vm1796 = vcmp.ge.f32.partialorder %v788, 0.0
  %vm1797 = vcmp.ge.f32.partialorder %v789, 0.0
  %vm1798 = vcmp.ge.f32.partialorder %v790, 0.0
  %vm1799 = vcmp.ge.f32.partialorder %v791, 0.0
  %vm1800 = vcmp.ge.f32.partialorder %v792, 0.0
  %vm1801 = vcmp.ge.f32.partialorder %v793, 0.0
  %vm1802 = vcmp.ge.f32.partialorder %v794, 0.0
  %vm1803 = vcmp.ge.f32.partialorder %v795, 0.0
  %vm1804 = vcmp.ge.f32.partialorder %v796, 0.0
  %vm1805 = vcmp.ge.f32.partialorder %v797, 0.0
  %vm1806 = vcmp.ge.f32.partialorder %v798, 0.0
  %vm1807 = vcmp.ge.f32.partialorder %v799, 0.0
  %vm1808 = vcmp.ge.f32.partialorder %v800, 0.0
  %vm1809 = vcmp.ge.f32.partialorder %v801, 0.0
  %vm1810 = vcmp.ge.f32.partialorder %v802, 0.0
  %vm1811 = vcmp.ge.f32.partialorder %v803, 0.0
  %vm1812 = vcmp.ge.f32.partialorder %v804, 0.0
  %vm1813 = vcmp.ge.f32.partialorder %v805, 0.0
  %vm1814 = vcmp.ge.f32.partialorder %v806, 0.0
  %vm1815 = vcmp.ge.f32.partialorder %v807, 0.0
  %vm1816 = vcmp.ge.f32.partialorder %v808, 0.0
  %vm1817 = vcmp.ge.f32.partialorder %v809, 0.0
  %vm1818 = vcmp.ge.f32.partialorder %v810, 0.0
  %vm1819 = vcmp.ge.f32.partialorder %v811, 0.0
  %vm1820 = vcmp.ge.f32.partialorder %v812, 0.0
  %vm1821 = vcmp.ge.f32.partialorder %v813, 0.0
  %vm1822 = vcmp.ge.f32.partialorder %v814, 0.0
  %v1823 = vsel %vm1795, 1.0, %v1292
  %v1824 = vsel %vm1796, 1.0, %v1294
  %v1825 = vsel %vm1797, 1.0, %v1296
  %v1826 = vsel %vm1798, 1.0, %v1298
  %v1827 = vsel %vm1799, 1.0, %v1300
  %v1828 = vsel %vm1800, 1.0, %v1302
  %v1829 = vsel %vm1801, 1.0, %v1304
  %v1830 = vsel %vm1802, 1.0, %v1306
  %v1831 = vsel %vm1803, 1.0, %v1308
  %v1832 = vsel %vm1804, 1.0, %v1310
  %v1833 = vsel %vm1805, 1.0, %v1312
  %v1834 = vsel %vm1806, 1.0, %v1314
  %v1835 = vsel %vm1807, 1.0, %v1316
  %v1836 = vsel %vm1808, 1.0, %v1318
  %v1837 = vsel %vm1809, 1.0, %v1320
  %v1838 = vsel %vm1810, 1.0, %v1322
  %v1839 = vsel %vm1811, 1.0, %v1324
  %v1840 = vsel %vm1812, 1.0, %v1326
  %v1841 = vsel %vm1813, 1.0, %v1328
  %v1842 = vsel %vm1814, 1.0, %v1330
  %v1843 = vsel %vm1815, 1.0, %v1332
  %v1844 = vsel %vm1816, 1.0, %v1334
  %v1845 = vsel %vm1817, 1.0, %v1336
  %v1846 = vsel %vm1818, 1.0, %v1338
  %v1847 = vsel %vm1819, 1.0, %v1340
  %v1848 = vsel %vm1820, 1.0, %v1342
  %v1849 = vsel %vm1821, 1.0, %v1344
  %v1850 = vsel %vm1822, 1.0, %v1346
  %v1851 = vadd.f32 %v1292, 1.0
  %v1852 = vadd.f32 %v1294, 1.0
  %v1853 = vadd.f32 %v1296, 1.0
  %v1854 = vadd.f32 %v1298, 1.0
  %v1855 = vadd.f32 %v1300, 1.0
  %v1856 = vadd.f32 %v1302, 1.0
  %v1857 = vadd.f32 %v1304, 1.0
  %v1858 = vadd.f32 %v1306, 1.0
  %v1859 = vadd.f32 %v1308, 1.0
  %v1860 = vadd.f32 %v1310, 1.0
  %v1861 = vadd.f32 %v1312, 1.0
  %v1862 = vadd.f32 %v1314, 1.0
  %v1863 = vadd.f32 %v1316, 1.0
  %v1864 = vadd.f32 %v1318, 1.0
  %v1865 = vadd.f32 %v1320, 1.0
  %v1866 = vadd.f32 %v1322, 1.0
  %v1867 = vadd.f32 %v1324, 1.0
  %v1868 = vadd.f32 %v1326, 1.0
  %v1869 = vadd.f32 %v1328, 1.0
  %v1870 = vadd.f32 %v1330, 1.0
  %v1871 = vadd.f32 %v1332, 1.0
  %v1872 = vadd.f32 %v1334, 1.0
  %v1873 = vadd.f32 %v1336, 1.0
  %v1874 = vadd.f32 %v1338, 1.0
  %v1875 = vadd.f32 %v1340, 1.0
  %v1876 = vadd.f32 %v1342, 1.0
  %v1877 = vadd.f32 %v1344, 1.0
  %v1878 = vadd.f32 %v1346, 1.0
  %v1879 = vrcp.pop %v1851
  %v1880 = vmul.f32 %v1823, %v1879
  %v1881 = vrcp.pop %v1852
  %v1882 = vmul.f32 %v1824, %v1881
  %v1883 = vrcp.pop %v1853
  %v1884 = vmul.f32 %v1825, %v1883
  %v1885 = vrcp.pop %v1854
  %v1886 = vmul.f32 %v1826, %v1885
  %v1887 = vrcp.pop %v1855
  %v1888 = vmul.f32 %v1827, %v1887
  %v1889 = vrcp.pop %v1856
  %v1890 = vmul.f32 %v1828, %v1889
  %v1891 = vrcp.pop %v1857
  %v1892 = vmul.f32 %v1829, %v1891
  %v1893 = vrcp.pop %v1858
  %v1894 = vmul.f32 %v1830, %v1893
  %v1895 = vrcp.pop %v1859
  %v1896 = vmul.f32 %v1831, %v1895
  %v1897 = vrcp.pop %v1860
  %v1898 = vmul.f32 %v1832, %v1897
  %v1899 = vrcp.pop %v1861
  %v1900 = vmul.f32 %v1833, %v1899
  %v1901 = vrcp.pop %v1862
  %v1902 = vmul.f32 %v1834, %v1901
  %v1903 = vrcp.pop %v1863
  %v1904 = vmul.f32 %v1835, %v1903
  %v1905 = vrcp.pop %v1864
  %v1906 = vmul.f32 %v1836, %v1905
  %v1907 = vrcp.pop %v1865
  %v1908 = vmul.f32 %v1837, %v1907
  %v1909 = vrcp.pop %v1866
  %v1910 = vmul.f32 %v1838, %v1909
  %v1911 = vrcp.pop %v1867
  %v1912 = vmul.f32 %v1839, %v1911
  %v1913 = vrcp.pop %v1868
  %v1914 = vmul.f32 %v1840, %v1913
  %v1915 = vrcp.pop %v1869
  %v1916 = vmul.f32 %v1841, %v1915
  %v1917 = vrcp.pop %v1870
  %v1918 = vmul.f32 %v1842, %v1917
  %v1919 = vrcp.pop %v1871
  %v1920 = vmul.f32 %v1843, %v1919
  %v1921 = vrcp.pop %v1872
  %v1922 = vmul.f32 %v1844, %v1921
  %v1923 = vrcp.pop %v1873
  %v1924 = vmul.f32 %v1845, %v1923
  %v1925 = vrcp.pop %v1874
  %v1926 = vmul.f32 %v1846, %v1925
  %v1927 = vrcp.pop %v1875
  %v1928 = vmul.f32 %v1847, %v1927
  %v1929 = vrcp.pop %v1876
  %v1930 = vmul.f32 %v1848, %v1929
  %v1931 = vrcp.pop %v1877
  %v1932 = vmul.f32 %v1849, %v1931
  %v1933 = vrcp.pop %v1878
  %v1934 = vmul.f32 %v1850, %v1933
  %v1935 = vmul.f32 %v1740, %v1740
  %v1936 = vmul.f32 %v1742, %v1742
  %v1937 = vmul.f32 %v1744, %v1744
  %v1938 = vmul.f32 %v1746, %v1746
  %v1939 = vmul.f32 %v1748, %v1748
  %v1940 = vmul.f32 %v1750, %v1750
  %v1941 = vmul.f32 %v1752, %v1752
  %v1942 = vmul.f32 %v1754, %v1754
  %v1943 = vmul.f32 %v1756, %v1756
  %v1944 = vmul.f32 %v1758, %v1758
  %v1945 = vmul.f32 %v1760, %v1760
  %v1946 = vmul.f32 %v1762, %v1762
  %v1947 = vmul.f32 %v1764, %v1764
  %v1948 = vmul.f32 %v1766, %v1766
  %v1949 = vmul.f32 %v1768, %v1768
  %v1950 = vmul.f32 %v1770, %v1770
  %v1951 = vmul.f32 %v1772, %v1772
  %v1952 = vmul.f32 %v1774, %v1774
  %v1953 = vmul.f32 %v1776, %v1776
  %v1954 = vmul.f32 %v1778, %v1778
  %v1955 = vmul.f32 %v1780, %v1780
  %v1956 = vmul.f32 %v1782, %v1782
  %v1957 = vmul.f32 %v1784, %v1784
  %v1958 = vmul.f32 %v1786, %v1786
  %v1959 = vmul.f32 %v1788, %v1788
  %v1960 = vmul.f32 %v1790, %v1790
  %v1961 = vmul.f32 %v1792, %v1792
  %v1962 = vmul.f32 %v1794, %v1794
  %v1963 = vmul.f32 %v1935, %v1207
  %v1964 = vmul.f32 %v1936, %v1208
  %v1965 = vmul.f32 %v1937, %v1209
  %v1966 = vmul.f32 %v1938, %v1210
  %v1967 = vmul.f32 %v1939, %v1211
  %v1968 = vmul.f32 %v1940, %v1212
  %v1969 = vmul.f32 %v1941, %v1213
  %v1970 = vmul.f32 %v1942, %v1214
  %v1971 = vmul.f32 %v1943, %v1215
  %v1972 = vmul.f32 %v1944, %v1216
  %v1973 = vmul.f32 %v1945, %v1217
  %v1974 = vmul.f32 %v1946, %v1218
  %v1975 = vmul.f32 %v1947, %v1219
  %v1976 = vmul.f32 %v1948, %v1220
  %v1977 = vmul.f32 %v1949, %v1221
  %v1978 = vmul.f32 %v1950, %v1222
  %v1979 = vmul.f32 %v1951, %v1223
  %v1980 = vmul.f32 %v1952, %v1224
  %v1981 = vmul.f32 %v1953, %v1225
  %v1982 = vmul.f32 %v1954, %v1226
  %v1983 = vmul.f32 %v1955, %v1227
  %v1984 = vmul.f32 %v1956, %v1228
  %v1985 = vmul.f32 %v1957, %v1229
  %v1986 = vmul.f32 %v1958, %v1230
  %v1987 = vmul.f32 %v1959, %v1231
  %v1988 = vmul.f32 %v1960, %v1232
  %v1989 = vmul.f32 %v1961, %v1233
  %v1990 = vmul.f32 %v1962, %v1234
  %v1991 = vmul.f32 %v1880, %v1880
  %v1992 = vmul.f32 %v1882, %v1882
  %v1993 = vmul.f32 %v1884, %v1884
  %v1994 = vmul.f32 %v1886, %v1886
  %v1995 = vmul.f32 %v1888, %v1888
  %v1996 = vmul.f32 %v1890, %v1890
  %v1997 = vmul.f32 %v1892, %v1892
  %v1998 = vmul.f32 %v1894, %v1894
  %v1999 = vmul.f32 %v1896, %v1896
  %v2000 = vmul.f32 %v1898, %v1898
  %v2001 = vmul.f32 %v1900, %v1900
  %v2002 = vmul.f32 %v1902, %v1902
  %v2003 = vmul.f32 %v1904, %v1904
  %v2004 = vmul.f32 %v1906, %v1906
  %v2005 = vmul.f32 %v1908, %v1908
  %v2006 = vmul.f32 %v1910, %v1910
  %v2007 = vmul.f32 %v1912, %v1912
  %v2008 = vmul.f32 %v1914, %v1914
  %v2009 = vmul.f32 %v1916, %v1916
  %v2010 = vmul.f32 %v1918, %v1918
  %v2011 = vmul.f32 %v1920, %v1920
  %v2012 = vmul.f32 %v1922, %v1922
  %v2013 = vmul.f32 %v1924, %v1924
  %v2014 = vmul.f32 %v1926, %v1926
  %v2015 = vmul.f32 %v1928, %v1928
  %v2016 = vmul.f32 %v1930, %v1930
  %v2017 = vmul.f32 %v1932, %v1932
  %v2018 = vmul.f32 %v1934, %v1934
  %v2019 = vmul.f32 %v1991, %v1627
  %v2020 = vmul.f32 %v1992, %v1628
  %v2021 = vmul.f32 %v1993, %v1629
  %v2022 = vmul.f32 %v1994, %v1630
  %v2023 = vmul.f32 %v1995, %v1631
  %v2024 = vmul.f32 %v1996, %v1632
  %v2025 = vmul.f32 %v1997, %v1633
  %v2026 = vmul.f32 %v1998, %v1634
  %v2027 = vmul.f32 %v1999, %v1635
  %v2028 = vmul.f32 %v2000, %v1636
  %v2029 = vmul.f32 %v2001, %v1637
  %v2030 = vmul.f32 %v2002, %v1638
  %v2031 = vmul.f32 %v2003, %v1639
  %v2032 = vmul.f32 %v2004, %v1640
  %v2033 = vmul.f32 %v2005, %v1641
  %v2034 = vmul.f32 %v2006, %v1642
  %v2035 = vmul.f32 %v2007, %v1643
  %v2036 = vmul.f32 %v2008, %v1644
  %v2037 = vmul.f32 %v2009, %v1645
  %v2038 = vmul.f32 %v2010, %v1646
  %v2039 = vmul.f32 %v2011, %v1647
  %v2040 = vmul.f32 %v2012, %v1648
  %v2041 = vmul.f32 %v2013, %v1649
  %v2042 = vmul.f32 %v2014, %v1650
  %v2043 = vmul.f32 %v2015, %v1651
  %v2044 = vmul.f32 %v2016, %v1652
  %v2045 = vmul.f32 %v2017, %v1653
  %v2046 = vmul.f32 %v2018, %v1654
  %v2047 = vadd.f32 %v1963, %v2019
  %v2048 = vadd.f32 %v1964, %v2020
  %v2049 = vadd.f32 %v1965, %v2021
  %v2050 = vadd.f32 %v1966, %v2022
  %v2051 = vadd.f32 %v1967, %v2023
  %v2052 = vadd.f32 %v1968, %v2024
  %v2053 = vadd.f32 %v1969, %v2025
  %v2054 = vadd.f32 %v1970, %v2026
  %v2055 = vadd.f32 %v1971, %v2027
  %v2056 = vadd.f32 %v1972, %v2028
  %v2057 = vadd.f32 %v1973, %v2029
  %v2058 = vadd.f32 %v1974, %v2030
  %v2059 = vadd.f32 %v1975, %v2031
  %v2060 = vadd.f32 %v1976, %v2032
  %v2061 = vadd.f32 %v1977, %v2033
  %v2062 = vadd.f32 %v1978, %v2034
  %v2063 = vadd.f32 %v1979, %v2035
  %v2064 = vadd.f32 %v1980, %v2036
  %v2065 = vadd.f32 %v1981, %v2037
  %v2066 = vadd.f32 %v1982, %v2038
  %v2067 = vadd.f32 %v1983, %v2039
  %v2068 = vadd.f32 %v1984, %v2040
  %v2069 = vadd.f32 %v1985, %v2041
  %v2070 = vadd.f32 %v1986, %v2042
  %v2071 = vadd.f32 %v1987, %v2043
  %v2072 = vadd.f32 %v1988, %v2044
  %v2073 = vadd.f32 %v1989, %v2045
  %v2074 = vadd.f32 %v1990, %v2046
  %v2075 = vmul.f32 %v2047, 0.2475
  %v2076 = vmul.f32 %v2048, 0.2475
  %v2077 = vmul.f32 %v2049, 0.2475
  %v2078 = vmul.f32 %v2050, 0.2475
  %v2079 = vmul.f32 %v2051, 0.2475
  %v2080 = vmul.f32 %v2052, 0.2475
  %v2081 = vmul.f32 %v2053, 0.2475
  %v2082 = vmul.f32 %v2054, 0.2475
  %v2083 = vmul.f32 %v2055, 0.2475
  %v2084 = vmul.f32 %v2056, 0.2475
  %v2085 = vmul.f32 %v2057, 0.2475
  %v2086 = vmul.f32 %v2058, 0.2475
  %v2087 = vmul.f32 %v2059, 0.2475
  %v2088 = vmul.f32 %v2060, 0.2475
  %v2089 = vmul.f32 %v2061, 0.2475
  %v2090 = vmul.f32 %v2062, 0.2475
  %v2091 = vmul.f32 %v2063, 0.2475
  %v2092 = vmul.f32 %v2064, 0.2475
  %v2093 = vmul.f32 %v2065, 0.2475
  %v2094 = vmul.f32 %v2066, 0.2475
  %v2095 = vmul.f32 %v2067, 0.2475
  %v2096 = vmul.f32 %v2068, 0.2475
  %v2097 = vmul.f32 %v2069, 0.2475
  %v2098 = vmul.f32 %v2070, 0.2475
  %v2099 = vmul.f32 %v2071, 0.2475
  %v2100 = vmul.f32 %v2072, 0.2475
  %v2101 = vmul.f32 %v2073, 0.2475
  %v2102 = vmul.f32 %v2074, 0.2475
  %v2103 = vadd.f32 %v703, %v2075
  %v2104 = vadd.f32 %v704, %v2076
  %v2105 = vadd.f32 %v705, %v2077
  %v2106 = vadd.f32 %v706, %v2078
  %v2107 = vadd.f32 %v707, %v2079
  %v2108 = vadd.f32 %v708, %v2080
  %v2109 = vadd.f32 %v709, %v2081
  %v2110 = vadd.f32 %v710, %v2082
  %v2111 = vadd.f32 %v711, %v2083
  %v2112 = vadd.f32 %v712, %v2084
  %v2113 = vadd.f32 %v713, %v2085
  %v2114 = vadd.f32 %v714, %v2086
  %v2115 = vadd.f32 %v715, %v2087
  %v2116 = vadd.f32 %v716, %v2088
  %v2117 = vadd.f32 %v717, %v2089
  %v2118 = vadd.f32 %v718, %v2090
  %v2119 = vadd.f32 %v719, %v2091
  %v2120 = vadd.f32 %v720, %v2092
  %v2121 = vadd.f32 %v721, %v2093
  %v2122 = vadd.f32 %v722, %v2094
  %v2123 = vadd.f32 %v723, %v2095
  %v2124 = vadd.f32 %v724, %v2096
  %v2125 = vadd.f32 %v725, %v2097
  %v2126 = vadd.f32 %v726, %v2098
  %v2127 = vadd.f32 %v727, %v2099
  %v2128 = vadd.f32 %v728, %v2100
  %v2129 = vadd.f32 %v729, %v2101
  %v2130 = vadd.f32 %v730, %v2102
  %v2131 = vadd.f32 %v2103, %v2104
  %v2132 = vadd.f32 %v2131, %v2105
  %v2133 = vadd.f32 %v2132, %v2106
  %v2134 = vadd.f32 %v2133, %v2107
  %v2135 = vadd.f32 %v2134, %v2108
  %v2136 = vadd.f32 %v2135, %v2109
  %v2137 = vadd.f32 %v2136, %v2110
  %v2138 = vadd.f32 %v2137, %v2111
  %v2139 = vadd.f32 %v2138, %v2112
  %v2140 = vadd.f32 %v2139, %v2113
  %v2141 = vadd.f32 %v2140, %v2114
  %v2142 = vadd.f32 %v2141, %v2115
  %v2143 = vadd.f32 %v2142, %v2116
  %v2144 = vadd.f32 %v2143, %v2117
  %v2145 = vadd.f32 %v2144, %v2118
  %v2146 = vadd.f32 %v2145, %v2119
  %v2147 = vadd.f32 %v2146, %v2120
  %v2148 = vadd.f32 %v2147, %v2121
  %v2149 = vadd.f32 %v2148, %v2122
  %v2150 = vadd.f32 %v2149, %v2123
  %v2151 = vadd.f32 %v2150, %v2124
  %v2152 = vadd.f32 %v2151, %v2125
  %v2153 = vadd.f32 %v2152, %v2126
  %v2154 = vadd.f32 %v2153, %v2127
  %v2155 = vadd.f32 %v2154, %v2128
  %v2156 = vadd.f32 %v2155, %v2129
  %v2157 = vadd.f32 %v2156, %v2130
  %p2158 = scmp.eq.s32.totalorder 0, 0
  // Predicated region
  $region14: #{classification_loss.1} parent=0 // pred_check
    %p2159 = pneg %p2158
  $region15: #{classification_loss.1} parent=0 // pred_check_branch
    %2161 = sbr.rel (%p2159) target = $region17
  $region16: #{classification_loss.1} parent=0 // pred_region
    %2162 = vst [vmem:[#allocation2] sm:$0xff] 0.0
  $region17: #{classification_loss.1} parent=0 // pred_fallthru
    _
  %v2163 = vld [vmem:[#allocation2] sm:$0xff]
  %v2164 = vadd.f32 %v2163, %v2157
  %2165 = vst [vmem:[#allocation2] sm:$0xff] %v2164
  // Predicated region
  $region18: #{classification_loss.1} parent=0 // pred_check
    %p2166 = pneg %p2158
  $region19: #{classification_loss.1} parent=0 // pred_check_branch
    %2168 = sbr.rel (%p2166) target = $region21
  $region20: #{classification_loss.1} parent=0 // pred_region
    %v2169 = vld [vmem:[#allocation2] sm:$0xff]
    %2170 = vst [vmem:[%s3] sm:$0xff] %v2169
  $region21: #{classification_loss.1} parent=0 // pred_fallthru
    _
  // Predicated region
  $region22: #{classification_loss.1} parent=0 // pred_check
    _
  $region23: #{classification_loss.1} parent=0 // pred_check_branch
    %2172 = sbr.rel (0) target = $region25
  $region24: #{classification_loss.1} parent=0 // pred_region
    _
  $region25: #{classification_loss.1} parent=0 // pred_fallthru
    _
  // Predicated region
  $region26: #{classification_loss.1} parent=0 // pred_check
    _
  $region27: #{classification_loss.1} parent=0 // pred_check_branch
    %2174 = sbr.rel (0) target = $region29
  $region28: #{classification_loss.1} parent=0 // pred_region
    _
  $region29: #{classification_loss.1} parent=0 // pred_fallthru
    _

</llo_original>
